<compile_context>
chip_gen: v7x
topology: tpu7x:2x2x1
jax: 0.10.0
libtpu: 0.0.40
codegen_flags: <defaults>
</compile_context>

<pallas_src>
import functools
import math

import jax
import jax.numpy as jnp
from jax import lax
from jax.experimental import pallas as pl
from jax.experimental.pallas import tpu as pltpu  # noqa: F401  (TPU backend)

DTYPE = jnp.float32
LN_EPS = 1e-5
CONV_STRIDES = (5, 2)  # feature-extractor Conv1d strides (static)


# ----------------------------------------------------------------------------
# In-kernel math helpers (plain functions, traced inside kernels)
# ----------------------------------------------------------------------------
def _gelu(x):
    # TODO(synk): PyTorch nn.GELU defaults to the exact erf form; tanh-approx
    # is used here (VPU/EUP only) and differs at ~1e-3 level.
    c = math.sqrt(2.0 / math.pi)
    return 0.5 * x * (1.0 + jnp.tanh(c * (x + 0.044715 * x * x * x)))


def _layernorm(x, g, b, eps):
    mu = jnp.mean(x, axis=-1, keepdims=True)
    xc = x - mu
    var = jnp.mean(xc * xc, axis=-1, keepdims=True)
    return xc * lax.rsqrt(var + eps) * g + b


# ----------------------------------------------------------------------------
# Pallas kernels (whole-array blocks; everything fits easily in VMEM)
# ----------------------------------------------------------------------------
def _linear_kernel(x_ref, wt_ref, b_ref, o_ref, *, activation):
    y = jnp.dot(x_ref[...], wt_ref[...],
                preferred_element_type=jnp.float32) + b_ref[...]
    if activation == "gelu":
        y = _gelu(y)
    o_ref[...] = y.astype(o_ref.dtype)


def _conv_ln_proj_kernel(p_ref, wt_ref, b_ref, lng_ref, lnb_ref,
                         fpwt_ref, fpb_ref, o_ref, *, eps):
    # conv (as matmul on im2col patches) + GELU + LayerNorm + feature projection
    h = jnp.dot(p_ref[...], wt_ref[...],
                preferred_element_type=jnp.float32) + b_ref[...]
    h = _gelu(h)
    h = _layernorm(h, lng_ref[...], lnb_ref[...], eps)
    y = jnp.dot(h, fpwt_ref[...],
                preferred_element_type=jnp.float32) + fpb_ref[...]
    o_ref[...] = y.astype(o_ref.dtype)


def _encoder_layer_kernel(x_ref, wqkv_ref, bqkv_ref, wo_ref, bo_ref,
                          ln1g_ref, ln1b_ref,
                          w1_ref, b1_ref, w2_ref, b2_ref,
                          ln2g_ref, ln2b_ref,
                          wd_ref, bd_ref, wu_ref, bu_ref,
                          o_ref, *, batch, seq, num_heads, eps):
    hidden = x_ref.shape[-1]
    dh = hidden // num_heads
    scale = 1.0 / math.sqrt(dh)

    x = x_ref[...].astype(jnp.float32)                         # (B*T, H)

    # --- fused q/k/v projection (LoRA already folded into wqkv) -------------
    qkv = jnp.dot(x, wqkv_ref[...],
                  preferred_element_type=jnp.float32) + bqkv_ref[...]  # (B*T, 3H)

    # --- multi-head attention + output dense (accumulated per head) ---------
    wo = wo_ref[...]                                           # (H, H)
    attn = jnp.zeros((batch * seq, hidden), jnp.float32)
    for h in range(num_heads):
        qh = qkv[:, h * dh:(h + 1) * dh].reshape(batch, seq, dh)
        kh = qkv[:, hidden + h * dh: hidden + (h + 1) * dh].reshape(batch, seq, dh)
        vh = qkv[:, 2 * hidden + h * dh: 2 * hidden + (h + 1) * dh].reshape(batch, seq, dh)
        s = lax.dot_general(qh, kh, (((2,), (2,)), ((0,), (0,))),
                            preferred_element_type=jnp.float32) * scale   # (B,T,T)
        m = jnp.max(s, axis=-1, keepdims=True)
        p = jnp.exp(s - m)
        p = p * pl.reciprocal(jnp.sum(p, axis=-1, keepdims=True), approx=True)
        ctx = lax.dot_general(p, vh, (((2,), (1,)), ((0,), (0,))),
                              preferred_element_type=jnp.float32)          # (B,T,dh)
        attn = attn + jnp.dot(ctx.reshape(batch * seq, dh),
                              wo[h * dh:(h + 1) * dh, :],
                              preferred_element_type=jnp.float32)
    attn = attn + bo_ref[...]

    # --- residual + LN1 ------------------------------------------------------
    h1 = _layernorm(x + attn, ln1g_ref[...], ln1b_ref[...], eps)

    # --- feed forward ---------------------------------------------------------
    inter = _gelu(jnp.dot(h1, w1_ref[...],
                          preferred_element_type=jnp.float32) + b1_ref[...])
    ffn = jnp.dot(inter, w2_ref[...],
                  preferred_element_type=jnp.float32) + b2_ref[...]
    h2 = _layernorm(h1 + ffn, ln2g_ref[...], ln2b_ref[...], eps)

    # --- AdapterLayer: residual bottleneck (dropout = identity) -------------
    a = jnp.maximum(jnp.dot(h2, wd_ref[...],
                            preferred_element_type=jnp.float32) + bd_ref[...], 0.0)
    up = jnp.dot(a, wu_ref[...],
                 preferred_element_type=jnp.float32) + bu_ref[...]
    o_ref[...] = (h2 + up).astype(o_ref.dtype)


# ----------------------------------------------------------------------------
# Thin wrappers
# ----------------------------------------------------------------------------
def pallas_linear(x2d, wt, b2d, activation="none"):
    m, n = x2d.shape[0], wt.shape[1]
    return pl.pallas_call(
        functools.partial(_linear_kernel, activation=activation),
        out_shape=jax.ShapeDtypeStruct((m, n), x2d.dtype),
    )(x2d, wt, b2d)


def pallas_conv_ln_proj(patches, wt, b2d, lng, lnb, fpwt, fpb):
    m, n = patches.shape[0], fpwt.shape[1]
    return pl.pallas_call(
        functools.partial(_conv_ln_proj_kernel, eps=LN_EPS),
        out_shape=jax.ShapeDtypeStruct((m, n), patches.dtype),
    )(patches, wt, b2d, lng, lnb, fpwt, fpb)


def pallas_encoder_layer(x2d, lyr, *, batch, seq, num_heads):
    m, h = x2d.shape
    return pl.pallas_call(
        functools.partial(_encoder_layer_kernel, batch=batch, seq=seq,
                          num_heads=num_heads, eps=LN_EPS),
        out_shape=jax.ShapeDtypeStruct((m, h), x2d.dtype),
    )(x2d, lyr["wqkv_t"], lyr["bqkv"], lyr["wo_t"], lyr["bo"],
      lyr["ln1_g"], lyr["ln1_b"],
      lyr["ffn_w1_t"], lyr["ffn_b1"], lyr["ffn_w2_t"], lyr["ffn_b2"],
      lyr["ln2_g"], lyr["ln2_b"],
      lyr["ad_wd_t"], lyr["ad_bd"], lyr["ad_wu_t"], lyr["ad_bu"])


def _im2col(x_blc, kernel_size, stride):
    # TODO(synk): host-side gather im2col; at real wav2vec2 lengths move this
    # into lax.conv_general_dilated or strided in-kernel pl.ds loads.
    B, L, cin = x_blc.shape
    T = (L - kernel_size) // stride + 1
    idx = jnp.arange(T)[:, None] * stride + jnp.arange(kernel_size)[None, :]
    patches = x_blc[:, idx, :]                       # (B, T, K, Cin)
    return patches.reshape(B * T, kernel_size * cin), T


# ----------------------------------------------------------------------------
# Forward pass (jitted; 5 pallas_call launches for the default 2-layer config)
# ----------------------------------------------------------------------------
@functools.partial(jax.jit, static_argnames=("num_heads", "conv_strides"))
def forward(prep, input_values, attention_mask=None, *, num_heads, conv_strides):
    # TODO(synk): attention_mask accepted but not applied (test passes None,
    # matching the PyTorch forward default).
    B = input_values.shape[0]
    x = input_values[:, :, None]                     # (B, L, 1) channels-last

    # feature_extractor conv 0 : im2col -> fused matmul + GELU
    w0_t, b0 = prep["conv0"]
    k0 = w0_t.shape[0]                               # K (Cin = 1)
    c_feat = w0_t.shape[1]
    p0, T0 = _im2col(x, k0, conv_strides[0])
    h0 = pallas_linear(p0, w0_t, b0, activation="gelu").reshape(B, T0, c_feat)

    # conv 1 + GELU + feature_projection (LayerNorm -> Linear), fused
    w1_t, b1 = prep["conv1"]
    k1 = w1_t.shape[0] // c_feat
    p1, T = _im2col(h0, k1, conv_strides[1])
    hidden = pallas_conv_ln_proj(p1, w1_t, b1, prep["fp_ln_g"], prep["fp_ln_b"],
                                 prep["fp_w_t"], prep["fp_b"])      # (B*T, H)

    # encoder layers (LoRA folded, one fused kernel per layer) + adapter
    for lyr in prep["layers"]:
        hidden = pallas_encoder_layer(hidden, lyr, batch=B, seq=T,
                                      num_heads=num_heads)

    logits = pallas_linear(hidden, prep["lm_w_t"], prep["lm_b"])

    H = hidden.shape[-1]
    V = logits.shape[-1]
    return {"logits": logits.reshape(B, T, V),
            "hidden_states": hidden.reshape(B, T, H)}


# ----------------------------------------------------------------------------
# Deterministic parameter construction (PyTorch-equivalent parameterization)
# ----------------------------------------------------------------------------
def init_params(key, hidden=32, num_heads=2, intermediate=64, num_layers=2,
                lora_rank=4, lora_alpha=32.0, adapter_bottleneck=8, vocab=16):
    keys = iter(jax.random.split(key, 256))

    def nrm(shape, scale=0.02):
        return scale * jax.random.normal(next(keys), shape, dtype=DTYPE)

    def kaiming_uniform(shape):          # nn.init.kaiming_uniform_(a=sqrt(5))
        fan_in = shape[1]
        bound = 1.0 / math.sqrt(fan_in)
        return jax.random.uniform(next(keys), shape, dtype=DTYPE,
                                  minval=-bound, maxval=bound)

    c_feat = hidden
    params = {
        "num_heads": num_heads,
        "lora_scaling": lora_alpha / lora_rank,
        # feature extractor: (weight, bias, stride); torch Conv1d layout
        "feat_convs": [
            (nrm((c_feat, 1, 10)), jnp.zeros((c_feat,), DTYPE), 5),
            (nrm((c_feat, c_feat, 3)), jnp.zeros((c_feat,), DTYPE), 2),
        ],
        "fp_ln_g": jnp.ones((c_feat,), DTYPE),
        "fp_ln_b": jnp.zeros((c_feat,), DTYPE),
        "fp_w": nrm((hidden, c_feat)),
        "fp_b": jnp.zeros((hidden,), DTYPE),
        "lm_w": nrm((vocab, hidden)),
        "lm_b": jnp.zeros((vocab,), DTYPE),
        "layers": [],
    }

    def lora_linear_params():
        w = nrm((hidden, hidden))
        b = jnp.zeros((hidden,), DTYPE)
        a = kaiming_uniform((lora_rank, hidden))          # lora_A
        bm = jnp.zeros((hidden, lora_rank), DTYPE)        # lora_B (zero init)
        return (w, b, a, bm)

    for _ in range(num_layers):
        lyr = {
            "q": lora_linear_params(),
            "k": lora_linear_params(),
            "v": lora_linear_params(),
            "o": lora_linear_params(),
            "ln1_g": jnp.ones((hidden,), DTYPE),
            "ln1_b": jnp.zeros((hidden,), DTYPE),
            "ffn_w1": nrm((intermediate, hidden)),
            "ffn_b1": jnp.zeros((intermediate,), DTYPE),
            "ffn_w2": nrm((hidden, intermediate)),
            "ffn_b2": jnp.zeros((hidden,), DTYPE),
            "ln2_g": jnp.ones((hidden,), DTYPE),
            "ln2_b": jnp.zeros((hidden,), DTYPE),
            # adapter: down (normal), up (zero init per AdapterLayer.__init__)
            "adapter": (nrm((adapter_bottleneck, hidden)),
                        jnp.zeros((adapter_bottleneck,), DTYPE),
                        jnp.zeros((hidden, adapter_bottleneck), DTYPE),
                        jnp.zeros((hidden,), DTYPE)),
        }
        params["layers"].append(lyr)
    return params


def prepare_params(params):
    """One-time host prep: fold LoRA into base weights (exact, dropout=identity
    in eval), concat q/k/v, pre-transpose all weights, reshape biases."""
    scaling = params["lora_scaling"]

    def fold(lora):
        w, b, a, bm = lora                 # w:(out,in), a:(rank,in), bm:(out,rank)
        return w + scaling * (bm @ a), b   # W_eff = W + s * B @ A

    def row(b):
        return b.reshape(1, -1)

    (w0, b0, _), (w1, b1, _) = params["feat_convs"]
    c0_out, c0_in, k0 = w0.shape
    c1_out, c1_in, k1 = w1.shape
    prep = {
        # torch (C_out, C_in, K) -> (K*C_in, C_out), matching im2col (K, C_in)
        "conv0": (jnp.transpose(w0, (2, 1, 0)).reshape(k0 * c0_in, c0_out), row(b0)),
        "conv1": (jnp.transpose(w1, (2, 1, 0)).reshape(k1 * c1_in, c1_out), row(b1)),
        "fp_ln_g": row(params["fp_ln_g"]),
        "fp_ln_b": row(params["fp_ln_b"]),
        "fp_w_t": params["fp_w"].T,
        "fp_b": row(params["fp_b"]),
        "lm_w_t": params["lm_w"].T,
        "lm_b": row(params["lm_b"]),
        "layers": [],
    }

    for lyr in params["layers"]:
        wq, bq = fold(lyr["q"])
        wk, bk = fold(lyr["k"])
        wv, bv = fold(lyr["v"])
        wo, bo = fold(lyr["o"])
        wd, bd, wu, bu = lyr["adapter"]
        prep["layers"].append({
            "wqkv_t": jnp.concatenate([wq.T, wk.T, wv.T], axis=1),   # (H, 3H)
            "bqkv": jnp.concatenate([bq, bk, bv]).reshape(1, -1),
            "wo_t": wo.T, "bo": row(bo),
            "ln1_g": row(lyr["ln1_g"]), "ln1_b": row(lyr["ln1_b"]),
            "ffn_w1_t": lyr["ffn_w1"].T, "ffn_b1": row(lyr["ffn_b1"]),
            "ffn_w2_t": lyr["ffn_w2"].T, "ffn_b2": row(lyr["ffn_b2"]),
            "ln2_g": row(lyr["ln2_g"]), "ln2_b": row(lyr["ln2_b"]),
            "ad_wd_t": wd.T, "ad_bd": row(bd),
            "ad_wu_t": wu.T, "ad_bu": row(bu),
        })
    return prep


if __name__ == "__main__":
    key = jax.random.PRNGKey(0)
    pkey, xkey = jax.random.split(key)

    B, L = 2, 330                      # -> T = 32 frames after the conv stack
    params = init_params(pkey)
    prep = prepare_params(params)
    input_values = jax.random.normal(xkey, (B, L), dtype=DTYPE)

    out = forward(prep, input_values, attention_mask=None,
                  num_heads=params["num_heads"], conv_strides=CONV_STRIDES)
    jax.block_until_ready(out["logits"])
    jax.block_until_ready(out["hidden_states"])

    assert out["hidden_states"].shape == (B, 32, 32)
    assert out["logits"].shape == (B, 32, 16)
    print("KERNEL_OK")
</pallas_src>

<mosaic_0001>
module attributes {stable_mosaic.version = 11 : i64} {
  func.func @_linear_kernel(%arg0: memref<130x10xf32, #tpu.memory_space<vmem>>, %arg1: memref<10x32xf32, #tpu.memory_space<vmem>>, %arg2: memref<1x32xf32, #tpu.memory_space<vmem>>, %arg3: memref<130x32xf32, #tpu.memory_space<vmem>>) attributes {dimension_semantics = [], scalar_prefetch = 0 : i64, scratch_operands = 0 : i64, tpu.core_type = #tpu.core_type<tc>} {
    %c0 = arith.constant 0 : index
    %c0_0 = arith.constant 0 : index
    %0 = vector.load %arg0[%c0, %c0_0] : memref<130x10xf32, #tpu.memory_space<vmem>>, vector<130x10xf32>
    %c0_1 = arith.constant 0 : index
    %c0_2 = arith.constant 0 : index
    %1 = vector.load %arg1[%c0_1, %c0_2] : memref<10x32xf32, #tpu.memory_space<vmem>>, vector<10x32xf32>
    %cst = arith.constant dense<0.000000e+00> : vector<130x32xf32>
    %2 = tpu.matmul %0, %1, %cst {dimension_numbers = #tpu.dot_dimension_numbers<[1], [0], [0], [1], [0, 0, 1, 1], [], []>} : vector<130x10xf32>, vector<10x32xf32>, vector<130x32xf32> -> vector<130x32xf32>
    %c0_3 = arith.constant 0 : index
    %c0_4 = arith.constant 0 : index
    %3 = vector.load %arg2[%c0_3, %c0_4] : memref<1x32xf32, #tpu.memory_space<vmem>>, vector<1x32xf32>
    %4 = vector.broadcast %3 : vector<1x32xf32> to vector<130x32xf32>
    %5 = arith.addf %2, %4 : vector<130x32xf32>
    %cst_5 = arith.constant 5.000000e-01 : f32
    %6 = vector.broadcast %cst_5 : f32 to vector<130x32xf32>
    %7 = arith.mulf %6, %5 : vector<130x32xf32>
    %cst_6 = arith.constant 4.471500e-02 : f32
    %8 = vector.broadcast %cst_6 : f32 to vector<130x32xf32>
    %9 = arith.mulf %8, %5 : vector<130x32xf32>
    %10 = arith.mulf %9, %5 : vector<130x32xf32>
    %11 = arith.mulf %10, %5 : vector<130x32xf32>
    %12 = arith.addf %5, %11 : vector<130x32xf32>
    %cst_7 = arith.constant 0.797884583 : f32
    %13 = vector.broadcast %cst_7 : f32 to vector<130x32xf32>
    %14 = arith.mulf %13, %12 : vector<130x32xf32>
    %15 = math.tanh %14 : vector<130x32xf32>
    %cst_8 = arith.constant 1.000000e+00 : f32
    %16 = vector.broadcast %cst_8 : f32 to vector<130x32xf32>
    %17 = arith.addf %16, %15 : vector<130x32xf32>
    %18 = arith.mulf %7, %17 : vector<130x32xf32>
    %c0_9 = arith.constant 0 : index
    %c0_10 = arith.constant 0 : index
    %19 = vector.load %arg3[%c0_9, %c0_10] : memref<130x32xf32, #tpu.memory_space<vmem>>, vector<130x32xf32>
    tpu.vector_store %arg3[%c0_9, %c0_10], %18 {strides = array<i32>} : memref<130x32xf32, #tpu.memory_space<vmem>>, vector<130x32xf32>,
    return
  }
}

module attributes {stable_mosaic.version = 11 : i64} {
  func.func @_conv_ln_proj_kernel(%arg0: memref<64x96xf32, #tpu.memory_space<vmem>>, %arg1: memref<96x32xf32, #tpu.memory_space<vmem>>, %arg2: memref<1x32xf32, #tpu.memory_space<vmem>>, %arg3: memref<1x32xf32, #tpu.memory_space<vmem>>, %arg4: memref<1x32xf32, #tpu.memory_space<vmem>>, %arg5: memref<32x32xf32, #tpu.memory_space<vmem>>, %arg6: memref<1x32xf32, #tpu.memory_space<vmem>>, %arg7: memref<64x32xf32, #tpu.memory_space<vmem>>) attributes {dimension_semantics = [], scalar_prefetch = 0 : i64, scratch_operands = 0 : i64, tpu.core_type = #tpu.core_type<tc>} {
    %c0 = arith.constant 0 : index
    %c0_0 = arith.constant 0 : index
    %0 = vector.load %arg0[%c0, %c0_0] : memref<64x96xf32, #tpu.memory_space<vmem>>, vector<64x96xf32>
    %c0_1 = arith.constant 0 : index
    %c0_2 = arith.constant 0 : index
    %1 = vector.load %arg1[%c0_1, %c0_2] : memref<96x32xf32, #tpu.memory_space<vmem>>, vector<96x32xf32>
    %cst = arith.constant dense<0.000000e+00> : vector<64x32xf32>
    %2 = tpu.matmul %0, %1, %cst {dimension_numbers = #tpu.dot_dimension_numbers<[1], [0], [0], [1], [0, 0, 1, 1], [], []>} : vector<64x96xf32>, vector<96x32xf32>, vector<64x32xf32> -> vector<64x32xf32>
    %c0_3 = arith.constant 0 : index
    %c0_4 = arith.constant 0 : index
    %3 = vector.load %arg2[%c0_3, %c0_4] : memref<1x32xf32, #tpu.memory_space<vmem>>, vector<1x32xf32>
    %4 = vector.broadcast %3 : vector<1x32xf32> to vector<64x32xf32>
    %5 = arith.addf %2, %4 : vector<64x32xf32>
    %cst_5 = arith.constant 5.000000e-01 : f32
    %6 = vector.broadcast %cst_5 : f32 to vector<64x32xf32>
    %7 = arith.mulf %6, %5 : vector<64x32xf32>
    %cst_6 = arith.constant 4.471500e-02 : f32
    %8 = vector.broadcast %cst_6 : f32 to vector<64x32xf32>
    %9 = arith.mulf %8, %5 : vector<64x32xf32>
    %10 = arith.mulf %9, %5 : vector<64x32xf32>
    %11 = arith.mulf %10, %5 : vector<64x32xf32>
    %12 = arith.addf %5, %11 : vector<64x32xf32>
    %cst_7 = arith.constant 0.797884583 : f32
    %13 = vector.broadcast %cst_7 : f32 to vector<64x32xf32>
    %14 = arith.mulf %13, %12 : vector<64x32xf32>
    %15 = math.tanh %14 : vector<64x32xf32>
    %cst_8 = arith.constant 1.000000e+00 : f32
    %16 = vector.broadcast %cst_8 : f32 to vector<64x32xf32>
    %17 = arith.addf %16, %15 : vector<64x32xf32>
    %18 = arith.mulf %7, %17 : vector<64x32xf32>
    %c0_9 = arith.constant 0 : index
    %c0_10 = arith.constant 0 : index
    %19 = vector.load %arg3[%c0_9, %c0_10] : memref<1x32xf32, #tpu.memory_space<vmem>>, vector<1x32xf32>
    %c0_11 = arith.constant 0 : index
    %c0_12 = arith.constant 0 : index
    %20 = vector.load %arg4[%c0_11, %c0_12] : memref<1x32xf32, #tpu.memory_space<vmem>>, vector<1x32xf32>
    %cst_13 = arith.constant dense<0.000000e+00> : vector<64xf32>
    %21 = vector.multi_reduction <add>, %18, %cst_13 [1] : vector<64x32xf32> to vector<64xf32>
    %22 = vector.shape_cast %21 : vector<64xf32> to vector<64x1xf32>
    %cst_14 = arith.constant 3.200000e+01 : f32
    %23 = vector.broadcast %cst_14 : f32 to vector<64x1xf32>
    %24 = arith.divf %22, %23 : vector<64x1xf32>
    %25 = vector.broadcast %24 : vector<64x1xf32> to vector<64x32xf32>
    %26 = arith.subf %18, %25 : vector<64x32xf32>
    %27 = arith.mulf %26, %26 : vector<64x32xf32>
    %cst_15 = arith.constant dense<0.000000e+00> : vector<64xf32>
    %28 = vector.multi_reduction <add>, %27, %cst_15 [1] : vector<64x32xf32> to vector<64xf32>
    %29 = vector.shape_cast %28 : vector<64xf32> to vector<64x1xf32>
    %cst_16 = arith.constant 3.200000e+01 : f32
    %30 = vector.broadcast %cst_16 : f32 to vector<64x1xf32>
    %31 = arith.divf %29, %30 : vector<64x1xf32>
    %cst_17 = arith.constant 9.99999974E-6 : f32
    %32 = vector.broadcast %cst_17 : f32 to vector<64x1xf32>
    %33 = arith.addf %31, %32 : vector<64x1xf32>
    %34 = math.rsqrt %33 : vector<64x1xf32>
    %35 = vector.broadcast %34 : vector<64x1xf32> to vector<64x32xf32>
    %36 = arith.mulf %26, %35 : vector<64x32xf32>
    %37 = vector.broadcast %19 : vector<1x32xf32> to vector<64x32xf32>
    %38 = arith.mulf %36, %37 : vector<64x32xf32>
    %39 = vector.broadcast %20 : vector<1x32xf32> to vector<64x32xf32>
    %40 = arith.addf %38, %39 : vector<64x32xf32>
    %c0_18 = arith.constant 0 : index
    %c0_19 = arith.constant 0 : index
    %41 = vector.load %arg5[%c0_18, %c0_19] : memref<32x32xf32, #tpu.memory_space<vmem>>, vector<32x32xf32>
    %cst_20 = arith.constant dense<0.000000e+00> : vector<64x32xf32>
    %42 = tpu.matmul %40, %41, %cst_20 {dimension_numbers = #tpu.dot_dimension_numbers<[1], [0], [0], [1], [0, 0, 1, 1], [], []>} : vector<64x32xf32>, vector<32x32xf32>, vector<64x32xf32> -> vector<64x32xf32>
    %c0_21 = arith.constant 0 : index
    %c0_22 = arith.constant 0 : index
    %43 = vector.load %arg6[%c0_21, %c0_22] : memref<1x32xf32, #tpu.memory_space<vmem>>, vector<1x32xf32>
    %44 = vector.broadcast %43 : vector<1x32xf32> to vector<64x32xf32>
    %45 = arith.addf %42, %44 : vector<64x32xf32>
    %c0_23 = arith.constant 0 : index
    %c0_24 = arith.constant 0 : index
    %46 = vector.load %arg7[%c0_23, %c0_24] : memref<64x32xf32, #tpu.memory_space<vmem>>, vector<64x32xf32>
    tpu.vector_store %arg7[%c0_23, %c0_24], %45 {strides = array<i32>} : memref<64x32xf32, #tpu.memory_space<vmem>>, vector<64x32xf32>,
    return
  }
}

module attributes {stable_mosaic.version = 11 : i64} {
  func.func @_encoder_layer_kernel(%arg0: memref<64x32xf32, #tpu.memory_space<vmem>>, %arg1: memref<32x96xf32, #tpu.memory_space<vmem>>, %arg2: memref<1x96xf32, #tpu.memory_space<vmem>>, %arg3: memref<32x32xf32, #tpu.memory_space<vmem>>, %arg4: memref<1x32xf32, #tpu.memory_space<vmem>>, %arg5: memref<1x32xf32, #tpu.memory_space<vmem>>, %arg6: memref<1x32xf32, #tpu.memory_space<vmem>>, %arg7: memref<32x64xf32, #tpu.memory_space<vmem>>, %arg8: memref<1x64xf32, #tpu.memory_space<vmem>>, %arg9: memref<64x32xf32, #tpu.memory_space<vmem>>, %arg10: memref<1x32xf32, #tpu.memory_space<vmem>>, %arg11: memref<1x32xf32, #tpu.memory_space<vmem>>, %arg12: memref<1x32xf32, #tpu.memory_space<vmem>>, %arg13: memref<32x8xf32, #tpu.memory_space<vmem>>, %arg14: memref<1x8xf32, #tpu.memory_space<vmem>>, %arg15: memref<8x32xf32, #tpu.memory_space<vmem>>, %arg16: memref<1x32xf32, #tpu.memory_space<vmem>>, %arg17: memref<64x32xf32, #tpu.memory_space<vmem>>) attributes {dimension_semantics = [], scalar_prefetch = 0 : i64, scratch_operands = 0 : i64, tpu.core_type = #tpu.core_type<tc>} {
    %c0 = arith.constant 0 : index
    %c0_0 = arith.constant 0 : index
    %0 = vector.load %arg0[%c0, %c0_0] : memref<64x32xf32, #tpu.memory_space<vmem>>, vector<64x32xf32>
    %c0_1 = arith.constant 0 : index
    %c0_2 = arith.constant 0 : index
    %1 = vector.load %arg1[%c0_1, %c0_2] : memref<32x96xf32, #tpu.memory_space<vmem>>, vector<32x96xf32>
    %cst = arith.constant dense<0.000000e+00> : vector<64x96xf32>
    %2 = tpu.matmul %0, %1, %cst {dimension_numbers = #tpu.dot_dimension_numbers<[1], [0], [0], [1], [0, 0, 1, 1], [], []>} : vector<64x32xf32>, vector<32x96xf32>, vector<64x96xf32> -> vector<64x96xf32>
    %c0_3 = arith.constant 0 : index
    %c0_4 = arith.constant 0 : index
    %3 = vector.load %arg2[%c0_3, %c0_4] : memref<1x96xf32, #tpu.memory_space<vmem>>, vector<1x96xf32>
    %4 = vector.broadcast %3 : vector<1x96xf32> to vector<64x96xf32>
    %5 = arith.addf %2, %4 : vector<64x96xf32>
    %c0_5 = arith.constant 0 : index
    %c0_6 = arith.constant 0 : index
    %6 = vector.load %arg3[%c0_5, %c0_6] : memref<32x32xf32, #tpu.memory_space<vmem>>, vector<32x32xf32>
    %cst_7 = arith.constant 0.000000e+00 : f32
    %7 = vector.broadcast %cst_7 : f32 to vector<64x32xf32>
    %8 = vector.extract_strided_slice %5 {offsets = [0, 0], sizes = [64, 16], strides = [1, 1]} : vector<64x96xf32> to vector<64x16xf32>
    %9 = vector.shape_cast %8 : vector<64x16xf32> to vector<2x32x16xf32>
    %10 = vector.extract_strided_slice %5 {offsets = [0, 32], sizes = [64, 16], strides = [1, 1]} : vector<64x96xf32> to vector<64x16xf32>
    %11 = vector.shape_cast %10 : vector<64x16xf32> to vector<2x32x16xf32>
    %12 = vector.extract_strided_slice %5 {offsets = [0, 64], sizes = [64, 16], strides = [1, 1]} : vector<64x96xf32> to vector<64x16xf32>
    %13 = vector.shape_cast %12 : vector<64x16xf32> to vector<2x32x16xf32>
    %cst_8 = arith.constant dense<0.000000e+00> : vector<2x32x32xf32>
    %14 = tpu.matmul %9, %11, %cst_8 {dimension_numbers = #tpu.dot_dimension_numbers<[2], [2], [1], [1], [0, 0, 0, 1, 1, 1], [0], [0]>} : vector<2x32x16xf32>, vector<2x32x16xf32>, vector<2x32x32xf32> -> vector<2x32x32xf32>
    %cst_9 = arith.constant 2.500000e-01 : f32
    %15 = vector.broadcast %cst_9 : f32 to vector<2x32x32xf32>
    %16 = arith.mulf %14, %15 : vector<2x32x32xf32>
    %cst_10 = arith.constant dense<0xFF800000> : vector<2x32xf32>
    %17 = vector.multi_reduction <maximumf>, %16, %cst_10 [2] : vector<2x32x32xf32> to vector<2x32xf32>
    %18 = vector.shape_cast %17 : vector<2x32xf32> to vector<2x32x1xf32>
    %19 = vector.broadcast %18 : vector<2x32x1xf32> to vector<2x32x32xf32>
    %20 = arith.subf %16, %19 : vector<2x32x32xf32>
    %21 = math.exp %20 : vector<2x32x32xf32>
    %cst_11 = arith.constant dense<0.000000e+00> : vector<2x32xf32>
    %22 = vector.multi_reduction <add>, %21, %cst_11 [2] : vector<2x32x32xf32> to vector<2x32xf32>
    %23 = vector.shape_cast %22 : vector<2x32xf32> to vector<2x32x1xf32>
    %24 = tpu.reciprocal %23 {approx = true} : vector<2x32x1xf32> -> vector<2x32x1xf32>
    %25 = vector.broadcast %24 : vector<2x32x1xf32> to vector<2x32x32xf32>
    %26 = arith.mulf %21, %25 : vector<2x32x32xf32>
    %cst_12 = arith.constant dense<0.000000e+00> : vector<2x32x16xf32>
    %27 = tpu.matmul %26, %13, %cst_12 {dimension_numbers = #tpu.dot_dimension_numbers<[2], [1], [1], [2], [0, 0, 0, 1, 1, 2], [0], [0]>} : vector<2x32x32xf32>, vector<2x32x16xf32>, vector<2x32x16xf32> -> vector<2x32x16xf32>
    %28 = vector.shape_cast %27 : vector<2x32x16xf32> to vector<64x16xf32>
    %29 = vector.extract_strided_slice %6 {offsets = [0, 0], sizes = [16, 32], strides = [1, 1]} : vector<32x32xf32> to vector<16x32xf32>
    %cst_13 = arith.constant dense<0.000000e+00> : vector<64x32xf32>
    %30 = tpu.matmul %28, %29, %cst_13 {dimension_numbers = #tpu.dot_dimension_numbers<[1], [0], [0], [1], [0, 0, 1, 1], [], []>} : vector<64x16xf32>, vector<16x32xf32>, vector<64x32xf32> -> vector<64x32xf32>
    %31 = arith.addf %7, %30 : vector<64x32xf32>
    %32 = vector.extract_strided_slice %5 {offsets = [0, 16], sizes = [64, 16], strides = [1, 1]} : vector<64x96xf32> to vector<64x16xf32>
    %33 = vector.shape_cast %32 : vector<64x16xf32> to vector<2x32x16xf32>
    %34 = vector.extract_strided_slice %5 {offsets = [0, 48], sizes = [64, 16], strides = [1, 1]} : vector<64x96xf32> to vector<64x16xf32>
    %35 = vector.shape_cast %34 : vector<64x16xf32> to vector<2x32x16xf32>
    %36 = vector.extract_strided_slice %5 {offsets = [0, 80], sizes = [64, 16], strides = [1, 1]} : vector<64x96xf32> to vector<64x16xf32>
    %37 = vector.shape_cast %36 : vector<64x16xf32> to vector<2x32x16xf32>
    %cst_14 = arith.constant dense<0.000000e+00> : vector<2x32x32xf32>
    %38 = tpu.matmul %33, %35, %cst_14 {dimension_numbers = #tpu.dot_dimension_numbers<[2], [2], [1], [1], [0, 0, 0, 1, 1, 1], [0], [0]>} : vector<2x32x16xf32>, vector<2x32x16xf32>, vector<2x32x32xf32> -> vector<2x32x32xf32>
    %cst_15 = arith.constant 2.500000e-01 : f32
    %39 = vector.broadcast %cst_15 : f32 to vector<2x32x32xf32>
    %40 = arith.mulf %38, %39 : vector<2x32x32xf32>
    %cst_16 = arith.constant dense<0xFF800000> : vector<2x32xf32>
    %41 = vector.multi_reduction <maximumf>, %40, %cst_16 [2] : vector<2x32x32xf32> to vector<2x32xf32>
    %42 = vector.shape_cast %41 : vector<2x32xf32> to vector<2x32x1xf32>
    %43 = vector.broadcast %42 : vector<2x32x1xf32> to vector<2x32x32xf32>
    %44 = arith.subf %40, %43 : vector<2x32x32xf32>
    %45 = math.exp %44 : vector<2x32x32xf32>
    %cst_17 = arith.constant dense<0.000000e+00> : vector<2x32xf32>
    %46 = vector.multi_reduction <add>, %45, %cst_17 [2] : vector<2x32x32xf32> to vector<2x32xf32>
    %47 = vector.shape_cast %46 : vector<2x32xf32> to vector<2x32x1xf32>
    %48 = tpu.reciprocal %47 {approx = true} : vector<2x32x1xf32> -> vector<2x32x1xf32>
    %49 = vector.broadcast %48 : vector<2x32x1xf32> to vector<2x32x32xf32>
    %50 = arith.mulf %45, %49 : vector<2x32x32xf32>
    %cst_18 = arith.constant dense<0.000000e+00> : vector<2x32x16xf32>
    %51 = tpu.matmul %50, %37, %cst_18 {dimension_numbers = #tpu.dot_dimension_numbers<[2], [1], [1], [2], [0, 0, 0, 1, 1, 2], [0], [0]>} : vector<2x32x32xf32>, vector<2x32x16xf32>, vector<2x32x16xf32> -> vector<2x32x16xf32>
    %52 = vector.shape_cast %51 : vector<2x32x16xf32> to vector<64x16xf32>
    %53 = vector.extract_strided_slice %6 {offsets = [16, 0], sizes = [16, 32], strides = [1, 1]} : vector<32x32xf32> to vector<16x32xf32>
    %cst_19 = arith.constant dense<0.000000e+00> : vector<64x32xf32>
    %54 = tpu.matmul %52, %53, %cst_19 {dimension_numbers = #tpu.dot_dimension_numbers<[1], [0], [0], [1], [0, 0, 1, 1], [], []>} : vector<64x16xf32>, vector<16x32xf32>, vector<64x32xf32> -> vector<64x32xf32>
    %55 = arith.addf %31, %54 : vector<64x32xf32>
    %c0_20 = arith.constant 0 : index
    %c0_21 = arith.constant 0 : index
    %56 = vector.load %arg4[%c0_20, %c0_21] : memref<1x32xf32, #tpu.memory_space<vmem>>, vector<1x32xf32>
    %57 = vector.broadcast %56 : vector<1x32xf32> to vector<64x32xf32>
    %58 = arith.addf %55, %57 : vector<64x32xf32>
    %59 = arith.addf %0, %58 : vector<64x32xf32>
    %c0_22 = arith.constant 0 : index
    %c0_23 = arith.constant 0 : index
    %60 = vector.load %arg5[%c0_22, %c0_23] : memref<1x32xf32, #tpu.memory_space<vmem>>, vector<1x32xf32>
    %c0_24 = arith.constant 0 : index
    %c0_25 = arith.constant 0 : index
    %61 = vector.load %arg6[%c0_24, %c0_25] : memref<1x32xf32, #tpu.memory_space<vmem>>, vector<1x32xf32>
    %cst_26 = arith.constant dense<0.000000e+00> : vector<64xf32>
    %62 = vector.multi_reduction <add>, %59, %cst_26 [1] : vector<64x32xf32> to vector<64xf32>
    %63 = vector.shape_cast %62 : vector<64xf32> to vector<64x1xf32>
    %cst_27 = arith.constant 3.200000e+01 : f32
    %64 = vector.broadcast %cst_27 : f32 to vector<64x1xf32>
    %65 = arith.divf %63, %64 : vector<64x1xf32>
    %66 = vector.broadcast %65 : vector<64x1xf32> to vector<64x32xf32>
    %67 = arith.subf %59, %66 : vector<64x32xf32>
    %68 = arith.mulf %67, %67 : vector<64x32xf32>
    %cst_28 = arith.constant dense<0.000000e+00> : vector<64xf32>
    %69 = vector.multi_reduction <add>, %68, %cst_28 [1] : vector<64x32xf32> to vector<64xf32>
    %70 = vector.shape_cast %69 : vector<64xf32> to vector<64x1xf32>
    %cst_29 = arith.constant 3.200000e+01 : f32
    %71 = vector.broadcast %cst_29 : f32 to vector<64x1xf32>
    %72 = arith.divf %70, %71 : vector<64x1xf32>
    %cst_30 = arith.constant 9.99999974E-6 : f32
    %73 = vector.broadcast %cst_30 : f32 to vector<64x1xf32>
    %74 = arith.addf %72, %73 : vector<64x1xf32>
    %75 = math.rsqrt %74 : vector<64x1xf32>
    %76 = vector.broadcast %75 : vector<64x1xf32> to vector<64x32xf32>
    %77 = arith.mulf %67, %76 : vector<64x32xf32>
    %78 = vector.broadcast %60 : vector<1x32xf32> to vector<64x32xf32>
    %79 = arith.mulf %77, %78 : vector<64x32xf32>
    %80 = vector.broadcast %61 : vector<1x32xf32> to vector<64x32xf32>
    %81 = arith.addf %79, %80 : vector<64x32xf32>
    %c0_31 = arith.constant 0 : index
    %c0_32 = arith.constant 0 : index
    %82 = vector.load %arg7[%c0_31, %c0_32] : memref<32x64xf32, #tpu.memory_space<vmem>>, vector<32x64xf32>
    %cst_33 = arith.constant dense<0.000000e+00> : vector<64x64xf32>
    %83 = tpu.matmul %81, %82, %cst_33 {dimension_numbers = #tpu.dot_dimension_numbers<[1], [0], [0], [1], [0, 0, 1, 1], [], []>} : vector<64x32xf32>, vector<32x64xf32>, vector<64x64xf32> -> vector<64x64xf32>
    %c0_34 = arith.constant 0 : index
    %c0_35 = arith.constant 0 : index
    %84 = vector.load %arg8[%c0_34, %c0_35] : memref<1x64xf32, #tpu.memory_space<vmem>>, vector<1x64xf32>
    %85 = vector.broadcast %84 : vector<1x64xf32> to vector<64x64xf32>
    %86 = arith.addf %83, %85 : vector<64x64xf32>
    %cst_36 = arith.constant 5.000000e-01 : f32
    %87 = vector.broadcast %cst_36 : f32 to vector<64x64xf32>
    %88 = arith.mulf %87, %86 : vector<64x64xf32>
    %cst_37 = arith.constant 4.471500e-02 : f32
    %89 = vector.broadcast %cst_37 : f32 to vector<64x64xf32>
    %90 = arith.mulf %89, %86 : vector<64x64xf32>
    %91 = arith.mulf %90, %86 : vector<64x64xf32>
    %92 = arith.mulf %91, %86 : vector<64x64xf32>
    %93 = arith.addf %86, %92 : vector<64x64xf32>
    %cst_38 = arith.constant 0.797884583 : f32
    %94 = vector.broadcast %cst_38 : f32 to vector<64x64xf32>
    %95 = arith.mulf %94, %93 : vector<64x64xf32>
    %96 = math.tanh %95 : vector<64x64xf32>
    %cst_39 = arith.constant 1.000000e+00 : f32
    %97 = vector.broadcast %cst_39 : f32 to vector<64x64xf32>
    %98 = arith.addf %97, %96 : vector<64x64xf32>
    %99 = arith.mulf %88, %98 : vector<64x64xf32>
    %c0_40 = arith.constant 0 : index
    %c0_41 = arith.constant 0 : index
    %100 = vector.load %arg9[%c0_40, %c0_41] : memref<64x32xf32, #tpu.memory_space<vmem>>, vector<64x32xf32>
    %cst_42 = arith.constant dense<0.000000e+00> : vector<64x32xf32>
    %101 = tpu.matmul %99, %100, %cst_42 {dimension_numbers = #tpu.dot_dimension_numbers<[1], [0], [0], [1], [0, 0, 1, 1], [], []>} : vector<64x64xf32>, vector<64x32xf32>, vector<64x32xf32> -> vector<64x32xf32>
    %c0_43 = arith.constant 0 : index
    %c0_44 = arith.constant 0 : index
    %102 = vector.load %arg10[%c0_43, %c0_44] : memref<1x32xf32, #tpu.memory_space<vmem>>, vector<1x32xf32>
    %103 = vector.broadcast %102 : vector<1x32xf32> to vector<64x32xf32>
    %104 = arith.addf %101, %103 : vector<64x32xf32>
    %105 = arith.addf %81, %104 : vector<64x32xf32>
    %c0_45 = arith.constant 0 : index
    %c0_46 = arith.constant 0 : index
    %106 = vector.load %arg11[%c0_45, %c0_46] : memref<1x32xf32, #tpu.memory_space<vmem>>, vector<1x32xf32>
    %c0_47 = arith.constant 0 : index
    %c0_48 = arith.constant 0 : index
    %107 = vector.load %arg12[%c0_47, %c0_48] : memref<1x32xf32, #tpu.memory_space<vmem>>, vector<1x32xf32>
    %cst_49 = arith.constant dense<0.000000e+00> : vector<64xf32>
    %108 = vector.multi_reduction <add>, %105, %cst_49 [1] : vector<64x32xf32> to vector<64xf32>
    %109 = vector.shape_cast %108 : vector<64xf32> to vector<64x1xf32>
    %cst_50 = arith.constant 3.200000e+01 : f32
    %110 = vector.broadcast %cst_50 : f32 to vector<64x1xf32>
    %111 = arith.divf %109, %110 : vector<64x1xf32>
    %112 = vector.broadcast %111 : vector<64x1xf32> to vector<64x32xf32>
    %113 = arith.subf %105, %112 : vector<64x32xf32>
    %114 = arith.mulf %113, %113 : vector<64x32xf32>
    %cst_51 = arith.constant dense<0.000000e+00> : vector<64xf32>
    %115 = vector.multi_reduction <add>, %114, %cst_51 [1] : vector<64x32xf32> to vector<64xf32>
    %116 = vector.shape_cast %115 : vector<64xf32> to vector<64x1xf32>
    %cst_52 = arith.constant 3.200000e+01 : f32
    %117 = vector.broadcast %cst_52 : f32 to vector<64x1xf32>
    %118 = arith.divf %116, %117 : vector<64x1xf32>
    %cst_53 = arith.constant 9.99999974E-6 : f32
    %119 = vector.broadcast %cst_53 : f32 to vector<64x1xf32>
    %120 = arith.addf %118, %119 : vector<64x1xf32>
    %121 = math.rsqrt %120 : vector<64x1xf32>
    %122 = vector.broadcast %121 : vector<64x1xf32> to vector<64x32xf32>
    %123 = arith.mulf %113, %122 : vector<64x32xf32>
    %124 = vector.broadcast %106 : vector<1x32xf32> to vector<64x32xf32>
    %125 = arith.mulf %123, %124 : vector<64x32xf32>
    %126 = vector.broadcast %107 : vector<1x32xf32> to vector<64x32xf32>
    %127 = arith.addf %125, %126 : vector<64x32xf32>
    %c0_54 = arith.constant 0 : index
    %c0_55 = arith.constant 0 : index
    %128 = vector.load %arg13[%c0_54, %c0_55] : memref<32x8xf32, #tpu.memory_space<vmem>>, vector<32x8xf32>
    %cst_56 = arith.constant dense<0.000000e+00> : vector<64x8xf32>
    %129 = tpu.matmul %127, %128, %cst_56 {dimension_numbers = #tpu.dot_dimension_numbers<[1], [0], [0], [1], [0, 0, 1, 1], [], []>} : vector<64x32xf32>, vector<32x8xf32>, vector<64x8xf32> -> vector<64x8xf32>
    %c0_57 = arith.constant 0 : index
    %c0_58 = arith.constant 0 : index
    %130 = vector.load %arg14[%c0_57, %c0_58] : memref<1x8xf32, #tpu.memory_space<vmem>>, vector<1x8xf32>
    %131 = vector.broadcast %130 : vector<1x8xf32> to vector<64x8xf32>
    %132 = arith.addf %129, %131 : vector<64x8xf32>
    %cst_59 = arith.constant 0.000000e+00 : f32
    %133 = vector.broadcast %cst_59 : f32 to vector<64x8xf32>
    %134 = arith.maximumf %132, %133 : vector<64x8xf32>
    %c0_60 = arith.constant 0 : index
    %c0_61 = arith.constant 0 : index
    %135 = vector.load %arg15[%c0_60, %c0_61] : memref<8x32xf32, #tpu.memory_space<vmem>>, vector<8x32xf32>
    %cst_62 = arith.constant dense<0.000000e+00> : vector<64x32xf32>
    %136 = tpu.matmul %134, %135, %cst_62 {dimension_numbers = #tpu.dot_dimension_numbers<[1], [0], [0], [1], [0, 0, 1, 1], [], []>} : vector<64x8xf32>, vector<8x32xf32>, vector<64x32xf32> -> vector<64x32xf32>
    %c0_63 = arith.constant 0 : index
    %c0_64 = arith.constant 0 : index
    %137 = vector.load %arg16[%c0_63, %c0_64] : memref<1x32xf32, #tpu.memory_space<vmem>>, vector<1x32xf32>
    %138 = vector.broadcast %137 : vector<1x32xf32> to vector<64x32xf32>
    %139 = arith.addf %136, %138 : vector<64x32xf32>
    %140 = arith.addf %127, %139 : vector<64x32xf32>
    %c0_65 = arith.constant 0 : index
    %c0_66 = arith.constant 0 : index
    %141 = vector.load %arg17[%c0_65, %c0_66] : memref<64x32xf32, #tpu.memory_space<vmem>>, vector<64x32xf32>
    tpu.vector_store %arg17[%c0_65, %c0_66], %140 {strides = array<i32>} : memref<64x32xf32, #tpu.memory_space<vmem>>, vector<64x32xf32>,
    return
  }
}

module attributes {stable_mosaic.version = 11 : i64} {
  func.func @_linear_kernel(%arg0: memref<64x32xf32, #tpu.memory_space<vmem>>, %arg1: memref<32x16xf32, #tpu.memory_space<vmem>>, %arg2: memref<1x16xf32, #tpu.memory_space<vmem>>, %arg3: memref<64x16xf32, #tpu.memory_space<vmem>>) attributes {dimension_semantics = [], scalar_prefetch = 0 : i64, scratch_operands = 0 : i64, tpu.core_type = #tpu.core_type<tc>} {
    %c0 = arith.constant 0 : index
    %c0_0 = arith.constant 0 : index
    %0 = vector.load %arg0[%c0, %c0_0] : memref<64x32xf32, #tpu.memory_space<vmem>>, vector<64x32xf32>
    %c0_1 = arith.constant 0 : index
    %c0_2 = arith.constant 0 : index
    %1 = vector.load %arg1[%c0_1, %c0_2] : memref<32x16xf32, #tpu.memory_space<vmem>>, vector<32x16xf32>
    %cst = arith.constant dense<0.000000e+00> : vector<64x16xf32>
    %2 = tpu.matmul %0, %1, %cst {dimension_numbers = #tpu.dot_dimension_numbers<[1], [0], [0], [1], [0, 0, 1, 1], [], []>} : vector<64x32xf32>, vector<32x16xf32>, vector<64x16xf32> -> vector<64x16xf32>
    %c0_3 = arith.constant 0 : index
    %c0_4 = arith.constant 0 : index
    %3 = vector.load %arg2[%c0_3, %c0_4] : memref<1x16xf32, #tpu.memory_space<vmem>>, vector<1x16xf32>
    %4 = vector.broadcast %3 : vector<1x16xf32> to vector<64x16xf32>
    %5 = arith.addf %2, %4 : vector<64x16xf32>
    %c0_5 = arith.constant 0 : index
    %c0_6 = arith.constant 0 : index
    %6 = vector.load %arg3[%c0_5, %c0_6] : memref<64x16xf32, #tpu.memory_space<vmem>>, vector<64x16xf32>
    tpu.vector_store %arg3[%c0_5, %c0_6], %5 {strides = array<i32>} : memref<64x16xf32, #tpu.memory_space<vmem>>, vector<64x16xf32>,
    return
  }
}

</mosaic_0001>

<llo_original>
// kernel: forward.6
$region0: #{forward.6}
  #allocation0 [shape = 'u32[]', space=smem, size = 0x4, offset = 0x4, fixed_abs, tag = 'smem constant byte address 0x4 - core index']
  #allocation1 [shape = 'u32[144,128]{1,0:T(1,128)}', space=vmem, size = 0x12000, scoped, tag = 'internal scratch']
  %s0 = inlined_call_operand.vmem [shape: f32[64,96], index: 0, kind: input, shape index: {}]
  %s1 = inlined_call_operand.vmem [shape: f32[96,32], index: 1, kind: input, shape index: {}]
  %s2 = inlined_call_operand.vmem [shape: f32[1,32], index: 2, kind: input, shape index: {}]
  %s3 = inlined_call_operand.vmem [shape: f32[1,32], index: 3, kind: input, shape index: {}]
  %s4 = inlined_call_operand.vmem [shape: f32[1,32], index: 4, kind: input, shape index: {}]
  %s5 = inlined_call_operand.vmem [shape: f32[32,32], index: 5, kind: input, shape index: {}]
  %s6 = inlined_call_operand.vmem [shape: f32[1,32], index: 6, kind: input, shape index: {}]
  %s7 = inlined_call_operand.vmem [shape: f32[64,32], index: 7, kind: output, shape index: {}]
  %s8 = sld [smem:[#allocation0]]
  $region38: #{forward.6} parent=0
    _
  %s10 = ssub.s32 1, %s8
  %s11 = scalar_select 0, %s10, %s8
  // Predicated region
  $region2: #{forward.6} parent=0 // pred_check
    _
  $region3: #{forward.6} parent=0 // pred_check_branch
    %13 = sbr.rel (0) target = $region5
  $region4: #{forward.6} parent=0 // pred_region
    _
  $region5: #{forward.6} parent=0 // pred_fallthru
    _
  // Predicated region
  $region6: #{forward.6} parent=0 // pred_check
    _
  $region7: #{forward.6} parent=0 // pred_check_branch
    %15 = sbr.rel (0) target = $region9
  $region8: #{forward.6} parent=0 // pred_region
    _
  $region9: #{forward.6} parent=0 // pred_fallthru
    _
  // Predicated region
  $region10: #{forward.6} parent=0 // pred_check
    _
  $region11: #{forward.6} parent=0 // pred_check_branch
    %17 = sbr.rel (0) target = $region13
  $region12: #{forward.6} parent=0 // pred_region
    _
  $region13: #{forward.6} parent=0 // pred_fallthru
    _
  // Predicated region
  $region14: #{forward.6} parent=0 // pred_check
    _
  $region15: #{forward.6} parent=0 // pred_check_branch
    %19 = sbr.rel (0) target = $region17
  $region16: #{forward.6} parent=0 // pred_region
    _
  $region17: #{forward.6} parent=0 // pred_fallthru
    _
  // Predicated region
  $region18: #{forward.6} parent=0 // pred_check
    _
  $region19: #{forward.6} parent=0 // pred_check_branch
    %21 = sbr.rel (0) target = $region21
  $region20: #{forward.6} parent=0 // pred_region
    _
  $region21: #{forward.6} parent=0 // pred_fallthru
    _
  // Predicated region
  $region22: #{forward.6} parent=0 // pred_check
    _
  $region23: #{forward.6} parent=0 // pred_check_branch
    %23 = sbr.rel (0) target = $region25
  $region24: #{forward.6} parent=0 // pred_region
    _
  $region25: #{forward.6} parent=0 // pred_fallthru
    _
  // Predicated region
  $region26: #{forward.6} parent=0 // pred_check
    _
  $region27: #{forward.6} parent=0 // pred_check_branch
    %25 = sbr.rel (0) target = $region29
  $region28: #{forward.6} parent=0 // pred_region
    _
  $region29: #{forward.6} parent=0 // pred_fallthru
    _
  %v26 = vld [vmem:[%s0] sm:$0xff]
  %v27 = vld [vmem:[%s0 + $0x8] sm:$0xff]
  %v28 = vld [vmem:[%s0 + $0x10] sm:$0xff]
  %v29 = vld [vmem:[%s0 + $0x18] sm:$0xff]
  %v30 = vld [vmem:[%s0 + $0x20] sm:$0xff]
  %v31 = vld [vmem:[%s0 + $0x28] sm:$0xff]
  %v32 = vld [vmem:[%s0 + $0x30] sm:$0xff]
  %v33 = vld [vmem:[%s0 + $0x38] sm:$0xff]
  %v34 = vld [vmem:[%s1] sm:$0xff]
  %v35 = vld [vmem:[%s1 + $0x8] sm:$0xff]
  %v36 = vld [vmem:[%s1 + $0x10] sm:$0xff]
  %v37 = vld [vmem:[%s1 + $0x18] sm:$0xff]
  %v38 = vld [vmem:[%s1 + $0x20] sm:$0xff]
  %v39 = vld [vmem:[%s1 + $0x28] sm:$0xff]
  %v40 = vld [vmem:[%s1 + $0x30] sm:$0xff]
  %v41 = vld [vmem:[%s1 + $0x38] sm:$0xff]
  %v42 = vld [vmem:[%s1 + $0x40] sm:$0xff]
  %v43 = vld [vmem:[%s1 + $0x48] sm:$0xff]
  %v44 = vld [vmem:[%s1 + $0x50] sm:$0xff]
  %v45 = vld [vmem:[%s1 + $0x58] sm:$0xff]
  %v46 = vld [vmem:[%s2] sm:$0x1]
  %v48 = vlaneseq
  %v49 = vshrl.u32 %v48, 7
  %v50 = vsub.s32 0, %v49
  %v51 = vrot.slane %v46, %v50
  %vm53 = vcmask 785408
  %v55 = vsel %vm53, %v26, 0
  %v58 = vsel %vm53, %v27, 0
  %v61 = vsel %vm53, %v28, 0
  %v64 = vsel %vm53, %v29, 0
  %v67 = vsel %vm53, %v30, 0
  %v70 = vsel %vm53, %v31, 0
  %v73 = vsel %vm53, %v32, 0
  %v76 = vsel %vm53, %v33, 0
  %78 = vmatprep.subr.mxu0 0.0
  %79 = vmatpush1.msra.mxu0 %v34
  %80 = vmatprep.subr.mxu0 0.0
  %81 = vmatpush1.msra.mxu0 %v35
  %82 = vmatprep.subr.mxu0 0.0
  %83 = vmatpush1.msra.mxu0 %v36
  %84 = vmatprep.subr.mxu0 0.0
  %85 = vmatpush1.msra.mxu0 %v37
  %86 = vmatprep.subr.mxu0 0.0
  %87 = vmatpush1.msra.mxu0 %v38
  %88 = vmatprep.subr.mxu0 0.0
  %89 = vmatpush1.msra.mxu0 %v39
  %90 = vmatprep.subr.mxu0 0.0
  %91 = vmatpush1.msra.mxu0 %v40
  %92 = vmatprep.subr.mxu0 0.0
  %93 = vmatpush1.msra.mxu0 %v41
  %94 = vmatprep.subr.mxu0 0.0
  %95 = vmatpush1.msra.mxu0 %v42
  %96 = vmatprep.subr.mxu0 0.0
  %97 = vmatpush1.msra.mxu0 %v43
  %98 = vmatprep.subr.mxu0 0.0
  %99 = vmatpush1.msra.mxu0 %v44
  %100 = vmatprep.subr.mxu0 0.0
  %101 = vmatpush1.msra.mxu0 %v45
  %102 = vmatprep.subr.mxu0 0.0
  %103 = vmatpush1.msra.mxu0 0.0
  %104 = vmatprep.subr.mxu0 0.0
  %105 = vmatpush1.msra.mxu0 0.0
  %106 = vmatprep.subr.mxu0 0.0
  %107 = vmatpush1.msra.mxu0 0.0
  %108 = vmatprep.subr.mxu0 0.0
  %109 = vmatpush1.msra.mxu0 0.0
  %110 = vmatprep.subr.mxu0 0.0
  %111 = vmatpush1.msra.mxu0 0.0
  %112 = vmatprep.subr.mxu0 0.0
  %113 = vmatpush1.msra.mxu0 0.0
  %114 = vmatprep.subr.mxu0 0.0
  %115 = vmatpush1.msra.mxu0 0.0
  %116 = vmatprep.subr.mxu0 0.0
  %117 = vmatpush1.msra.mxu0 0.0
  %118 = vmatprep.subr.mxu0 0.0
  %119 = vmatpush1.msra.mxu0 0.0
  %120 = vmatprep.subr.mxu0 0.0
  %121 = vmatpush1.msra.mxu0 0.0
  %122 = vmatprep.subr.mxu0 0.0
  %123 = vmatpush1.msra.mxu0 0.0
  %124 = vmatprep.subr.mxu0 0.0
  %125 = vmatpush1.msra.mxu0 0.0
  %126 = vmatprep.subr.mxu0 0.0
  %127 = vmatpush1.msra.mxu0 0.0
  %128 = vmatprep.subr.mxu0 0.0
  %129 = vmatpush1.msra.mxu0 0.0
  %130 = vmatprep.subr.mxu0 0.0
  %131 = vmatpush1.msra.mxu0 0.0
  %132 = vmatprep.subr.mxu0 0.0
  %133 = vmatpush1.msra.mxu0 0.0
  %134 = vmatprep.subr.mxu0 0.0
  %135 = vmatpush1.msra.mxu0 0.0
  %136 = vmatprep.subr.mxu0 0.0
  %137 = vmatpush1.msra.mxu0 0.0
  %138 = vmatprep.subr.mxu0 0.0
  %139 = vmatpush1.msra.mxu0 0.0
  %140 = vmatprep.subr.mxu0 0.0
  %141 = vmatpush1.msra.mxu0 0.0
  %142 = vmatprep.mubr.f32.mxu0 0.0
  %143 = vmatmul.mubr.f32.gmra.mrb[0].mxu0 %v55
  %v144 = vpop.f32.mrb[0].mxu0
  %v145 = vadd.f32 %v51, %v144
  %v146 = vpop.f32.mrb[0].mxu0
  %147 = vmatprep.mubr.f32.mxu0 0.0
  %148 = vmatmul.mubr.f32.gmra.mrb[0].mxu0 %v58
  %v149 = vpop.f32.mrb[0].mxu0
  %v150 = vadd.f32 %v51, %v149
  %v151 = vpop.f32.mrb[0].mxu0
  %152 = vmatprep.mubr.f32.mxu0 0.0
  %153 = vmatmul.mubr.f32.gmra.mrb[0].mxu0 %v61
  %v154 = vpop.f32.mrb[0].mxu0
  %v155 = vadd.f32 %v51, %v154
  %v156 = vpop.f32.mrb[0].mxu0
  %157 = vmatprep.mubr.f32.mxu0 0.0
  %158 = vmatmul.mubr.f32.gmra.mrb[0].mxu0 %v64
  %v159 = vpop.f32.mrb[0].mxu0
  %v160 = vadd.f32 %v51, %v159
  %v161 = vpop.f32.mrb[0].mxu0
  %162 = vmatprep.mubr.f32.mxu0 0.0
  %163 = vmatmul.mubr.f32.gmra.mrb[0].mxu0 %v67
  %v164 = vpop.f32.mrb[0].mxu0
  %v165 = vadd.f32 %v51, %v164
  %v166 = vpop.f32.mrb[0].mxu0
  %167 = vmatprep.mubr.f32.mxu0 0.0
  %168 = vmatmul.mubr.f32.gmra.mrb[0].mxu0 %v70
  %v169 = vpop.f32.mrb[0].mxu0
  %v170 = vadd.f32 %v51, %v169
  %v171 = vpop.f32.mrb[0].mxu0
  %172 = vmatprep.mubr.f32.mxu0 0.0
  %173 = vmatmul.mubr.f32.gmra.mrb[0].mxu0 %v73
  %v174 = vpop.f32.mrb[0].mxu0
  %v175 = vadd.f32 %v51, %v174
  %v176 = vpop.f32.mrb[0].mxu0
  %177 = vmatprep.mubr.f32.mxu0 0.0
  %178 = vmatmul.mubr.f32.gmra.mrb[0].mxu0 %v76
  %v179 = vpop.f32.mrb[0].mxu0
  %v180 = vadd.f32 %v51, %v179
  %v181 = vpop.f32.mrb[0].mxu0
  %182 = vdwg.mxu0
  %v183 = vmul.f32 %v145, 0.5
  %v184 = vmul.f32 %v150, 0.5
  %v185 = vmul.f32 %v155, 0.5
  %v186 = vmul.f32 %v160, 0.5
  %v187 = vmul.f32 %v165, 0.5
  %v188 = vmul.f32 %v170, 0.5
  %v189 = vmul.f32 %v175, 0.5
  %v190 = vmul.f32 %v180, 0.5
  %v191 = vmul.f32 %v145, 0.044715
  %v192 = vmul.f32 %v150, 0.044715
  %v193 = vmul.f32 %v155, 0.044715
  %v194 = vmul.f32 %v160, 0.044715
  %v195 = vmul.f32 %v165, 0.044715
  %v196 = vmul.f32 %v170, 0.044715
  %v197 = vmul.f32 %v175, 0.044715
  %v198 = vmul.f32 %v180, 0.044715
  %v199 = vmul.f32 %v191, %v145
  %v200 = vmul.f32 %v192, %v150
  %v201 = vmul.f32 %v193, %v155
  %v202 = vmul.f32 %v194, %v160
  %v203 = vmul.f32 %v195, %v165
  %v204 = vmul.f32 %v196, %v170
  %v205 = vmul.f32 %v197, %v175
  %v206 = vmul.f32 %v198, %v180
  %v207 = vmul.f32 %v199, %v145
  %v208 = vmul.f32 %v200, %v150
  %v209 = vmul.f32 %v201, %v155
  %v210 = vmul.f32 %v202, %v160
  %v211 = vmul.f32 %v203, %v165
  %v212 = vmul.f32 %v204, %v170
  %v213 = vmul.f32 %v205, %v175
  %v214 = vmul.f32 %v206, %v180
  %v215 = vadd.f32 %v145, %v207
  %v216 = vadd.f32 %v150, %v208
  %v217 = vadd.f32 %v155, %v209
  %v218 = vadd.f32 %v160, %v210
  %v219 = vadd.f32 %v165, %v211
  %v220 = vadd.f32 %v170, %v212
  %v221 = vadd.f32 %v175, %v213
  %v222 = vadd.f32 %v180, %v214
  %v223 = vmul.f32 %v215, 0.7978846
  %v224 = vmul.f32 %v216, 0.7978846
  %v225 = vmul.f32 %v217, 0.7978846
  %v226 = vmul.f32 %v218, 0.7978846
  %v227 = vmul.f32 %v219, 0.7978846
  %v228 = vmul.f32 %v220, 0.7978846
  %v229 = vmul.f32 %v221, 0.7978846
  %v230 = vmul.f32 %v222, 0.7978846
  %v231 = vtanh.pop %v223
  %v232 = vtanh.pop %v224
  %v233 = vtanh.pop %v225
  %v234 = vtanh.pop %v226
  %v235 = vtanh.pop %v227
  %v236 = vtanh.pop %v228
  %v237 = vtanh.pop %v229
  %v238 = vtanh.pop %v230
  %v239 = vadd.f32 %v231, 1.0
  %v240 = vadd.f32 %v232, 1.0
  %v241 = vadd.f32 %v233, 1.0
  %v242 = vadd.f32 %v234, 1.0
  %v243 = vadd.f32 %v235, 1.0
  %v244 = vadd.f32 %v236, 1.0
  %v245 = vadd.f32 %v237, 1.0
  %v246 = vadd.f32 %v238, 1.0
  %v247 = vmul.f32 %v183, %v239
  %v248 = vmul.f32 %v184, %v240
  %v249 = vmul.f32 %v185, %v241
  %v250 = vmul.f32 %v186, %v242
  %v251 = vmul.f32 %v187, %v243
  %v252 = vmul.f32 %v188, %v244
  %v253 = vmul.f32 %v189, %v245
  %v254 = vmul.f32 %v190, %v246
  %v255 = vld [vmem:[%s3] sm:$0x1]
  %v256 = vld [vmem:[%s4] sm:$0x1]
  %vm257 = vcmask 261120
  %v258 = vsel %vm257, %v247, 0.0
  %259 = vadd.xlane.f32.xlu0 %v258
  %v260 = vpop.xlane.xlu0 %259
  %v261 = vsel %vm257, %v248, 0.0
  %262 = vadd.xlane.f32.xlu0 %v261
  %v263 = vpop.xlane.xlu0 %262
  %v264 = vsel %vm257, %v249, 0.0
  %265 = vadd.xlane.f32.xlu0 %v264
  %v266 = vpop.xlane.xlu0 %265
  %v267 = vsel %vm257, %v250, 0.0
  %268 = vadd.xlane.f32.xlu0 %v267
  %v269 = vpop.xlane.xlu0 %268
  %v270 = vsel %vm257, %v251, 0.0
  %271 = vadd.xlane.f32.xlu0 %v270
  %v272 = vpop.xlane.xlu0 %271
  %v273 = vsel %vm257, %v252, 0.0
  %274 = vadd.xlane.f32.xlu0 %v273
  %v275 = vpop.xlane.xlu0 %274
  %v276 = vsel %vm257, %v253, 0.0
  %277 = vadd.xlane.f32.xlu0 %v276
  %v278 = vpop.xlane.xlu0 %277
  %v279 = vsel %vm257, %v254, 0.0
  %280 = vadd.xlane.f32.xlu0 %v279
  %v281 = vpop.xlane.xlu0 %280
  %v282 = vrcp.pop 32.0
  %v283 = vmul.f32 %v260, %v282
  %v284 = vmul.f32 %v263, %v282
  %v285 = vmul.f32 %v266, %v282
  %v286 = vmul.f32 %v269, %v282
  %v287 = vmul.f32 %v272, %v282
  %v288 = vmul.f32 %v275, %v282
  %v289 = vmul.f32 %v278, %v282
  %v290 = vmul.f32 %v281, %v282
  %v291 = vsub.f32 %v247, %v283
  %v292 = vsub.f32 %v248, %v284
  %v293 = vsub.f32 %v249, %v285
  %v294 = vsub.f32 %v250, %v286
  %v295 = vsub.f32 %v251, %v287
  %v296 = vsub.f32 %v252, %v288
  %v297 = vsub.f32 %v253, %v289
  %v298 = vsub.f32 %v254, %v290
  %v299 = vmul.f32 %v291, %v291
  %v300 = vmul.f32 %v292, %v292
  %v301 = vmul.f32 %v293, %v293
  %v302 = vmul.f32 %v294, %v294
  %v303 = vmul.f32 %v295, %v295
  %v304 = vmul.f32 %v296, %v296
  %v305 = vmul.f32 %v297, %v297
  %v306 = vmul.f32 %v298, %v298
  %v307 = vsel %vm257, %v299, 0.0
  %308 = vadd.xlane.f32.xlu0 %v307
  %v309 = vpop.xlane.xlu0 %308
  %v310 = vsel %vm257, %v300, 0.0
  %311 = vadd.xlane.f32.xlu0 %v310
  %v312 = vpop.xlane.xlu0 %311
  %v313 = vsel %vm257, %v301, 0.0
  %314 = vadd.xlane.f32.xlu0 %v313
  %v315 = vpop.xlane.xlu0 %314
  %v316 = vsel %vm257, %v302, 0.0
  %317 = vadd.xlane.f32.xlu0 %v316
  %v318 = vpop.xlane.xlu0 %317
  %v319 = vsel %vm257, %v303, 0.0
  %320 = vadd.xlane.f32.xlu0 %v319
  %v321 = vpop.xlane.xlu0 %320
  %v322 = vsel %vm257, %v304, 0.0
  %323 = vadd.xlane.f32.xlu0 %v322
  %v324 = vpop.xlane.xlu0 %323
  %v325 = vsel %vm257, %v305, 0.0
  %326 = vadd.xlane.f32.xlu0 %v325
  %v327 = vpop.xlane.xlu0 %326
  %v328 = vsel %vm257, %v306, 0.0
  %329 = vadd.xlane.f32.xlu0 %v328
  %v330 = vpop.xlane.xlu0 %329
  %v331 = vmul.f32 %v309, %v282
  %v332 = vmul.f32 %v312, %v282
  %v333 = vmul.f32 %v315, %v282
  %v334 = vmul.f32 %v318, %v282
  %v335 = vmul.f32 %v321, %v282
  %v336 = vmul.f32 %v324, %v282
  %v337 = vmul.f32 %v327, %v282
  %v338 = vmul.f32 %v330, %v282
  %v339 = vadd.f32 %v331, 1e-05
  %v340 = vadd.f32 %v332, 1e-05
  %v341 = vadd.f32 %v333, 1e-05
  %v342 = vadd.f32 %v334, 1e-05
  %v343 = vadd.f32 %v335, 1e-05
  %v344 = vadd.f32 %v336, 1e-05
  %v345 = vadd.f32 %v337, 1e-05
  %v346 = vadd.f32 %v338, 1e-05
  %v347 = vrsqrt.pop %v339
  %v348 = vrsqrt.pop %v340
  %v349 = vrsqrt.pop %v341
  %v350 = vrsqrt.pop %v342
  %v351 = vrsqrt.pop %v343
  %v352 = vrsqrt.pop %v344
  %v353 = vrsqrt.pop %v345
  %v354 = vrsqrt.pop %v346
  %v355 = vmul.f32 %v291, %v347
  %v356 = vmul.f32 %v292, %v348
  %v357 = vmul.f32 %v293, %v349
  %v358 = vmul.f32 %v294, %v350
  %v359 = vmul.f32 %v295, %v351
  %v360 = vmul.f32 %v296, %v352
  %v361 = vmul.f32 %v297, %v353
  %v362 = vmul.f32 %v298, %v354
  %v364 = vlaneseq
  %v365 = vshrl.u32 %v364, 7
  %v366 = vsub.s32 0, %v365
  %v367 = vrot.slane %v255, %v366
  %v369 = vmul.f32 %v355, %v367
  %v370 = vmul.f32 %v356, %v367
  %v371 = vmul.f32 %v357, %v367
  %v372 = vmul.f32 %v358, %v367
  %v373 = vmul.f32 %v359, %v367
  %v374 = vmul.f32 %v360, %v367
  %v375 = vmul.f32 %v361, %v367
  %v376 = vmul.f32 %v362, %v367
  %v378 = vlaneseq
  %v379 = vshrl.u32 %v378, 7
  %v380 = vsub.s32 0, %v379
  %v381 = vrot.slane %v256, %v380
  %v383 = vadd.f32 %v369, %v381
  %v384 = vadd.f32 %v370, %v381
  %v385 = vadd.f32 %v371, %v381
  %v386 = vadd.f32 %v372, %v381
  %v387 = vadd.f32 %v373, %v381
  %v388 = vadd.f32 %v374, %v381
  %v389 = vadd.f32 %v375, %v381
  %v390 = vadd.f32 %v376, %v381
  %v391 = vld [vmem:[%s5] sm:$0xff]
  %v392 = vld [vmem:[%s5 + $0x8] sm:$0xff]
  %v393 = vld [vmem:[%s5 + $0x10] sm:$0xff]
  %v394 = vld [vmem:[%s5 + $0x18] sm:$0xff]
  %v395 = vld [vmem:[%s6] sm:$0x1]
  %v397 = vlaneseq
  %v398 = vshrl.u32 %v397, 7
  %v399 = vsub.s32 0, %v398
  %v400 = vrot.slane %v395, %v399
  %v403 = vsel %vm257, %v383, 0
  %v406 = vsel %vm257, %v384, 0
  %v409 = vsel %vm257, %v385, 0
  %v412 = vsel %vm257, %v386, 0
  %v415 = vsel %vm257, %v387, 0
  %v418 = vsel %vm257, %v388, 0
  %v421 = vsel %vm257, %v389, 0
  %v424 = vsel %vm257, %v390, 0
  %426 = vmatprep.subr.mxu0 0.0
  %427 = vmatpush1.msra.mxu0 %v391
  %428 = vmatprep.subr.mxu0 0.0
  %429 = vmatpush1.msra.mxu0 %v392
  %430 = vmatprep.subr.mxu0 0.0
  %431 = vmatpush1.msra.mxu0 %v393
  %432 = vmatprep.subr.mxu0 0.0
  %433 = vmatpush1.msra.mxu0 %v394
  %434 = vmatprep.subr.mxu0 0.0
  %435 = vmatpush1.msra.mxu0 0.0
  %436 = vmatprep.subr.mxu0 0.0
  %437 = vmatpush1.msra.mxu0 0.0
  %438 = vmatprep.subr.mxu0 0.0
  %439 = vmatpush1.msra.mxu0 0.0
  %440 = vmatprep.subr.mxu0 0.0
  %441 = vmatpush1.msra.mxu0 0.0
  %442 = vmatprep.subr.mxu0 0.0
  %443 = vmatpush1.msra.mxu0 0.0
  %444 = vmatprep.subr.mxu0 0.0
  %445 = vmatpush1.msra.mxu0 0.0
  %446 = vmatprep.subr.mxu0 0.0
  %447 = vmatpush1.msra.mxu0 0.0
  %448 = vmatprep.subr.mxu0 0.0
  %449 = vmatpush1.msra.mxu0 0.0
  %450 = vmatprep.subr.mxu0 0.0
  %451 = vmatpush1.msra.mxu0 0.0
  %452 = vmatprep.subr.mxu0 0.0
  %453 = vmatpush1.msra.mxu0 0.0
  %454 = vmatprep.subr.mxu0 0.0
  %455 = vmatpush1.msra.mxu0 0.0
  %456 = vmatprep.subr.mxu0 0.0
  %457 = vmatpush1.msra.mxu0 0.0
  %458 = vmatprep.subr.mxu0 0.0
  %459 = vmatpush1.msra.mxu0 0.0
  %460 = vmatprep.subr.mxu0 0.0
  %461 = vmatpush1.msra.mxu0 0.0
  %462 = vmatprep.subr.mxu0 0.0
  %463 = vmatpush1.msra.mxu0 0.0
  %464 = vmatprep.subr.mxu0 0.0
  %465 = vmatpush1.msra.mxu0 0.0
  %466 = vmatprep.subr.mxu0 0.0
  %467 = vmatpush1.msra.mxu0 0.0
  %468 = vmatprep.subr.mxu0 0.0
  %469 = vmatpush1.msra.mxu0 0.0
  %470 = vmatprep.subr.mxu0 0.0
  %471 = vmatpush1.msra.mxu0 0.0
  %472 = vmatprep.subr.mxu0 0.0
  %473 = vmatpush1.msra.mxu0 0.0
  %474 = vmatprep.subr.mxu0 0.0
  %475 = vmatpush1.msra.mxu0 0.0
  %476 = vmatprep.subr.mxu0 0.0
  %477 = vmatpush1.msra.mxu0 0.0
  %478 = vmatprep.subr.mxu0 0.0
  %479 = vmatpush1.msra.mxu0 0.0
  %480 = vmatprep.subr.mxu0 0.0
  %481 = vmatpush1.msra.mxu0 0.0
  %482 = vmatprep.subr.mxu0 0.0
  %483 = vmatpush1.msra.mxu0 0.0
  %484 = vmatprep.subr.mxu0 0.0
  %485 = vmatpush1.msra.mxu0 0.0
  %486 = vmatprep.subr.mxu0 0.0
  %487 = vmatpush1.msra.mxu0 0.0
  %488 = vmatprep.subr.mxu0 0.0
  %489 = vmatpush1.msra.mxu0 0.0
  %490 = vmatprep.mubr.f32.mxu0 0.0
  %491 = vmatmul.mubr.f32.gmra.mrb[0].mxu0 %v403
  %v492 = vpop.f32.mrb[0].mxu0
  %v493 = vadd.f32 %v400, %v492
  %v494 = vpop.f32.mrb[0].mxu0
  %495 = vmatprep.mubr.f32.mxu0 0.0
  %496 = vmatmul.mubr.f32.gmra.mrb[0].mxu0 %v406
  %v497 = vpop.f32.mrb[0].mxu0
  %v498 = vadd.f32 %v400, %v497
  %v499 = vpop.f32.mrb[0].mxu0
  %500 = vmatprep.mubr.f32.mxu0 0.0
  %501 = vmatmul.mubr.f32.gmra.mrb[0].mxu0 %v409
  %v502 = vpop.f32.mrb[0].mxu0
  %v503 = vadd.f32 %v400, %v502
  %v504 = vpop.f32.mrb[0].mxu0
  %505 = vmatprep.mubr.f32.mxu0 0.0
  %506 = vmatmul.mubr.f32.gmra.mrb[0].mxu0 %v412
  %v507 = vpop.f32.mrb[0].mxu0
  %v508 = vadd.f32 %v400, %v507
  %v509 = vpop.f32.mrb[0].mxu0
  %510 = vmatprep.mubr.f32.mxu0 0.0
  %511 = vmatmul.mubr.f32.gmra.mrb[0].mxu0 %v415
  %v512 = vpop.f32.mrb[0].mxu0
  %v513 = vadd.f32 %v400, %v512
  %v514 = vpop.f32.mrb[0].mxu0
  %515 = vmatprep.mubr.f32.mxu0 0.0
  %516 = vmatmul.mubr.f32.gmra.mrb[0].mxu0 %v418
  %v517 = vpop.f32.mrb[0].mxu0
  %v518 = vadd.f32 %v400, %v517
  %v519 = vpop.f32.mrb[0].mxu0
  %520 = vmatprep.mubr.f32.mxu0 0.0
  %521 = vmatmul.mubr.f32.gmra.mrb[0].mxu0 %v421
  %v522 = vpop.f32.mrb[0].mxu0
  %v523 = vadd.f32 %v400, %v522
  %v524 = vpop.f32.mrb[0].mxu0
  %525 = vmatprep.mubr.f32.mxu0 0.0
  %526 = vmatmul.mubr.f32.gmra.mrb[0].mxu0 %v424
  %v527 = vpop.f32.mrb[0].mxu0
  %v528 = vadd.f32 %v400, %v527
  %v529 = vpop.f32.mrb[0].mxu0
  %530 = vdwg.mxu0
  %531 = vst.msk [vmem:[%s7] sm:$0xff] %vm257, %v493
  %532 = vst.msk [vmem:[%s7 + $0x8] sm:$0xff] %vm257, %v498
  %533 = vst.msk [vmem:[%s7 + $0x10] sm:$0xff] %vm257, %v503
  %534 = vst.msk [vmem:[%s7 + $0x18] sm:$0xff] %vm257, %v508
  %535 = vst.msk [vmem:[%s7 + $0x20] sm:$0xff] %vm257, %v513
  %536 = vst.msk [vmem:[%s7 + $0x28] sm:$0xff] %vm257, %v518
  %537 = vst.msk [vmem:[%s7 + $0x30] sm:$0xff] %vm257, %v523
  %538 = vst.msk [vmem:[%s7 + $0x38] sm:$0xff] %vm257, %v528
  // Predicated region
  $region30: #{forward.6} parent=0 // pred_check
    _
  $region31: #{forward.6} parent=0 // pred_check_branch
    %540 = sbr.rel (0) target = $region33
  $region32: #{forward.6} parent=0 // pred_region
    _
  $region33: #{forward.6} parent=0 // pred_fallthru
    _
  // Predicated region
  $region34: #{forward.6} parent=0 // pred_check
    _
  $region35: #{forward.6} parent=0 // pred_check_branch
    %542 = sbr.rel (0) target = $region37
  $region36: #{forward.6} parent=0 // pred_region
    _
  $region37: #{forward.6} parent=0 // pred_fallthru
    _

// kernel: forward.5
$region0: #{forward.5}
  #allocation0 [shape = 'u32[]', space=smem, size = 0x4, offset = 0x4, fixed_abs, tag = 'smem constant byte address 0x4 - core index']
  #allocation1 [shape = 'u32[144,128]{1,0:T(1,128)}', space=vmem, size = 0x12000, scoped, tag = 'internal scratch']
  %s0 = inlined_call_operand.vmem [shape: f32[130,10], index: 0, kind: input, shape index: {}]
  %s1 = inlined_call_operand.vmem [shape: f32[10,32], index: 1, kind: input, shape index: {}]
  %s2 = inlined_call_operand.vmem [shape: f32[1,32], index: 2, kind: input, shape index: {}]
  %s3 = inlined_call_operand.vmem [shape: f32[130,32], index: 3, kind: output, shape index: {}]
  %s4 = sld [smem:[#allocation0]]
  $region22: #{forward.5} parent=0
    _
  %s6 = ssub.s32 1, %s4
  %s7 = scalar_select 0, %s6, %s4
  // Predicated region
  $region2: #{forward.5} parent=0 // pred_check
    _
  $region3: #{forward.5} parent=0 // pred_check_branch
    %9 = sbr.rel (0) target = $region5
  $region4: #{forward.5} parent=0 // pred_region
    _
  $region5: #{forward.5} parent=0 // pred_fallthru
    _
  // Predicated region
  $region6: #{forward.5} parent=0 // pred_check
    _
  $region7: #{forward.5} parent=0 // pred_check_branch
    %11 = sbr.rel (0) target = $region9
  $region8: #{forward.5} parent=0 // pred_region
    _
  $region9: #{forward.5} parent=0 // pred_fallthru
    _
  // Predicated region
  $region10: #{forward.5} parent=0 // pred_check
    _
  $region11: #{forward.5} parent=0 // pred_check_branch
    %13 = sbr.rel (0) target = $region13
  $region12: #{forward.5} parent=0 // pred_region
    _
  $region13: #{forward.5} parent=0 // pred_fallthru
    _
  %v14 = vld [vmem:[%s0] sm:$0xff]
  %v15 = vld [vmem:[%s0 + $0x8] sm:$0xff]
  %v16 = vld [vmem:[%s0 + $0x10] sm:$0xff]
  %v17 = vld [vmem:[%s0 + $0x18] sm:$0xff]
  %v18 = vld [vmem:[%s0 + $0x20] sm:$0xff]
  %v19 = vld [vmem:[%s0 + $0x28] sm:$0xff]
  %v20 = vld [vmem:[%s0 + $0x30] sm:$0xff]
  %v21 = vld [vmem:[%s0 + $0x38] sm:$0xff]
  %v22 = vld [vmem:[%s0 + $0x40] sm:$0xff]
  %v23 = vld [vmem:[%s0 + $0x48] sm:$0xff]
  %v24 = vld [vmem:[%s0 + $0x50] sm:$0xff]
  %v25 = vld [vmem:[%s0 + $0x58] sm:$0xff]
  %v26 = vld [vmem:[%s0 + $0x60] sm:$0xff]
  %v27 = vld [vmem:[%s0 + $0x68] sm:$0xff]
  %v28 = vld [vmem:[%s0 + $0x70] sm:$0xff]
  %v29 = vld [vmem:[%s0 + $0x78] sm:$0xff]
  %v30 = vld [vmem:[%s0 + $0x80] sm:$0x3]
  %v31 = vld [vmem:[%s1] sm:$0xff]
  %v32 = vld [vmem:[%s1 + $0x8] sm:$0x3]
  %v33 = vld [vmem:[%s2] sm:$0x1]
  %v35 = vlaneseq
  %v36 = vshrl.u32 %v35, 7
  %v37 = vsub.s32 0, %v36
  %v38 = vrot.slane %v33, %v37
  %vm40 = vcmask 80896
  %v42 = vsel %vm40, %v14, 0
  %v45 = vsel %vm40, %v15, 0
  %v48 = vsel %vm40, %v16, 0
  %v51 = vsel %vm40, %v17, 0
  %v54 = vsel %vm40, %v18, 0
  %v57 = vsel %vm40, %v19, 0
  %v60 = vsel %vm40, %v20, 0
  %v63 = vsel %vm40, %v21, 0
  %v66 = vsel %vm40, %v22, 0
  %v69 = vsel %vm40, %v23, 0
  %v72 = vsel %vm40, %v24, 0
  %v75 = vsel %vm40, %v25, 0
  %v78 = vsel %vm40, %v26, 0
  %v81 = vsel %vm40, %v27, 0
  %v84 = vsel %vm40, %v28, 0
  %v87 = vsel %vm40, %v29, 0
  %v90 = vsel %vm40, %v30, 0
  %vm92 = vcmask 1041408
  %v94 = vsel %vm92, %v32, 0
  %96 = vmatprep.subr.mxu0 0.0
  %97 = vmatpush1.msra.mxu0 %v31
  %98 = vmatprep.subr.mxu0 0.0
  %99 = vmatpush1.msra.mxu0 %v94
  %100 = vmatprep.subr.mxu0 0.0
  %101 = vmatpush1.msra.mxu0 0.0
  %102 = vmatprep.subr.mxu0 0.0
  %103 = vmatpush1.msra.mxu0 0.0
  %104 = vmatprep.subr.mxu0 0.0
  %105 = vmatpush1.msra.mxu0 0.0
  %106 = vmatprep.subr.mxu0 0.0
  %107 = vmatpush1.msra.mxu0 0.0
  %108 = vmatprep.subr.mxu0 0.0
  %109 = vmatpush1.msra.mxu0 0.0
  %110 = vmatprep.subr.mxu0 0.0
  %111 = vmatpush1.msra.mxu0 0.0
  %112 = vmatprep.subr.mxu0 0.0
  %113 = vmatpush1.msra.mxu0 0.0
  %114 = vmatprep.subr.mxu0 0.0
  %115 = vmatpush1.msra.mxu0 0.0
  %116 = vmatprep.subr.mxu0 0.0
  %117 = vmatpush1.msra.mxu0 0.0
  %118 = vmatprep.subr.mxu0 0.0
  %119 = vmatpush1.msra.mxu0 0.0
  %120 = vmatprep.subr.mxu0 0.0
  %121 = vmatpush1.msra.mxu0 0.0
  %122 = vmatprep.subr.mxu0 0.0
  %123 = vmatpush1.msra.mxu0 0.0
  %124 = vmatprep.subr.mxu0 0.0
  %125 = vmatpush1.msra.mxu0 0.0
  %126 = vmatprep.subr.mxu0 0.0
  %127 = vmatpush1.msra.mxu0 0.0
  %128 = vmatprep.subr.mxu0 0.0
  %129 = vmatpush1.msra.mxu0 0.0
  %130 = vmatprep.subr.mxu0 0.0
  %131 = vmatpush1.msra.mxu0 0.0
  %132 = vmatprep.subr.mxu0 0.0
  %133 = vmatpush1.msra.mxu0 0.0
  %134 = vmatprep.subr.mxu0 0.0
  %135 = vmatpush1.msra.mxu0 0.0
  %136 = vmatprep.subr.mxu0 0.0
  %137 = vmatpush1.msra.mxu0 0.0
  %138 = vmatprep.subr.mxu0 0.0
  %139 = vmatpush1.msra.mxu0 0.0
  %140 = vmatprep.subr.mxu0 0.0
  %141 = vmatpush1.msra.mxu0 0.0
  %142 = vmatprep.subr.mxu0 0.0
  %143 = vmatpush1.msra.mxu0 0.0
  %144 = vmatprep.subr.mxu0 0.0
  %145 = vmatpush1.msra.mxu0 0.0
  %146 = vmatprep.subr.mxu0 0.0
  %147 = vmatpush1.msra.mxu0 0.0
  %148 = vmatprep.subr.mxu0 0.0
  %149 = vmatpush1.msra.mxu0 0.0
  %150 = vmatprep.subr.mxu0 0.0
  %151 = vmatpush1.msra.mxu0 0.0
  %152 = vmatprep.subr.mxu0 0.0
  %153 = vmatpush1.msra.mxu0 0.0
  %154 = vmatprep.subr.mxu0 0.0
  %155 = vmatpush1.msra.mxu0 0.0
  %156 = vmatprep.subr.mxu0 0.0
  %157 = vmatpush1.msra.mxu0 0.0
  %158 = vmatprep.subr.mxu0 0.0
  %159 = vmatpush1.msra.mxu0 0.0
  %160 = vmatprep.mubr.f32.mxu0 0.0
  %161 = vmatmul.mubr.f32.gmra.mrb[0].mxu0 %v42
  %v162 = vpop.f32.mrb[0].mxu0
  %v163 = vadd.f32 %v38, %v162
  %v164 = vpop.f32.mrb[0].mxu0
  %165 = vmatprep.mubr.f32.mxu0 0.0
  %166 = vmatmul.mubr.f32.gmra.mrb[0].mxu0 %v45
  %v167 = vpop.f32.mrb[0].mxu0
  %v168 = vadd.f32 %v38, %v167
  %v169 = vpop.f32.mrb[0].mxu0
  %170 = vmatprep.mubr.f32.mxu0 0.0
  %171 = vmatmul.mubr.f32.gmra.mrb[0].mxu0 %v48
  %v172 = vpop.f32.mrb[0].mxu0
  %v173 = vadd.f32 %v38, %v172
  %v174 = vpop.f32.mrb[0].mxu0
  %175 = vmatprep.mubr.f32.mxu0 0.0
  %176 = vmatmul.mubr.f32.gmra.mrb[0].mxu0 %v51
  %v177 = vpop.f32.mrb[0].mxu0
  %v178 = vadd.f32 %v38, %v177
  %v179 = vpop.f32.mrb[0].mxu0
  %180 = vmatprep.mubr.f32.mxu0 0.0
  %181 = vmatmul.mubr.f32.gmra.mrb[0].mxu0 %v54
  %v182 = vpop.f32.mrb[0].mxu0
  %v183 = vadd.f32 %v38, %v182
  %v184 = vpop.f32.mrb[0].mxu0
  %185 = vmatprep.mubr.f32.mxu0 0.0
  %186 = vmatmul.mubr.f32.gmra.mrb[0].mxu0 %v57
  %v187 = vpop.f32.mrb[0].mxu0
  %v188 = vadd.f32 %v38, %v187
  %v189 = vpop.f32.mrb[0].mxu0
  %190 = vmatprep.mubr.f32.mxu0 0.0
  %191 = vmatmul.mubr.f32.gmra.mrb[0].mxu0 %v60
  %v192 = vpop.f32.mrb[0].mxu0
  %v193 = vadd.f32 %v38, %v192
  %v194 = vpop.f32.mrb[0].mxu0
  %195 = vmatprep.mubr.f32.mxu0 0.0
  %196 = vmatmul.mubr.f32.gmra.mrb[0].mxu0 %v63
  %v197 = vpop.f32.mrb[0].mxu0
  %v198 = vadd.f32 %v38, %v197
  %v199 = vpop.f32.mrb[0].mxu0
  %200 = vmatprep.mubr.f32.mxu0 0.0
  %201 = vmatmul.mubr.f32.gmra.mrb[0].mxu0 %v66
  %v202 = vpop.f32.mrb[0].mxu0
  %v203 = vadd.f32 %v38, %v202
  %v204 = vpop.f32.mrb[0].mxu0
  %205 = vmatprep.mubr.f32.mxu0 0.0
  %206 = vmatmul.mubr.f32.gmra.mrb[0].mxu0 %v69
  %v207 = vpop.f32.mrb[0].mxu0
  %v208 = vadd.f32 %v38, %v207
  %v209 = vpop.f32.mrb[0].mxu0
  %210 = vmatprep.mubr.f32.mxu0 0.0
  %211 = vmatmul.mubr.f32.gmra.mrb[0].mxu0 %v72
  %v212 = vpop.f32.mrb[0].mxu0
  %v213 = vadd.f32 %v38, %v212
  %v214 = vpop.f32.mrb[0].mxu0
  %215 = vmatprep.mubr.f32.mxu0 0.0
  %216 = vmatmul.mubr.f32.gmra.mrb[0].mxu0 %v75
  %v217 = vpop.f32.mrb[0].mxu0
  %v218 = vadd.f32 %v38, %v217
  %v219 = vpop.f32.mrb[0].mxu0
  %220 = vmatprep.mubr.f32.mxu0 0.0
  %221 = vmatmul.mubr.f32.gmra.mrb[0].mxu0 %v78
  %v222 = vpop.f32.mrb[0].mxu0
  %v223 = vadd.f32 %v38, %v222
  %v224 = vpop.f32.mrb[0].mxu0
  %225 = vmatprep.mubr.f32.mxu0 0.0
  %226 = vmatmul.mubr.f32.gmra.mrb[0].mxu0 %v81
  %v227 = vpop.f32.mrb[0].mxu0
  %v228 = vadd.f32 %v38, %v227
  %v229 = vpop.f32.mrb[0].mxu0
  %230 = vmatprep.mubr.f32.mxu0 0.0
  %231 = vmatmul.mubr.f32.gmra.mrb[0].mxu0 %v84
  %v232 = vpop.f32.mrb[0].mxu0
  %v233 = vadd.f32 %v38, %v232
  %v234 = vpop.f32.mrb[0].mxu0
  %235 = vmatprep.mubr.f32.mxu0 0.0
  %236 = vmatmul.mubr.f32.gmra.mrb[0].mxu0 %v87
  %v237 = vpop.f32.mrb[0].mxu0
  %v238 = vadd.f32 %v38, %v237
  %v239 = vpop.f32.mrb[0].mxu0
  %240 = vmatprep.mubr.f32.mxu0 0.0
  %241 = vmatmul.mubr.f32.gmra.mrb[0].mxu0 %v90
  %v242 = vpop.f32.mrb[0].mxu0
  %v243 = vadd.f32 %v38, %v242
  %v244 = vpop.f32.mrb[0].mxu0
  %245 = vdwg.mxu0
  %v246 = vmul.f32 %v163, 0.5
  %v247 = vmul.f32 %v168, 0.5
  %v248 = vmul.f32 %v173, 0.5
  %v249 = vmul.f32 %v178, 0.5
  %v250 = vmul.f32 %v183, 0.5
  %v251 = vmul.f32 %v188, 0.5
  %v252 = vmul.f32 %v193, 0.5
  %v253 = vmul.f32 %v198, 0.5
  %v254 = vmul.f32 %v203, 0.5
  %v255 = vmul.f32 %v208, 0.5
  %v256 = vmul.f32 %v213, 0.5
  %v257 = vmul.f32 %v218, 0.5
  %v258 = vmul.f32 %v223, 0.5
  %v259 = vmul.f32 %v228, 0.5
  %v260 = vmul.f32 %v233, 0.5
  %v261 = vmul.f32 %v238, 0.5
  %v262 = vmul.f32 %v243, 0.5
  %v263 = vmul.f32 %v163, 0.044715
  %v264 = vmul.f32 %v168, 0.044715
  %v265 = vmul.f32 %v173, 0.044715
  %v266 = vmul.f32 %v178, 0.044715
  %v267 = vmul.f32 %v183, 0.044715
  %v268 = vmul.f32 %v188, 0.044715
  %v269 = vmul.f32 %v193, 0.044715
  %v270 = vmul.f32 %v198, 0.044715
  %v271 = vmul.f32 %v203, 0.044715
  %v272 = vmul.f32 %v208, 0.044715
  %v273 = vmul.f32 %v213, 0.044715
  %v274 = vmul.f32 %v218, 0.044715
  %v275 = vmul.f32 %v223, 0.044715
  %v276 = vmul.f32 %v228, 0.044715
  %v277 = vmul.f32 %v233, 0.044715
  %v278 = vmul.f32 %v238, 0.044715
  %v279 = vmul.f32 %v243, 0.044715
  %v280 = vmul.f32 %v263, %v163
  %v281 = vmul.f32 %v264, %v168
  %v282 = vmul.f32 %v265, %v173
  %v283 = vmul.f32 %v266, %v178
  %v284 = vmul.f32 %v267, %v183
  %v285 = vmul.f32 %v268, %v188
  %v286 = vmul.f32 %v269, %v193
  %v287 = vmul.f32 %v270, %v198
  %v288 = vmul.f32 %v271, %v203
  %v289 = vmul.f32 %v272, %v208
  %v290 = vmul.f32 %v273, %v213
  %v291 = vmul.f32 %v274, %v218
  %v292 = vmul.f32 %v275, %v223
  %v293 = vmul.f32 %v276, %v228
  %v294 = vmul.f32 %v277, %v233
  %v295 = vmul.f32 %v278, %v238
  %v296 = vmul.f32 %v279, %v243
  %v297 = vmul.f32 %v280, %v163
  %v298 = vmul.f32 %v281, %v168
  %v299 = vmul.f32 %v282, %v173
  %v300 = vmul.f32 %v283, %v178
  %v301 = vmul.f32 %v284, %v183
  %v302 = vmul.f32 %v285, %v188
  %v303 = vmul.f32 %v286, %v193
  %v304 = vmul.f32 %v287, %v198
  %v305 = vmul.f32 %v288, %v203
  %v306 = vmul.f32 %v289, %v208
  %v307 = vmul.f32 %v290, %v213
  %v308 = vmul.f32 %v291, %v218
  %v309 = vmul.f32 %v292, %v223
  %v310 = vmul.f32 %v293, %v228
  %v311 = vmul.f32 %v294, %v233
  %v312 = vmul.f32 %v295, %v238
  %v313 = vmul.f32 %v296, %v243
  %v314 = vadd.f32 %v163, %v297
  %v315 = vadd.f32 %v168, %v298
  %v316 = vadd.f32 %v173, %v299
  %v317 = vadd.f32 %v178, %v300
  %v318 = vadd.f32 %v183, %v301
  %v319 = vadd.f32 %v188, %v302
  %v320 = vadd.f32 %v193, %v303
  %v321 = vadd.f32 %v198, %v304
  %v322 = vadd.f32 %v203, %v305
  %v323 = vadd.f32 %v208, %v306
  %v324 = vadd.f32 %v213, %v307
  %v325 = vadd.f32 %v218, %v308
  %v326 = vadd.f32 %v223, %v309
  %v327 = vadd.f32 %v228, %v310
  %v328 = vadd.f32 %v233, %v311
  %v329 = vadd.f32 %v238, %v312
  %v330 = vadd.f32 %v243, %v313
  %v331 = vmul.f32 %v314, 0.7978846
  %v332 = vmul.f32 %v315, 0.7978846
  %v333 = vmul.f32 %v316, 0.7978846
  %v334 = vmul.f32 %v317, 0.7978846
  %v335 = vmul.f32 %v318, 0.7978846
  %v336 = vmul.f32 %v319, 0.7978846
  %v337 = vmul.f32 %v320, 0.7978846
  %v338 = vmul.f32 %v321, 0.7978846
  %v339 = vmul.f32 %v322, 0.7978846
  %v340 = vmul.f32 %v323, 0.7978846
  %v341 = vmul.f32 %v324, 0.7978846
  %v342 = vmul.f32 %v325, 0.7978846
  %v343 = vmul.f32 %v326, 0.7978846
  %v344 = vmul.f32 %v327, 0.7978846
  %v345 = vmul.f32 %v328, 0.7978846
  %v346 = vmul.f32 %v329, 0.7978846
  %v347 = vmul.f32 %v330, 0.7978846
  %v348 = vtanh.pop %v331
  %v349 = vtanh.pop %v332
  %v350 = vtanh.pop %v333
  %v351 = vtanh.pop %v334
  %v352 = vtanh.pop %v335
  %v353 = vtanh.pop %v336
  %v354 = vtanh.pop %v337
  %v355 = vtanh.pop %v338
  %v356 = vtanh.pop %v339
  %v357 = vtanh.pop %v340
  %v358 = vtanh.pop %v341
  %v359 = vtanh.pop %v342
  %v360 = vtanh.pop %v343
  %v361 = vtanh.pop %v344
  %v362 = vtanh.pop %v345
  %v363 = vtanh.pop %v346
  %v364 = vtanh.pop %v347
  %v365 = vadd.f32 %v348, 1.0
  %v366 = vadd.f32 %v349, 1.0
  %v367 = vadd.f32 %v350, 1.0
  %v368 = vadd.f32 %v351, 1.0
  %v369 = vadd.f32 %v352, 1.0
  %v370 = vadd.f32 %v353, 1.0
  %v371 = vadd.f32 %v354, 1.0
  %v372 = vadd.f32 %v355, 1.0
  %v373 = vadd.f32 %v356, 1.0
  %v374 = vadd.f32 %v357, 1.0
  %v375 = vadd.f32 %v358, 1.0
  %v376 = vadd.f32 %v359, 1.0
  %v377 = vadd.f32 %v360, 1.0
  %v378 = vadd.f32 %v361, 1.0
  %v379 = vadd.f32 %v362, 1.0
  %v380 = vadd.f32 %v363, 1.0
  %v381 = vadd.f32 %v364, 1.0
  %v382 = vmul.f32 %v246, %v365
  %v383 = vmul.f32 %v247, %v366
  %v384 = vmul.f32 %v248, %v367
  %v385 = vmul.f32 %v249, %v368
  %v386 = vmul.f32 %v250, %v369
  %v387 = vmul.f32 %v251, %v370
  %v388 = vmul.f32 %v252, %v371
  %v389 = vmul.f32 %v253, %v372
  %v390 = vmul.f32 %v254, %v373
  %v391 = vmul.f32 %v255, %v374
  %v392 = vmul.f32 %v256, %v375
  %v393 = vmul.f32 %v257, %v376
  %v394 = vmul.f32 %v258, %v377
  %v395 = vmul.f32 %v259, %v378
  %v396 = vmul.f32 %v260, %v379
  %v397 = vmul.f32 %v261, %v380
  %v398 = vmul.f32 %v262, %v381
  %vm399 = vcmask 261120
  %400 = vst.msk [vmem:[%s3] sm:$0xff] %vm399, %v382
  %401 = vst.msk [vmem:[%s3 + $0x8] sm:$0xff] %vm399, %v383
  %402 = vst.msk [vmem:[%s3 + $0x10] sm:$0xff] %vm399, %v384
  %403 = vst.msk [vmem:[%s3 + $0x18] sm:$0xff] %vm399, %v385
  %404 = vst.msk [vmem:[%s3 + $0x20] sm:$0xff] %vm399, %v386
  %405 = vst.msk [vmem:[%s3 + $0x28] sm:$0xff] %vm399, %v387
  %406 = vst.msk [vmem:[%s3 + $0x30] sm:$0xff] %vm399, %v388
  %407 = vst.msk [vmem:[%s3 + $0x38] sm:$0xff] %vm399, %v389
  %408 = vst.msk [vmem:[%s3 + $0x40] sm:$0xff] %vm399, %v390
  %409 = vst.msk [vmem:[%s3 + $0x48] sm:$0xff] %vm399, %v391
  %410 = vst.msk [vmem:[%s3 + $0x50] sm:$0xff] %vm399, %v392
  %411 = vst.msk [vmem:[%s3 + $0x58] sm:$0xff] %vm399, %v393
  %412 = vst.msk [vmem:[%s3 + $0x60] sm:$0xff] %vm399, %v394
  %413 = vst.msk [vmem:[%s3 + $0x68] sm:$0xff] %vm399, %v395
  %414 = vst.msk [vmem:[%s3 + $0x70] sm:$0xff] %vm399, %v396
  %415 = vst.msk [vmem:[%s3 + $0x78] sm:$0xff] %vm399, %v397
  %vm416 = vcmask 254976
  %417 = vst.msk [vmem:[%s3 + $0x80] sm:$0x3] %vm416, %v398
  // Predicated region
  $region14: #{forward.5} parent=0 // pred_check
    _
  $region15: #{forward.5} parent=0 // pred_check_branch
    %419 = sbr.rel (0) target = $region17
  $region16: #{forward.5} parent=0 // pred_region
    _
  $region17: #{forward.5} parent=0 // pred_fallthru
    _
  // Predicated region
  $region18: #{forward.5} parent=0 // pred_check
    _
  $region19: #{forward.5} parent=0 // pred_check_branch
    %421 = sbr.rel (0) target = $region21
  $region20: #{forward.5} parent=0 // pred_region
    _
  $region21: #{forward.5} parent=0 // pred_fallthru
    _

// kernel: forward.7
$region0: #{forward.7}
  #allocation0 [shape = 'u32[]', space=smem, size = 0x4, offset = 0x4, fixed_abs, tag = 'smem constant byte address 0x4 - core index']
  #allocation1 [shape = 'u32[144,128]{1,0:T(1,128)}', space=vmem, size = 0x12000, scoped, tag = 'internal scratch']
  %s0 = inlined_call_operand.vmem [shape: f32[64,32], index: 0, kind: input, shape index: {}]
  %s1 = inlined_call_operand.vmem [shape: f32[32,96], index: 1, kind: input, shape index: {}]
  %s2 = inlined_call_operand.vmem [shape: f32[1,96], index: 2, kind: input, shape index: {}]
  %s3 = inlined_call_operand.vmem [shape: f32[32,32], index: 3, kind: input, shape index: {}]
  %s4 = inlined_call_operand.vmem [shape: f32[1,32], index: 4, kind: input, shape index: {}]
  %s5 = inlined_call_operand.vmem [shape: f32[1,32], index: 5, kind: input, shape index: {}]
  %s6 = inlined_call_operand.vmem [shape: f32[1,32], index: 6, kind: input, shape index: {}]
  %s7 = inlined_call_operand.vmem [shape: f32[32,64], index: 7, kind: input, shape index: {}]
  %s8 = inlined_call_operand.vmem [shape: f32[1,64], index: 8, kind: input, shape index: {}]
  %s9 = inlined_call_operand.vmem [shape: f32[64,32], index: 9, kind: input, shape index: {}]
  %s10 = inlined_call_operand.vmem [shape: f32[1,32], index: 10, kind: input, shape index: {}]
  %s11 = inlined_call_operand.vmem [shape: f32[1,32], index: 11, kind: input, shape index: {}]
  %s12 = inlined_call_operand.vmem [shape: f32[1,32], index: 12, kind: input, shape index: {}]
  %s13 = inlined_call_operand.vmem [shape: f32[32,8], index: 13, kind: input, shape index: {}]
  %s14 = inlined_call_operand.vmem [shape: f32[1,8], index: 14, kind: input, shape index: {}]
  %s15 = inlined_call_operand.vmem [shape: f32[8,32], index: 15, kind: input, shape index: {}]
  %s16 = inlined_call_operand.vmem [shape: f32[1,32], index: 16, kind: input, shape index: {}]
  %s17 = inlined_call_operand.vmem [shape: f32[64,32], index: 17, kind: output, shape index: {}]
  %s18 = sld [smem:[#allocation0]]
  $region78: #{forward.7} parent=0
    _
  %s20 = ssub.s32 1, %s18
  %s21 = scalar_select 0, %s20, %s18
  // Predicated region
  $region2: #{forward.7} parent=0 // pred_check
    _
  $region3: #{forward.7} parent=0 // pred_check_branch
    %23 = sbr.rel (0) target = $region5
  $region4: #{forward.7} parent=0 // pred_region
    _
  $region5: #{forward.7} parent=0 // pred_fallthru
    _
  // Predicated region
  $region6: #{forward.7} parent=0 // pred_check
    _
  $region7: #{forward.7} parent=0 // pred_check_branch
    %25 = sbr.rel (0) target = $region9
  $region8: #{forward.7} parent=0 // pred_region
    _
  $region9: #{forward.7} parent=0 // pred_fallthru
    _
  // Predicated region
  $region10: #{forward.7} parent=0 // pred_check
    _
  $region11: #{forward.7} parent=0 // pred_check_branch
    %27 = sbr.rel (0) target = $region13
  $region12: #{forward.7} parent=0 // pred_region
    _
  $region13: #{forward.7} parent=0 // pred_fallthru
    _
  // Predicated region
  $region14: #{forward.7} parent=0 // pred_check
    _
  $region15: #{forward.7} parent=0 // pred_check_branch
    %29 = sbr.rel (0) target = $region17
  $region16: #{forward.7} parent=0 // pred_region
    _
  $region17: #{forward.7} parent=0 // pred_fallthru
    _
  // Predicated region
  $region18: #{forward.7} parent=0 // pred_check
    _
  $region19: #{forward.7} parent=0 // pred_check_branch
    %31 = sbr.rel (0) target = $region21
  $region20: #{forward.7} parent=0 // pred_region
    _
  $region21: #{forward.7} parent=0 // pred_fallthru
    _
  // Predicated region
  $region22: #{forward.7} parent=0 // pred_check
    _
  $region23: #{forward.7} parent=0 // pred_check_branch
    %33 = sbr.rel (0) target = $region25
  $region24: #{forward.7} parent=0 // pred_region
    _
  $region25: #{forward.7} parent=0 // pred_fallthru
    _
  // Predicated region
  $region26: #{forward.7} parent=0 // pred_check
    _
  $region27: #{forward.7} parent=0 // pred_check_branch
    %35 = sbr.rel (0) target = $region29
  $region28: #{forward.7} parent=0 // pred_region
    _
  $region29: #{forward.7} parent=0 // pred_fallthru
    _
  // Predicated region
  $region30: #{forward.7} parent=0 // pred_check
    _
  $region31: #{forward.7} parent=0 // pred_check_branch
    %37 = sbr.rel (0) target = $region33
  $region32: #{forward.7} parent=0 // pred_region
    _
  $region33: #{forward.7} parent=0 // pred_fallthru
    _
  // Predicated region
  $region34: #{forward.7} parent=0 // pred_check
    _
  $region35: #{forward.7} parent=0 // pred_check_branch
    %39 = sbr.rel (0) target = $region37
  $region36: #{forward.7} parent=0 // pred_region
    _
  $region37: #{forward.7} parent=0 // pred_fallthru
    _
  // Predicated region
  $region38: #{forward.7} parent=0 // pred_check
    _
  $region39: #{forward.7} parent=0 // pred_check_branch
    %41 = sbr.rel (0) target = $region41
  $region40: #{forward.7} parent=0 // pred_region
    _
  $region41: #{forward.7} parent=0 // pred_fallthru
    _
  // Predicated region
  $region42: #{forward.7} parent=0 // pred_check
    _
  $region43: #{forward.7} parent=0 // pred_check_branch
    %43 = sbr.rel (0) target = $region45
  $region44: #{forward.7} parent=0 // pred_region
    _
  $region45: #{forward.7} parent=0 // pred_fallthru
    _
  // Predicated region
  $region46: #{forward.7} parent=0 // pred_check
    _
  $region47: #{forward.7} parent=0 // pred_check_branch
    %45 = sbr.rel (0) target = $region49
  $region48: #{forward.7} parent=0 // pred_region
    _
  $region49: #{forward.7} parent=0 // pred_fallthru
    _
  // Predicated region
  $region50: #{forward.7} parent=0 // pred_check
    _
  $region51: #{forward.7} parent=0 // pred_check_branch
    %47 = sbr.rel (0) target = $region53
  $region52: #{forward.7} parent=0 // pred_region
    _
  $region53: #{forward.7} parent=0 // pred_fallthru
    _
  // Predicated region
  $region54: #{forward.7} parent=0 // pred_check
    _
  $region55: #{forward.7} parent=0 // pred_check_branch
    %49 = sbr.rel (0) target = $region57
  $region56: #{forward.7} parent=0 // pred_region
    _
  $region57: #{forward.7} parent=0 // pred_fallthru
    _
  // Predicated region
  $region58: #{forward.7} parent=0 // pred_check
    _
  $region59: #{forward.7} parent=0 // pred_check_branch
    %51 = sbr.rel (0) target = $region61
  $region60: #{forward.7} parent=0 // pred_region
    _
  $region61: #{forward.7} parent=0 // pred_fallthru
    _
  // Predicated region
  $region62: #{forward.7} parent=0 // pred_check
    _
  $region63: #{forward.7} parent=0 // pred_check_branch
    %53 = sbr.rel (0) target = $region65
  $region64: #{forward.7} parent=0 // pred_region
    _
  $region65: #{forward.7} parent=0 // pred_fallthru
    _
  // Predicated region
  $region66: #{forward.7} parent=0 // pred_check
    _
  $region67: #{forward.7} parent=0 // pred_check_branch
    %55 = sbr.rel (0) target = $region69
  $region68: #{forward.7} parent=0 // pred_region
    _
  $region69: #{forward.7} parent=0 // pred_fallthru
    _
  %v56 = vld [vmem:[%s0] sm:$0xff]
  %v57 = vld [vmem:[%s0 + $0x8] sm:$0xff]
  %v58 = vld [vmem:[%s0 + $0x10] sm:$0xff]
  %v59 = vld [vmem:[%s0 + $0x18] sm:$0xff]
  %v60 = vld [vmem:[%s0 + $0x20] sm:$0xff]
  %v61 = vld [vmem:[%s0 + $0x28] sm:$0xff]
  %v62 = vld [vmem:[%s0 + $0x30] sm:$0xff]
  %v63 = vld [vmem:[%s0 + $0x38] sm:$0xff]
  %v64 = vld [vmem:[%s1] sm:$0xff]
  %v65 = vld [vmem:[%s1 + $0x8] sm:$0xff]
  %v66 = vld [vmem:[%s1 + $0x10] sm:$0xff]
  %v67 = vld [vmem:[%s1 + $0x18] sm:$0xff]
  %v68 = vld [vmem:[%s2] sm:$0x1]
  %v70 = vlaneseq
  %v71 = vshrl.u32 %v70, 7
  %v72 = vsub.s32 0, %v71
  %v73 = vrot.slane %v68, %v72
  %vm75 = vcmask 261120
  %v77 = vsel %vm75, %v56, 0
  %v80 = vsel %vm75, %v57, 0
  %v83 = vsel %vm75, %v58, 0
  %v86 = vsel %vm75, %v59, 0
  %v89 = vsel %vm75, %v60, 0
  %v92 = vsel %vm75, %v61, 0
  %v95 = vsel %vm75, %v62, 0
  %v98 = vsel %vm75, %v63, 0
  %100 = vmatprep.subr.mxu0 0.0
  %101 = vmatpush1.msra.mxu0 %v64
  %102 = vmatprep.subr.mxu0 0.0
  %103 = vmatpush1.msra.mxu0 %v65
  %104 = vmatprep.subr.mxu0 0.0
  %105 = vmatpush1.msra.mxu0 %v66
  %106 = vmatprep.subr.mxu0 0.0
  %107 = vmatpush1.msra.mxu0 %v67
  %108 = vmatprep.subr.mxu0 0.0
  %109 = vmatpush1.msra.mxu0 0.0
  %110 = vmatprep.subr.mxu0 0.0
  %111 = vmatpush1.msra.mxu0 0.0
  %112 = vmatprep.subr.mxu0 0.0
  %113 = vmatpush1.msra.mxu0 0.0
  %114 = vmatprep.subr.mxu0 0.0
  %115 = vmatpush1.msra.mxu0 0.0
  %116 = vmatprep.subr.mxu0 0.0
  %117 = vmatpush1.msra.mxu0 0.0
  %118 = vmatprep.subr.mxu0 0.0
  %119 = vmatpush1.msra.mxu0 0.0
  %120 = vmatprep.subr.mxu0 0.0
  %121 = vmatpush1.msra.mxu0 0.0
  %122 = vmatprep.subr.mxu0 0.0
  %123 = vmatpush1.msra.mxu0 0.0
  %124 = vmatprep.subr.mxu0 0.0
  %125 = vmatpush1.msra.mxu0 0.0
  %126 = vmatprep.subr.mxu0 0.0
  %127 = vmatpush1.msra.mxu0 0.0
  %128 = vmatprep.subr.mxu0 0.0
  %129 = vmatpush1.msra.mxu0 0.0
  %130 = vmatprep.subr.mxu0 0.0
  %131 = vmatpush1.msra.mxu0 0.0
  %132 = vmatprep.subr.mxu0 0.0
  %133 = vmatpush1.msra.mxu0 0.0
  %134 = vmatprep.subr.mxu0 0.0
  %135 = vmatpush1.msra.mxu0 0.0
  %136 = vmatprep.subr.mxu0 0.0
  %137 = vmatpush1.msra.mxu0 0.0
  %138 = vmatprep.subr.mxu0 0.0
  %139 = vmatpush1.msra.mxu0 0.0
  %140 = vmatprep.subr.mxu0 0.0
  %141 = vmatpush1.msra.mxu0 0.0
  %142 = vmatprep.subr.mxu0 0.0
  %143 = vmatpush1.msra.mxu0 0.0
  %144 = vmatprep.subr.mxu0 0.0
  %145 = vmatpush1.msra.mxu0 0.0
  %146 = vmatprep.subr.mxu0 0.0
  %147 = vmatpush1.msra.mxu0 0.0
  %148 = vmatprep.subr.mxu0 0.0
  %149 = vmatpush1.msra.mxu0 0.0
  %150 = vmatprep.subr.mxu0 0.0
  %151 = vmatpush1.msra.mxu0 0.0
  %152 = vmatprep.subr.mxu0 0.0
  %153 = vmatpush1.msra.mxu0 0.0
  %154 = vmatprep.subr.mxu0 0.0
  %155 = vmatpush1.msra.mxu0 0.0
  %156 = vmatprep.subr.mxu0 0.0
  %157 = vmatpush1.msra.mxu0 0.0
  %158 = vmatprep.subr.mxu0 0.0
  %159 = vmatpush1.msra.mxu0 0.0
  %160 = vmatprep.subr.mxu0 0.0
  %161 = vmatpush1.msra.mxu0 0.0
  %162 = vmatprep.subr.mxu0 0.0
  %163 = vmatpush1.msra.mxu0 0.0
  %164 = vmatprep.mubr.f32.mxu0 0.0
  %165 = vmatmul.mubr.f32.gmra.mrb[0].mxu0 %v77
  %v166 = vpop.f32.mrb[0].mxu0
  %v167 = vadd.f32 %v73, %v166
  %v168 = vpop.f32.mrb[0].mxu0
  %169 = vmatprep.mubr.f32.mxu0 0.0
  %170 = vmatmul.mubr.f32.gmra.mrb[0].mxu0 %v80
  %v171 = vpop.f32.mrb[0].mxu0
  %v172 = vadd.f32 %v73, %v171
  %v173 = vpop.f32.mrb[0].mxu0
  %174 = vmatprep.mubr.f32.mxu0 0.0
  %175 = vmatmul.mubr.f32.gmra.mrb[0].mxu0 %v83
  %v176 = vpop.f32.mrb[0].mxu0
  %v177 = vadd.f32 %v73, %v176
  %v178 = vpop.f32.mrb[0].mxu0
  %179 = vmatprep.mubr.f32.mxu0 0.0
  %180 = vmatmul.mubr.f32.gmra.mrb[0].mxu0 %v86
  %v181 = vpop.f32.mrb[0].mxu0
  %v182 = vadd.f32 %v73, %v181
  %v183 = vpop.f32.mrb[0].mxu0
  %184 = vmatprep.mubr.f32.mxu0 0.0
  %185 = vmatmul.mubr.f32.gmra.mrb[0].mxu0 %v89
  %v186 = vpop.f32.mrb[0].mxu0
  %v187 = vadd.f32 %v73, %v186
  %v188 = vpop.f32.mrb[0].mxu0
  %189 = vmatprep.mubr.f32.mxu0 0.0
  %190 = vmatmul.mubr.f32.gmra.mrb[0].mxu0 %v92
  %v191 = vpop.f32.mrb[0].mxu0
  %v192 = vadd.f32 %v73, %v191
  %v193 = vpop.f32.mrb[0].mxu0
  %194 = vmatprep.mubr.f32.mxu0 0.0
  %195 = vmatmul.mubr.f32.gmra.mrb[0].mxu0 %v95
  %v196 = vpop.f32.mrb[0].mxu0
  %v197 = vadd.f32 %v73, %v196
  %v198 = vpop.f32.mrb[0].mxu0
  %199 = vmatprep.mubr.f32.mxu0 0.0
  %200 = vmatmul.mubr.f32.gmra.mrb[0].mxu0 %v98
  %v201 = vpop.f32.mrb[0].mxu0
  %v202 = vadd.f32 %v73, %v201
  %v203 = vpop.f32.mrb[0].mxu0
  %204 = vdwg.mxu0
  %v205 = vld [vmem:[%s3] sm:$0xff]
  %v206 = vld [vmem:[%s3 + $0x8] sm:$0xff]
  %v207 = vld [vmem:[%s3 + $0x10] sm:$0xff]
  %v208 = vld [vmem:[%s3 + $0x18] sm:$0xff]
  %213 = vrot.lane.b32.xlu0 %v167, 96
  %v214 = vpop.permute.xlu0 %213
  %215 = vrot.lane.b32.xlu0 %v172, 96
  %v216 = vpop.permute.xlu0 %215
  %217 = vrot.lane.b32.xlu0 %v177, 96
  %v218 = vpop.permute.xlu0 %217
  %219 = vrot.lane.b32.xlu0 %v182, 96
  %v220 = vpop.permute.xlu0 %219
  %vm221 = vcmask 130048
  %v222 = vsel %vm221, %v167, 0
  %v224 = vsel %vm221, %v172, 0
  %v226 = vsel %vm221, %v177, 0
  %v228 = vsel %vm221, %v182, 0
  %v230 = vsel %vm221, %v214, 0
  %v232 = vsel %vm221, %v216, 0
  %v234 = vsel %vm221, %v218, 0
  %v236 = vsel %vm221, %v220, 0
  %238 = vmatprep.subr.mxu0 0.0
  %239 = vmatpush1.xpose.msra.mxu0 %v230
  %240 = vmatprep.subr.mxu0 0.0
  %241 = vmatpush1.xpose.msra.mxu0 %v232
  %242 = vmatprep.subr.mxu0 0.0
  %243 = vmatpush1.xpose.msra.mxu0 %v234
  %244 = vmatprep.subr.mxu0 0.0
  %245 = vmatpush1.xpose.msra.mxu0 %v236
  %246 = vmatprep.subr.mxu0 0.0
  %247 = vmatpush1.xpose.msra.mxu0 0.0
  %248 = vmatprep.subr.mxu0 0.0
  %249 = vmatpush1.xpose.msra.mxu0 0.0
  %250 = vmatprep.subr.mxu0 0.0
  %251 = vmatpush1.xpose.msra.mxu0 0.0
  %252 = vmatprep.subr.mxu0 0.0
  %253 = vmatpush1.xpose.msra.mxu0 0.0
  %254 = vmatprep.subr.mxu0 0.0
  %255 = vmatpush1.xpose.msra.mxu0 0.0
  %256 = vmatprep.subr.mxu0 0.0
  %257 = vmatpush1.xpose.msra.mxu0 0.0
  %258 = vmatprep.subr.mxu0 0.0
  %259 = vmatpush1.xpose.msra.mxu0 0.0
  %260 = vmatprep.subr.mxu0 0.0
  %261 = vmatpush1.xpose.msra.mxu0 0.0
  %262 = vmatprep.subr.mxu0 0.0
  %263 = vmatpush1.xpose.msra.mxu0 0.0
  %264 = vmatprep.subr.mxu0 0.0
  %265 = vmatpush1.xpose.msra.mxu0 0.0
  %266 = vmatprep.subr.mxu0 0.0
  %267 = vmatpush1.xpose.msra.mxu0 0.0
  %268 = vmatprep.subr.mxu0 0.0
  %269 = vmatpush1.xpose.msra.mxu0 0.0
  %270 = vmatprep.subr.mxu0 0.0
  %271 = vmatpush1.xpose.msra.mxu0 0.0
  %272 = vmatprep.subr.mxu0 0.0
  %273 = vmatpush1.xpose.msra.mxu0 0.0
  %274 = vmatprep.subr.mxu0 0.0
  %275 = vmatpush1.xpose.msra.mxu0 0.0
  %276 = vmatprep.subr.mxu0 0.0
  %277 = vmatpush1.xpose.msra.mxu0 0.0
  %278 = vmatprep.subr.mxu0 0.0
  %279 = vmatpush1.xpose.msra.mxu0 0.0
  %280 = vmatprep.subr.mxu0 0.0
  %281 = vmatpush1.xpose.msra.mxu0 0.0
  %282 = vmatprep.subr.mxu0 0.0
  %283 = vmatpush1.xpose.msra.mxu0 0.0
  %284 = vmatprep.subr.mxu0 0.0
  %285 = vmatpush1.xpose.msra.mxu0 0.0
  %286 = vmatprep.subr.mxu0 0.0
  %287 = vmatpush1.xpose.msra.mxu0 0.0
  %288 = vmatprep.subr.mxu0 0.0
  %289 = vmatpush1.xpose.msra.mxu0 0.0
  %290 = vmatprep.subr.mxu0 0.0
  %291 = vmatpush1.xpose.msra.mxu0 0.0
  %292 = vmatprep.subr.mxu0 0.0
  %293 = vmatpush1.xpose.msra.mxu0 0.0
  %294 = vmatprep.subr.mxu0 0.0
  %295 = vmatpush1.xpose.msra.mxu0 0.0
  %296 = vmatprep.subr.mxu0 0.0
  %297 = vmatpush1.xpose.msra.mxu0 0.0
  %298 = vmatprep.subr.mxu0 0.0
  %299 = vmatpush1.xpose.msra.mxu0 0.0
  %300 = vmatprep.subr.mxu0 0.0
  %301 = vmatpush1.xpose.msra.mxu0 0.0
  %302 = vmatprep.mubr.f32.mxu0 0.0
  %303 = vmatmul.mubr.f32.gmra.mrb[0].mxu0 %v222
  %v304 = vpop.f32.mrb[0].mxu0
  %v305 = vadd.f32 0.0, %v304
  %v306 = vpop.f32.mrb[0].mxu0
  %307 = vmatprep.mubr.f32.mxu0 0.0
  %308 = vmatmul.mubr.f32.gmra.mrb[0].mxu0 %v224
  %v309 = vpop.f32.mrb[0].mxu0
  %v310 = vadd.f32 0.0, %v309
  %v311 = vpop.f32.mrb[0].mxu0
  %312 = vmatprep.mubr.f32.mxu0 0.0
  %313 = vmatmul.mubr.f32.gmra.mrb[0].mxu0 %v226
  %v314 = vpop.f32.mrb[0].mxu0
  %v315 = vadd.f32 0.0, %v314
  %v316 = vpop.f32.mrb[0].mxu0
  %317 = vmatprep.mubr.f32.mxu0 0.0
  %318 = vmatmul.mubr.f32.gmra.mrb[0].mxu0 %v228
  %v319 = vpop.f32.mrb[0].mxu0
  %v320 = vadd.f32 0.0, %v319
  %v321 = vpop.f32.mrb[0].mxu0
  %322 = vdwg.mxu0
  %327 = vrot.lane.b32.xlu0 %v187, 96
  %v328 = vpop.permute.xlu0 %327
  %329 = vrot.lane.b32.xlu0 %v192, 96
  %v330 = vpop.permute.xlu0 %329
  %331 = vrot.lane.b32.xlu0 %v197, 96
  %v332 = vpop.permute.xlu0 %331
  %333 = vrot.lane.b32.xlu0 %v202, 96
  %v334 = vpop.permute.xlu0 %333
  %v335 = vsel %vm221, %v187, 0
  %v337 = vsel %vm221, %v192, 0
  %v339 = vsel %vm221, %v197, 0
  %v341 = vsel %vm221, %v202, 0
  %v343 = vsel %vm221, %v328, 0
  %v345 = vsel %vm221, %v330, 0
  %v347 = vsel %vm221, %v332, 0
  %v349 = vsel %vm221, %v334, 0
  %351 = vmatprep.subr.mxu0 0.0
  %352 = vmatpush1.xpose.msra.mxu0 %v343
  %353 = vmatprep.subr.mxu0 0.0
  %354 = vmatpush1.xpose.msra.mxu0 %v345
  %355 = vmatprep.subr.mxu0 0.0
  %356 = vmatpush1.xpose.msra.mxu0 %v347
  %357 = vmatprep.subr.mxu0 0.0
  %358 = vmatpush1.xpose.msra.mxu0 %v349
  %359 = vmatprep.subr.mxu0 0.0
  %360 = vmatpush1.xpose.msra.mxu0 0.0
  %361 = vmatprep.subr.mxu0 0.0
  %362 = vmatpush1.xpose.msra.mxu0 0.0
  %363 = vmatprep.subr.mxu0 0.0
  %364 = vmatpush1.xpose.msra.mxu0 0.0
  %365 = vmatprep.subr.mxu0 0.0
  %366 = vmatpush1.xpose.msra.mxu0 0.0
  %367 = vmatprep.subr.mxu0 0.0
  %368 = vmatpush1.xpose.msra.mxu0 0.0
  %369 = vmatprep.subr.mxu0 0.0
  %370 = vmatpush1.xpose.msra.mxu0 0.0
  %371 = vmatprep.subr.mxu0 0.0
  %372 = vmatpush1.xpose.msra.mxu0 0.0
  %373 = vmatprep.subr.mxu0 0.0
  %374 = vmatpush1.xpose.msra.mxu0 0.0
  %375 = vmatprep.subr.mxu0 0.0
  %376 = vmatpush1.xpose.msra.mxu0 0.0
  %377 = vmatprep.subr.mxu0 0.0
  %378 = vmatpush1.xpose.msra.mxu0 0.0
  %379 = vmatprep.subr.mxu0 0.0
  %380 = vmatpush1.xpose.msra.mxu0 0.0
  %381 = vmatprep.subr.mxu0 0.0
  %382 = vmatpush1.xpose.msra.mxu0 0.0
  %383 = vmatprep.subr.mxu0 0.0
  %384 = vmatpush1.xpose.msra.mxu0 0.0
  %385 = vmatprep.subr.mxu0 0.0
  %386 = vmatpush1.xpose.msra.mxu0 0.0
  %387 = vmatprep.subr.mxu0 0.0
  %388 = vmatpush1.xpose.msra.mxu0 0.0
  %389 = vmatprep.subr.mxu0 0.0
  %390 = vmatpush1.xpose.msra.mxu0 0.0
  %391 = vmatprep.subr.mxu0 0.0
  %392 = vmatpush1.xpose.msra.mxu0 0.0
  %393 = vmatprep.subr.mxu0 0.0
  %394 = vmatpush1.xpose.msra.mxu0 0.0
  %395 = vmatprep.subr.mxu0 0.0
  %396 = vmatpush1.xpose.msra.mxu0 0.0
  %397 = vmatprep.subr.mxu0 0.0
  %398 = vmatpush1.xpose.msra.mxu0 0.0
  %399 = vmatprep.subr.mxu0 0.0
  %400 = vmatpush1.xpose.msra.mxu0 0.0
  %401 = vmatprep.subr.mxu0 0.0
  %402 = vmatpush1.xpose.msra.mxu0 0.0
  %403 = vmatprep.subr.mxu0 0.0
  %404 = vmatpush1.xpose.msra.mxu0 0.0
  %405 = vmatprep.subr.mxu0 0.0
  %406 = vmatpush1.xpose.msra.mxu0 0.0
  %407 = vmatprep.subr.mxu0 0.0
  %408 = vmatpush1.xpose.msra.mxu0 0.0
  %409 = vmatprep.subr.mxu0 0.0
  %410 = vmatpush1.xpose.msra.mxu0 0.0
  %411 = vmatprep.subr.mxu0 0.0
  %412 = vmatpush1.xpose.msra.mxu0 0.0
  %413 = vmatprep.subr.mxu0 0.0
  %414 = vmatpush1.xpose.msra.mxu0 0.0
  %415 = vmatprep.mubr.f32.mxu0 0.0
  %416 = vmatmul.mubr.f32.gmra.mrb[0].mxu0 %v335
  %v417 = vpop.f32.mrb[0].mxu0
  %v418 = vadd.f32 0.0, %v417
  %v419 = vpop.f32.mrb[0].mxu0
  %420 = vmatprep.mubr.f32.mxu0 0.0
  %421 = vmatmul.mubr.f32.gmra.mrb[0].mxu0 %v337
  %v422 = vpop.f32.mrb[0].mxu0
  %v423 = vadd.f32 0.0, %v422
  %v424 = vpop.f32.mrb[0].mxu0
  %425 = vmatprep.mubr.f32.mxu0 0.0
  %426 = vmatmul.mubr.f32.gmra.mrb[0].mxu0 %v339
  %v427 = vpop.f32.mrb[0].mxu0
  %v428 = vadd.f32 0.0, %v427
  %v429 = vpop.f32.mrb[0].mxu0
  %430 = vmatprep.mubr.f32.mxu0 0.0
  %431 = vmatmul.mubr.f32.gmra.mrb[0].mxu0 %v341
  %v432 = vpop.f32.mrb[0].mxu0
  %v433 = vadd.f32 0.0, %v432
  %v434 = vpop.f32.mrb[0].mxu0
  %435 = vdwg.mxu0
  %v436 = vmul.f32 %v305, 0.25
  %v437 = vmul.f32 %v310, 0.25
  %v438 = vmul.f32 %v315, 0.25
  %v439 = vmul.f32 %v320, 0.25
  %v440 = vmul.f32 %v418, 0.25
  %v441 = vmul.f32 %v423, 0.25
  %v442 = vmul.f32 %v428, 0.25
  %v443 = vmul.f32 %v433, 0.25
  %v444 = vsel %vm75, %v436, -inf
  %445 = vmax.xlane.f32.xlu0 %v444
  %v446 = vpop.xlane.xlu0 %445
  %v447 = vsel %vm75, %v437, -inf
  %448 = vmax.xlane.f32.xlu0 %v447
  %v449 = vpop.xlane.xlu0 %448
  %v450 = vsel %vm75, %v438, -inf
  %451 = vmax.xlane.f32.xlu0 %v450
  %v452 = vpop.xlane.xlu0 %451
  %v453 = vsel %vm75, %v439, -inf
  %454 = vmax.xlane.f32.xlu0 %v453
  %v455 = vpop.xlane.xlu0 %454
  %v456 = vsel %vm75, %v440, -inf
  %457 = vmax.xlane.f32.xlu0 %v456
  %v458 = vpop.xlane.xlu0 %457
  %v459 = vsel %vm75, %v441, -inf
  %460 = vmax.xlane.f32.xlu0 %v459
  %v461 = vpop.xlane.xlu0 %460
  %v462 = vsel %vm75, %v442, -inf
  %463 = vmax.xlane.f32.xlu0 %v462
  %v464 = vpop.xlane.xlu0 %463
  %v465 = vsel %vm75, %v443, -inf
  %466 = vmax.xlane.f32.xlu0 %v465
  %v467 = vpop.xlane.xlu0 %466
  %v468 = vsub.f32 %v436, %v446
  %v469 = vsub.f32 %v437, %v449
  %v470 = vsub.f32 %v438, %v452
  %v471 = vsub.f32 %v439, %v455
  %v472 = vsub.f32 %v440, %v458
  %v473 = vsub.f32 %v441, %v461
  %v474 = vsub.f32 %v442, %v464
  %v475 = vsub.f32 %v443, %v467
  %v476 = vmul.f32 %v468, 1.442695
  %v477 = vpow.pop %v476
  %v478 = vmul.f32 %v469, 1.442695
  %v479 = vpow.pop %v478
  %v480 = vmul.f32 %v470, 1.442695
  %v481 = vpow.pop %v480
  %v482 = vmul.f32 %v471, 1.442695
  %v483 = vpow.pop %v482
  %v484 = vmul.f32 %v472, 1.442695
  %v485 = vpow.pop %v484
  %v486 = vmul.f32 %v473, 1.442695
  %v487 = vpow.pop %v486
  %v488 = vmul.f32 %v474, 1.442695
  %v489 = vpow.pop %v488
  %v490 = vmul.f32 %v475, 1.442695
  %v491 = vpow.pop %v490
  %v492 = vsel %vm75, %v477, 0.0
  %493 = vadd.xlane.f32.xlu0 %v492
  %v494 = vpop.xlane.xlu0 %493
  %v495 = vsel %vm75, %v479, 0.0
  %496 = vadd.xlane.f32.xlu0 %v495
  %v497 = vpop.xlane.xlu0 %496
  %v498 = vsel %vm75, %v481, 0.0
  %499 = vadd.xlane.f32.xlu0 %v498
  %v500 = vpop.xlane.xlu0 %499
  %v501 = vsel %vm75, %v483, 0.0
  %502 = vadd.xlane.f32.xlu0 %v501
  %v503 = vpop.xlane.xlu0 %502
  %v504 = vsel %vm75, %v485, 0.0
  %505 = vadd.xlane.f32.xlu0 %v504
  %v506 = vpop.xlane.xlu0 %505
  %v507 = vsel %vm75, %v487, 0.0
  %508 = vadd.xlane.f32.xlu0 %v507
  %v509 = vpop.xlane.xlu0 %508
  %v510 = vsel %vm75, %v489, 0.0
  %511 = vadd.xlane.f32.xlu0 %v510
  %v512 = vpop.xlane.xlu0 %511
  %v513 = vsel %vm75, %v491, 0.0
  %514 = vadd.xlane.f32.xlu0 %v513
  %v515 = vpop.xlane.xlu0 %514
  %v516 = vrcp.pop %v494
  %v517 = vrcp.pop %v497
  %v518 = vrcp.pop %v500
  %v519 = vrcp.pop %v503
  %v520 = vrcp.pop %v506
  %v521 = vrcp.pop %v509
  %v522 = vrcp.pop %v512
  %v523 = vrcp.pop %v515
  %v524 = vmul.f32 %v477, %v516
  %v525 = vmul.f32 %v479, %v517
  %v526 = vmul.f32 %v481, %v518
  %v527 = vmul.f32 %v483, %v519
  %v528 = vmul.f32 %v485, %v520
  %v529 = vmul.f32 %v487, %v521
  %v530 = vmul.f32 %v489, %v522
  %v531 = vmul.f32 %v491, %v523
  %532 = vrot.lane.b32.xlu0 %v167, 64
  %v533 = vpop.permute.xlu0 %532
  %534 = vrot.lane.b32.xlu0 %v172, 64
  %v535 = vpop.permute.xlu0 %534
  %536 = vrot.lane.b32.xlu0 %v177, 64
  %v537 = vpop.permute.xlu0 %536
  %538 = vrot.lane.b32.xlu0 %v182, 64
  %v539 = vpop.permute.xlu0 %538
  %v545 = vsel %vm75, %v524, 0
  %v548 = vsel %vm75, %v525, 0
  %v551 = vsel %vm75, %v526, 0
  %v554 = vsel %vm75, %v527, 0
  %556 = vmatprep.subr.mxu0 0.0
  %557 = vmatpush1.msra.mxu0 %v533
  %558 = vmatprep.subr.mxu0 0.0
  %559 = vmatpush1.msra.mxu0 %v535
  %560 = vmatprep.subr.mxu0 0.0
  %561 = vmatpush1.msra.mxu0 %v537
  %562 = vmatprep.subr.mxu0 0.0
  %563 = vmatpush1.msra.mxu0 %v539
  %564 = vmatprep.subr.mxu0 0.0
  %565 = vmatpush1.msra.mxu0 0.0
  %566 = vmatprep.subr.mxu0 0.0
  %567 = vmatpush1.msra.mxu0 0.0
  %568 = vmatprep.subr.mxu0 0.0
  %569 = vmatpush1.msra.mxu0 0.0
  %570 = vmatprep.subr.mxu0 0.0
  %571 = vmatpush1.msra.mxu0 0.0
  %572 = vmatprep.subr.mxu0 0.0
  %573 = vmatpush1.msra.mxu0 0.0
  %574 = vmatprep.subr.mxu0 0.0
  %575 = vmatpush1.msra.mxu0 0.0
  %576 = vmatprep.subr.mxu0 0.0
  %577 = vmatpush1.msra.mxu0 0.0
  %578 = vmatprep.subr.mxu0 0.0
  %579 = vmatpush1.msra.mxu0 0.0
  %580 = vmatprep.subr.mxu0 0.0
  %581 = vmatpush1.msra.mxu0 0.0
  %582 = vmatprep.subr.mxu0 0.0
  %583 = vmatpush1.msra.mxu0 0.0
  %584 = vmatprep.subr.mxu0 0.0
  %585 = vmatpush1.msra.mxu0 0.0
  %586 = vmatprep.subr.mxu0 0.0
  %587 = vmatpush1.msra.mxu0 0.0
  %588 = vmatprep.subr.mxu0 0.0
  %589 = vmatpush1.msra.mxu0 0.0
  %590 = vmatprep.subr.mxu0 0.0
  %591 = vmatpush1.msra.mxu0 0.0
  %592 = vmatprep.subr.mxu0 0.0
  %593 = vmatpush1.msra.mxu0 0.0
  %594 = vmatprep.subr.mxu0 0.0
  %595 = vmatpush1.msra.mxu0 0.0
  %596 = vmatprep.subr.mxu0 0.0
  %597 = vmatpush1.msra.mxu0 0.0
  %598 = vmatprep.subr.mxu0 0.0
  %599 = vmatpush1.msra.mxu0 0.0
  %600 = vmatprep.subr.mxu0 0.0
  %601 = vmatpush1.msra.mxu0 0.0
  %602 = vmatprep.subr.mxu0 0.0
  %603 = vmatpush1.msra.mxu0 0.0
  %604 = vmatprep.subr.mxu0 0.0
  %605 = vmatpush1.msra.mxu0 0.0
  %606 = vmatprep.subr.mxu0 0.0
  %607 = vmatpush1.msra.mxu0 0.0
  %608 = vmatprep.subr.mxu0 0.0
  %609 = vmatpush1.msra.mxu0 0.0
  %610 = vmatprep.subr.mxu0 0.0
  %611 = vmatpush1.msra.mxu0 0.0
  %612 = vmatprep.subr.mxu0 0.0
  %613 = vmatpush1.msra.mxu0 0.0
  %614 = vmatprep.subr.mxu0 0.0
  %615 = vmatpush1.msra.mxu0 0.0
  %616 = vmatprep.subr.mxu0 0.0
  %617 = vmatpush1.msra.mxu0 0.0
  %618 = vmatprep.subr.mxu0 0.0
  %619 = vmatpush1.msra.mxu0 0.0
  %620 = vmatprep.mubr.f32.mxu0 0.0
  %621 = vmatmul.mubr.f32.gmra.mrb[0].mxu0 %v545
  %v622 = vpop.f32.mrb[0].mxu0
  %v623 = vadd.f32 0.0, %v622
  %v624 = vpop.f32.mrb[0].mxu0
  %625 = vmatprep.mubr.f32.mxu0 0.0
  %626 = vmatmul.mubr.f32.gmra.mrb[0].mxu0 %v548
  %v627 = vpop.f32.mrb[0].mxu0
  %v628 = vadd.f32 0.0, %v627
  %v629 = vpop.f32.mrb[0].mxu0
  %630 = vmatprep.mubr.f32.mxu0 0.0
  %631 = vmatmul.mubr.f32.gmra.mrb[0].mxu0 %v551
  %v632 = vpop.f32.mrb[0].mxu0
  %v633 = vadd.f32 0.0, %v632
  %v634 = vpop.f32.mrb[0].mxu0
  %635 = vmatprep.mubr.f32.mxu0 0.0
  %636 = vmatmul.mubr.f32.gmra.mrb[0].mxu0 %v554
  %v637 = vpop.f32.mrb[0].mxu0
  %v638 = vadd.f32 0.0, %v637
  %v639 = vpop.f32.mrb[0].mxu0
  %640 = vdwg.mxu0
  %641 = vrot.lane.b32.xlu0 %v187, 64
  %v642 = vpop.permute.xlu0 %641
  %643 = vrot.lane.b32.xlu0 %v192, 64
  %v644 = vpop.permute.xlu0 %643
  %645 = vrot.lane.b32.xlu0 %v197, 64
  %v646 = vpop.permute.xlu0 %645
  %647 = vrot.lane.b32.xlu0 %v202, 64
  %v648 = vpop.permute.xlu0 %647
  %v654 = vsel %vm75, %v528, 0
  %v657 = vsel %vm75, %v529, 0
  %v660 = vsel %vm75, %v530, 0
  %v663 = vsel %vm75, %v531, 0
  %665 = vmatprep.subr.mxu0 0.0
  %666 = vmatpush1.msra.mxu0 %v642
  %667 = vmatprep.subr.mxu0 0.0
  %668 = vmatpush1.msra.mxu0 %v644
  %669 = vmatprep.subr.mxu0 0.0
  %670 = vmatpush1.msra.mxu0 %v646
  %671 = vmatprep.subr.mxu0 0.0
  %672 = vmatpush1.msra.mxu0 %v648
  %673 = vmatprep.subr.mxu0 0.0
  %674 = vmatpush1.msra.mxu0 0.0
  %675 = vmatprep.subr.mxu0 0.0
  %676 = vmatpush1.msra.mxu0 0.0
  %677 = vmatprep.subr.mxu0 0.0
  %678 = vmatpush1.msra.mxu0 0.0
  %679 = vmatprep.subr.mxu0 0.0
  %680 = vmatpush1.msra.mxu0 0.0
  %681 = vmatprep.subr.mxu0 0.0
  %682 = vmatpush1.msra.mxu0 0.0
  %683 = vmatprep.subr.mxu0 0.0
  %684 = vmatpush1.msra.mxu0 0.0
  %685 = vmatprep.subr.mxu0 0.0
  %686 = vmatpush1.msra.mxu0 0.0
  %687 = vmatprep.subr.mxu0 0.0
  %688 = vmatpush1.msra.mxu0 0.0
  %689 = vmatprep.subr.mxu0 0.0
  %690 = vmatpush1.msra.mxu0 0.0
  %691 = vmatprep.subr.mxu0 0.0
  %692 = vmatpush1.msra.mxu0 0.0
  %693 = vmatprep.subr.mxu0 0.0
  %694 = vmatpush1.msra.mxu0 0.0
  %695 = vmatprep.subr.mxu0 0.0
  %696 = vmatpush1.msra.mxu0 0.0
  %697 = vmatprep.subr.mxu0 0.0
  %698 = vmatpush1.msra.mxu0 0.0
  %699 = vmatprep.subr.mxu0 0.0
  %700 = vmatpush1.msra.mxu0 0.0
  %701 = vmatprep.subr.mxu0 0.0
  %702 = vmatpush1.msra.mxu0 0.0
  %703 = vmatprep.subr.mxu0 0.0
  %704 = vmatpush1.msra.mxu0 0.0
  %705 = vmatprep.subr.mxu0 0.0
  %706 = vmatpush1.msra.mxu0 0.0
  %707 = vmatprep.subr.mxu0 0.0
  %708 = vmatpush1.msra.mxu0 0.0
  %709 = vmatprep.subr.mxu0 0.0
  %710 = vmatpush1.msra.mxu0 0.0
  %711 = vmatprep.subr.mxu0 0.0
  %712 = vmatpush1.msra.mxu0 0.0
  %713 = vmatprep.subr.mxu0 0.0
  %714 = vmatpush1.msra.mxu0 0.0
  %715 = vmatprep.subr.mxu0 0.0
  %716 = vmatpush1.msra.mxu0 0.0
  %717 = vmatprep.subr.mxu0 0.0
  %718 = vmatpush1.msra.mxu0 0.0
  %719 = vmatprep.subr.mxu0 0.0
  %720 = vmatpush1.msra.mxu0 0.0
  %721 = vmatprep.subr.mxu0 0.0
  %722 = vmatpush1.msra.mxu0 0.0
  %723 = vmatprep.subr.mxu0 0.0
  %724 = vmatpush1.msra.mxu0 0.0
  %725 = vmatprep.subr.mxu0 0.0
  %726 = vmatpush1.msra.mxu0 0.0
  %727 = vmatprep.subr.mxu0 0.0
  %728 = vmatpush1.msra.mxu0 0.0
  %729 = vmatprep.mubr.f32.mxu0 0.0
  %730 = vmatmul.mubr.f32.gmra.mrb[0].mxu0 %v654
  %v731 = vpop.f32.mrb[0].mxu0
  %v732 = vadd.f32 0.0, %v731
  %v733 = vpop.f32.mrb[0].mxu0
  %734 = vmatprep.mubr.f32.mxu0 0.0
  %735 = vmatmul.mubr.f32.gmra.mrb[0].mxu0 %v657
  %v736 = vpop.f32.mrb[0].mxu0
  %v737 = vadd.f32 0.0, %v736
  %v738 = vpop.f32.mrb[0].mxu0
  %739 = vmatprep.mubr.f32.mxu0 0.0
  %740 = vmatmul.mubr.f32.gmra.mrb[0].mxu0 %v660
  %v741 = vpop.f32.mrb[0].mxu0
  %v742 = vadd.f32 0.0, %v741
  %v743 = vpop.f32.mrb[0].mxu0
  %744 = vmatprep.mubr.f32.mxu0 0.0
  %745 = vmatmul.mubr.f32.gmra.mrb[0].mxu0 %v663
  %v746 = vpop.f32.mrb[0].mxu0
  %v747 = vadd.f32 0.0, %v746
  %v748 = vpop.f32.mrb[0].mxu0
  %749 = vdwg.mxu0
  %750 = vrot.lane.b32.xlu0 %v167, 112
  %v751 = vpop.permute.xlu0 %750
  %752 = vrot.lane.b32.xlu0 %v172, 112
  %v753 = vpop.permute.xlu0 %752
  %754 = vrot.lane.b32.xlu0 %v177, 112
  %v755 = vpop.permute.xlu0 %754
  %756 = vrot.lane.b32.xlu0 %v182, 112
  %v757 = vpop.permute.xlu0 %756
  %758 = vrot.lane.b32.xlu0 %v167, 80
  %v759 = vpop.permute.xlu0 %758
  %760 = vrot.lane.b32.xlu0 %v172, 80
  %v761 = vpop.permute.xlu0 %760
  %762 = vrot.lane.b32.xlu0 %v177, 80
  %v763 = vpop.permute.xlu0 %762
  %764 = vrot.lane.b32.xlu0 %v182, 80
  %v765 = vpop.permute.xlu0 %764
  %v766 = vsel %vm221, %v751, 0
  %v768 = vsel %vm221, %v753, 0
  %v770 = vsel %vm221, %v755, 0
  %v772 = vsel %vm221, %v757, 0
  %v774 = vsel %vm221, %v759, 0
  %v776 = vsel %vm221, %v761, 0
  %v778 = vsel %vm221, %v763, 0
  %v780 = vsel %vm221, %v765, 0
  %782 = vmatprep.subr.mxu0 0.0
  %783 = vmatpush1.xpose.msra.mxu0 %v774
  %784 = vmatprep.subr.mxu0 0.0
  %785 = vmatpush1.xpose.msra.mxu0 %v776
  %786 = vmatprep.subr.mxu0 0.0
  %787 = vmatpush1.xpose.msra.mxu0 %v778
  %788 = vmatprep.subr.mxu0 0.0
  %789 = vmatpush1.xpose.msra.mxu0 %v780
  %790 = vmatprep.subr.mxu0 0.0
  %791 = vmatpush1.xpose.msra.mxu0 0.0
  %792 = vmatprep.subr.mxu0 0.0
  %793 = vmatpush1.xpose.msra.mxu0 0.0
  %794 = vmatprep.subr.mxu0 0.0
  %795 = vmatpush1.xpose.msra.mxu0 0.0
  %796 = vmatprep.subr.mxu0 0.0
  %797 = vmatpush1.xpose.msra.mxu0 0.0
  %798 = vmatprep.subr.mxu0 0.0
  %799 = vmatpush1.xpose.msra.mxu0 0.0
  %800 = vmatprep.subr.mxu0 0.0
  %801 = vmatpush1.xpose.msra.mxu0 0.0
  %802 = vmatprep.subr.mxu0 0.0
  %803 = vmatpush1.xpose.msra.mxu0 0.0
  %804 = vmatprep.subr.mxu0 0.0
  %805 = vmatpush1.xpose.msra.mxu0 0.0
  %806 = vmatprep.subr.mxu0 0.0
  %807 = vmatpush1.xpose.msra.mxu0 0.0
  %808 = vmatprep.subr.mxu0 0.0
  %809 = vmatpush1.xpose.msra.mxu0 0.0
  %810 = vmatprep.subr.mxu0 0.0
  %811 = vmatpush1.xpose.msra.mxu0 0.0
  %812 = vmatprep.subr.mxu0 0.0
  %813 = vmatpush1.xpose.msra.mxu0 0.0
  %814 = vmatprep.subr.mxu0 0.0
  %815 = vmatpush1.xpose.msra.mxu0 0.0
  %816 = vmatprep.subr.mxu0 0.0
  %817 = vmatpush1.xpose.msra.mxu0 0.0
  %818 = vmatprep.subr.mxu0 0.0
  %819 = vmatpush1.xpose.msra.mxu0 0.0
  %820 = vmatprep.subr.mxu0 0.0
  %821 = vmatpush1.xpose.msra.mxu0 0.0
  %822 = vmatprep.subr.mxu0 0.0
  %823 = vmatpush1.xpose.msra.mxu0 0.0
  %824 = vmatprep.subr.mxu0 0.0
  %825 = vmatpush1.xpose.msra.mxu0 0.0
  %826 = vmatprep.subr.mxu0 0.0
  %827 = vmatpush1.xpose.msra.mxu0 0.0
  %828 = vmatprep.subr.mxu0 0.0
  %829 = vmatpush1.xpose.msra.mxu0 0.0
  %830 = vmatprep.subr.mxu0 0.0
  %831 = vmatpush1.xpose.msra.mxu0 0.0
  %832 = vmatprep.subr.mxu0 0.0
  %833 = vmatpush1.xpose.msra.mxu0 0.0
  %834 = vmatprep.subr.mxu0 0.0
  %835 = vmatpush1.xpose.msra.mxu0 0.0
  %836 = vmatprep.subr.mxu0 0.0
  %837 = vmatpush1.xpose.msra.mxu0 0.0
  %838 = vmatprep.subr.mxu0 0.0
  %839 = vmatpush1.xpose.msra.mxu0 0.0
  %840 = vmatprep.subr.mxu0 0.0
  %841 = vmatpush1.xpose.msra.mxu0 0.0
  %842 = vmatprep.subr.mxu0 0.0
  %843 = vmatpush1.xpose.msra.mxu0 0.0
  %844 = vmatprep.subr.mxu0 0.0
  %845 = vmatpush1.xpose.msra.mxu0 0.0
  %846 = vmatprep.mubr.f32.mxu0 0.0
  %847 = vmatmul.mubr.f32.gmra.mrb[0].mxu0 %v766
  %v848 = vpop.f32.mrb[0].mxu0
  %v849 = vadd.f32 0.0, %v848
  %v850 = vpop.f32.mrb[0].mxu0
  %851 = vmatprep.mubr.f32.mxu0 0.0
  %852 = vmatmul.mubr.f32.gmra.mrb[0].mxu0 %v768
  %v853 = vpop.f32.mrb[0].mxu0
  %v854 = vadd.f32 0.0, %v853
  %v855 = vpop.f32.mrb[0].mxu0
  %856 = vmatprep.mubr.f32.mxu0 0.0
  %857 = vmatmul.mubr.f32.gmra.mrb[0].mxu0 %v770
  %v858 = vpop.f32.mrb[0].mxu0
  %v859 = vadd.f32 0.0, %v858
  %v860 = vpop.f32.mrb[0].mxu0
  %861 = vmatprep.mubr.f32.mxu0 0.0
  %862 = vmatmul.mubr.f32.gmra.mrb[0].mxu0 %v772
  %v863 = vpop.f32.mrb[0].mxu0
  %v864 = vadd.f32 0.0, %v863
  %v865 = vpop.f32.mrb[0].mxu0
  %866 = vdwg.mxu0
  %867 = vrot.lane.b32.xlu0 %v187, 112
  %v868 = vpop.permute.xlu0 %867
  %869 = vrot.lane.b32.xlu0 %v192, 112
  %v870 = vpop.permute.xlu0 %869
  %871 = vrot.lane.b32.xlu0 %v197, 112
  %v872 = vpop.permute.xlu0 %871
  %873 = vrot.lane.b32.xlu0 %v202, 112
  %v874 = vpop.permute.xlu0 %873
  %875 = vrot.lane.b32.xlu0 %v187, 80
  %v876 = vpop.permute.xlu0 %875
  %877 = vrot.lane.b32.xlu0 %v192, 80
  %v878 = vpop.permute.xlu0 %877
  %879 = vrot.lane.b32.xlu0 %v197, 80
  %v880 = vpop.permute.xlu0 %879
  %881 = vrot.lane.b32.xlu0 %v202, 80
  %v882 = vpop.permute.xlu0 %881
  %v883 = vsel %vm221, %v868, 0
  %v885 = vsel %vm221, %v870, 0
  %v887 = vsel %vm221, %v872, 0
  %v889 = vsel %vm221, %v874, 0
  %v891 = vsel %vm221, %v876, 0
  %v893 = vsel %vm221, %v878, 0
  %v895 = vsel %vm221, %v880, 0
  %v897 = vsel %vm221, %v882, 0
  %899 = vmatprep.subr.mxu0 0.0
  %900 = vmatpush1.xpose.msra.mxu0 %v891
  %901 = vmatprep.subr.mxu0 0.0
  %902 = vmatpush1.xpose.msra.mxu0 %v893
  %903 = vmatprep.subr.mxu0 0.0
  %904 = vmatpush1.xpose.msra.mxu0 %v895
  %905 = vmatprep.subr.mxu0 0.0
  %906 = vmatpush1.xpose.msra.mxu0 %v897
  %907 = vmatprep.subr.mxu0 0.0
  %908 = vmatpush1.xpose.msra.mxu0 0.0
  %909 = vmatprep.subr.mxu0 0.0
  %910 = vmatpush1.xpose.msra.mxu0 0.0
  %911 = vmatprep.subr.mxu0 0.0
  %912 = vmatpush1.xpose.msra.mxu0 0.0
  %913 = vmatprep.subr.mxu0 0.0
  %914 = vmatpush1.xpose.msra.mxu0 0.0
  %915 = vmatprep.subr.mxu0 0.0
  %916 = vmatpush1.xpose.msra.mxu0 0.0
  %917 = vmatprep.subr.mxu0 0.0
  %918 = vmatpush1.xpose.msra.mxu0 0.0
  %919 = vmatprep.subr.mxu0 0.0
  %920 = vmatpush1.xpose.msra.mxu0 0.0
  %921 = vmatprep.subr.mxu0 0.0
  %922 = vmatpush1.xpose.msra.mxu0 0.0
  %923 = vmatprep.subr.mxu0 0.0
  %924 = vmatpush1.xpose.msra.mxu0 0.0
  %925 = vmatprep.subr.mxu0 0.0
  %926 = vmatpush1.xpose.msra.mxu0 0.0
  %927 = vmatprep.subr.mxu0 0.0
  %928 = vmatpush1.xpose.msra.mxu0 0.0
  %929 = vmatprep.subr.mxu0 0.0
  %930 = vmatpush1.xpose.msra.mxu0 0.0
  %931 = vmatprep.subr.mxu0 0.0
  %932 = vmatpush1.xpose.msra.mxu0 0.0
  %933 = vmatprep.subr.mxu0 0.0
  %934 = vmatpush1.xpose.msra.mxu0 0.0
  %935 = vmatprep.subr.mxu0 0.0
  %936 = vmatpush1.xpose.msra.mxu0 0.0
  %937 = vmatprep.subr.mxu0 0.0
  %938 = vmatpush1.xpose.msra.mxu0 0.0
  %939 = vmatprep.subr.mxu0 0.0
  %940 = vmatpush1.xpose.msra.mxu0 0.0
  %941 = vmatprep.subr.mxu0 0.0
  %942 = vmatpush1.xpose.msra.mxu0 0.0
  %943 = vmatprep.subr.mxu0 0.0
  %944 = vmatpush1.xpose.msra.mxu0 0.0
  %945 = vmatprep.subr.mxu0 0.0
  %946 = vmatpush1.xpose.msra.mxu0 0.0
  %947 = vmatprep.subr.mxu0 0.0
  %948 = vmatpush1.xpose.msra.mxu0 0.0
  %949 = vmatprep.subr.mxu0 0.0
  %950 = vmatpush1.xpose.msra.mxu0 0.0
  %951 = vmatprep.subr.mxu0 0.0
  %952 = vmatpush1.xpose.msra.mxu0 0.0
  %953 = vmatprep.subr.mxu0 0.0
  %954 = vmatpush1.xpose.msra.mxu0 0.0
  %955 = vmatprep.subr.mxu0 0.0
  %956 = vmatpush1.xpose.msra.mxu0 0.0
  %957 = vmatprep.subr.mxu0 0.0
  %958 = vmatpush1.xpose.msra.mxu0 0.0
  %959 = vmatprep.subr.mxu0 0.0
  %960 = vmatpush1.xpose.msra.mxu0 0.0
  %961 = vmatprep.subr.mxu0 0.0
  %962 = vmatpush1.xpose.msra.mxu0 0.0
  %963 = vmatprep.mubr.f32.mxu0 0.0
  %964 = vmatmul.mubr.f32.gmra.mrb[0].mxu0 %v883
  %v965 = vpop.f32.mrb[0].mxu0
  %v966 = vadd.f32 0.0, %v965
  %v967 = vpop.f32.mrb[0].mxu0
  %968 = vmatprep.mubr.f32.mxu0 0.0
  %969 = vmatmul.mubr.f32.gmra.mrb[0].mxu0 %v885
  %v970 = vpop.f32.mrb[0].mxu0
  %v971 = vadd.f32 0.0, %v970
  %v972 = vpop.f32.mrb[0].mxu0
  %973 = vmatprep.mubr.f32.mxu0 0.0
  %974 = vmatmul.mubr.f32.gmra.mrb[0].mxu0 %v887
  %v975 = vpop.f32.mrb[0].mxu0
  %v976 = vadd.f32 0.0, %v975
  %v977 = vpop.f32.mrb[0].mxu0
  %978 = vmatprep.mubr.f32.mxu0 0.0
  %979 = vmatmul.mubr.f32.gmra.mrb[0].mxu0 %v889
  %v980 = vpop.f32.mrb[0].mxu0
  %v981 = vadd.f32 0.0, %v980
  %v982 = vpop.f32.mrb[0].mxu0
  %983 = vdwg.mxu0
  %v984 = vmul.f32 %v849, 0.25
  %v985 = vmul.f32 %v854, 0.25
  %v986 = vmul.f32 %v859, 0.25
  %v987 = vmul.f32 %v864, 0.25
  %v988 = vmul.f32 %v966, 0.25
  %v989 = vmul.f32 %v971, 0.25
  %v990 = vmul.f32 %v976, 0.25
  %v991 = vmul.f32 %v981, 0.25
  %v992 = vsel %vm75, %v984, -inf
  %993 = vmax.xlane.f32.xlu0 %v992
  %v994 = vpop.xlane.xlu0 %993
  %v995 = vsel %vm75, %v985, -inf
  %996 = vmax.xlane.f32.xlu0 %v995
  %v997 = vpop.xlane.xlu0 %996
  %v998 = vsel %vm75, %v986, -inf
  %999 = vmax.xlane.f32.xlu0 %v998
  %v1000 = vpop.xlane.xlu0 %999
  %v1001 = vsel %vm75, %v987, -inf
  %1002 = vmax.xlane.f32.xlu0 %v1001
  %v1003 = vpop.xlane.xlu0 %1002
  %v1004 = vsel %vm75, %v988, -inf
  %1005 = vmax.xlane.f32.xlu0 %v1004
  %v1006 = vpop.xlane.xlu0 %1005
  %v1007 = vsel %vm75, %v989, -inf
  %1008 = vmax.xlane.f32.xlu0 %v1007
  %v1009 = vpop.xlane.xlu0 %1008
  %v1010 = vsel %vm75, %v990, -inf
  %1011 = vmax.xlane.f32.xlu0 %v1010
  %v1012 = vpop.xlane.xlu0 %1011
  %v1013 = vsel %vm75, %v991, -inf
  %1014 = vmax.xlane.f32.xlu0 %v1013
  %v1015 = vpop.xlane.xlu0 %1014
  %v1016 = vsub.f32 %v984, %v994
  %v1017 = vsub.f32 %v985, %v997
  %v1018 = vsub.f32 %v986, %v1000
  %v1019 = vsub.f32 %v987, %v1003
  %v1020 = vsub.f32 %v988, %v1006
  %v1021 = vsub.f32 %v989, %v1009
  %v1022 = vsub.f32 %v990, %v1012
  %v1023 = vsub.f32 %v991, %v1015
  %v1024 = vmul.f32 %v1016, 1.442695
  %v1025 = vpow.pop %v1024
  %v1026 = vmul.f32 %v1017, 1.442695
  %v1027 = vpow.pop %v1026
  %v1028 = vmul.f32 %v1018, 1.442695
  %v1029 = vpow.pop %v1028
  %v1030 = vmul.f32 %v1019, 1.442695
  %v1031 = vpow.pop %v1030
  %v1032 = vmul.f32 %v1020, 1.442695
  %v1033 = vpow.pop %v1032
  %v1034 = vmul.f32 %v1021, 1.442695
  %v1035 = vpow.pop %v1034
  %v1036 = vmul.f32 %v1022, 1.442695
  %v1037 = vpow.pop %v1036
  %v1038 = vmul.f32 %v1023, 1.442695
  %v1039 = vpow.pop %v1038
  %v1040 = vsel %vm75, %v1025, 0.0
  %1041 = vadd.xlane.f32.xlu0 %v1040
  %v1042 = vpop.xlane.xlu0 %1041
  %v1043 = vsel %vm75, %v1027, 0.0
  %1044 = vadd.xlane.f32.xlu0 %v1043
  %v1045 = vpop.xlane.xlu0 %1044
  %v1046 = vsel %vm75, %v1029, 0.0
  %1047 = vadd.xlane.f32.xlu0 %v1046
  %v1048 = vpop.xlane.xlu0 %1047
  %v1049 = vsel %vm75, %v1031, 0.0
  %1050 = vadd.xlane.f32.xlu0 %v1049
  %v1051 = vpop.xlane.xlu0 %1050
  %v1052 = vsel %vm75, %v1033, 0.0
  %1053 = vadd.xlane.f32.xlu0 %v1052
  %v1054 = vpop.xlane.xlu0 %1053
  %v1055 = vsel %vm75, %v1035, 0.0
  %1056 = vadd.xlane.f32.xlu0 %v1055
  %v1057 = vpop.xlane.xlu0 %1056
  %v1058 = vsel %vm75, %v1037, 0.0
  %1059 = vadd.xlane.f32.xlu0 %v1058
  %v1060 = vpop.xlane.xlu0 %1059
  %v1061 = vsel %vm75, %v1039, 0.0
  %1062 = vadd.xlane.f32.xlu0 %v1061
  %v1063 = vpop.xlane.xlu0 %1062
  %v1064 = vrcp.pop %v1042
  %v1065 = vrcp.pop %v1045
  %v1066 = vrcp.pop %v1048
  %v1067 = vrcp.pop %v1051
  %v1068 = vrcp.pop %v1054
  %v1069 = vrcp.pop %v1057
  %v1070 = vrcp.pop %v1060
  %v1071 = vrcp.pop %v1063
  %v1072 = vmul.f32 %v1025, %v1064
  %v1073 = vmul.f32 %v1027, %v1065
  %v1074 = vmul.f32 %v1029, %v1066
  %v1075 = vmul.f32 %v1031, %v1067
  %v1076 = vmul.f32 %v1033, %v1068
  %v1077 = vmul.f32 %v1035, %v1069
  %v1078 = vmul.f32 %v1037, %v1070
  %v1079 = vmul.f32 %v1039, %v1071
  %1080 = vrot.lane.b32.xlu0 %v167, 48
  %v1081 = vpop.permute.xlu0 %1080
  %1082 = vrot.lane.b32.xlu0 %v172, 48
  %v1083 = vpop.permute.xlu0 %1082
  %1084 = vrot.lane.b32.xlu0 %v177, 48
  %v1085 = vpop.permute.xlu0 %1084
  %1086 = vrot.lane.b32.xlu0 %v182, 48
  %v1087 = vpop.permute.xlu0 %1086
  %v1093 = vsel %vm75, %v1072, 0
  %v1096 = vsel %vm75, %v1073, 0
  %v1099 = vsel %vm75, %v1074, 0
  %v1102 = vsel %vm75, %v1075, 0
  %1104 = vmatprep.subr.mxu0 0.0
  %1105 = vmatpush1.msra.mxu0 %v1081
  %1106 = vmatprep.subr.mxu0 0.0
  %1107 = vmatpush1.msra.mxu0 %v1083
  %1108 = vmatprep.subr.mxu0 0.0
  %1109 = vmatpush1.msra.mxu0 %v1085
  %1110 = vmatprep.subr.mxu0 0.0
  %1111 = vmatpush1.msra.mxu0 %v1087
  %1112 = vmatprep.subr.mxu0 0.0
  %1113 = vmatpush1.msra.mxu0 0.0
  %1114 = vmatprep.subr.mxu0 0.0
  %1115 = vmatpush1.msra.mxu0 0.0
  %1116 = vmatprep.subr.mxu0 0.0
  %1117 = vmatpush1.msra.mxu0 0.0
  %1118 = vmatprep.subr.mxu0 0.0
  %1119 = vmatpush1.msra.mxu0 0.0
  %1120 = vmatprep.subr.mxu0 0.0
  %1121 = vmatpush1.msra.mxu0 0.0
  %1122 = vmatprep.subr.mxu0 0.0
  %1123 = vmatpush1.msra.mxu0 0.0
  %1124 = vmatprep.subr.mxu0 0.0
  %1125 = vmatpush1.msra.mxu0 0.0
  %1126 = vmatprep.subr.mxu0 0.0
  %1127 = vmatpush1.msra.mxu0 0.0
  %1128 = vmatprep.subr.mxu0 0.0
  %1129 = vmatpush1.msra.mxu0 0.0
  %1130 = vmatprep.subr.mxu0 0.0
  %1131 = vmatpush1.msra.mxu0 0.0
  %1132 = vmatprep.subr.mxu0 0.0
  %1133 = vmatpush1.msra.mxu0 0.0
  %1134 = vmatprep.subr.mxu0 0.0
  %1135 = vmatpush1.msra.mxu0 0.0
  %1136 = vmatprep.subr.mxu0 0.0
  %1137 = vmatpush1.msra.mxu0 0.0
  %1138 = vmatprep.subr.mxu0 0.0
  %1139 = vmatpush1.msra.mxu0 0.0
  %1140 = vmatprep.subr.mxu0 0.0
  %1141 = vmatpush1.msra.mxu0 0.0
  %1142 = vmatprep.subr.mxu0 0.0
  %1143 = vmatpush1.msra.mxu0 0.0
  %1144 = vmatprep.subr.mxu0 0.0
  %1145 = vmatpush1.msra.mxu0 0.0
  %1146 = vmatprep.subr.mxu0 0.0
  %1147 = vmatpush1.msra.mxu0 0.0
  %1148 = vmatprep.subr.mxu0 0.0
  %1149 = vmatpush1.msra.mxu0 0.0
  %1150 = vmatprep.subr.mxu0 0.0
  %1151 = vmatpush1.msra.mxu0 0.0
  %1152 = vmatprep.subr.mxu0 0.0
  %1153 = vmatpush1.msra.mxu0 0.0
  %1154 = vmatprep.subr.mxu0 0.0
  %1155 = vmatpush1.msra.mxu0 0.0
  %1156 = vmatprep.subr.mxu0 0.0
  %1157 = vmatpush1.msra.mxu0 0.0
  %1158 = vmatprep.subr.mxu0 0.0
  %1159 = vmatpush1.msra.mxu0 0.0
  %1160 = vmatprep.subr.mxu0 0.0
  %1161 = vmatpush1.msra.mxu0 0.0
  %1162 = vmatprep.subr.mxu0 0.0
  %1163 = vmatpush1.msra.mxu0 0.0
  %1164 = vmatprep.subr.mxu0 0.0
  %1165 = vmatpush1.msra.mxu0 0.0
  %1166 = vmatprep.subr.mxu0 0.0
  %1167 = vmatpush1.msra.mxu0 0.0
  %1168 = vmatprep.mubr.f32.mxu0 0.0
  %1169 = vmatmul.mubr.f32.gmra.mrb[0].mxu0 %v1093
  %v1170 = vpop.f32.mrb[0].mxu0
  %v1171 = vadd.f32 0.0, %v1170
  %v1172 = vpop.f32.mrb[0].mxu0
  %1173 = vmatprep.mubr.f32.mxu0 0.0
  %1174 = vmatmul.mubr.f32.gmra.mrb[0].mxu0 %v1096
  %v1175 = vpop.f32.mrb[0].mxu0
  %v1176 = vadd.f32 0.0, %v1175
  %v1177 = vpop.f32.mrb[0].mxu0
  %1178 = vmatprep.mubr.f32.mxu0 0.0
  %1179 = vmatmul.mubr.f32.gmra.mrb[0].mxu0 %v1099
  %v1180 = vpop.f32.mrb[0].mxu0
  %v1181 = vadd.f32 0.0, %v1180
  %v1182 = vpop.f32.mrb[0].mxu0
  %1183 = vmatprep.mubr.f32.mxu0 0.0
  %1184 = vmatmul.mubr.f32.gmra.mrb[0].mxu0 %v1102
  %v1185 = vpop.f32.mrb[0].mxu0
  %v1186 = vadd.f32 0.0, %v1185
  %v1187 = vpop.f32.mrb[0].mxu0
  %1188 = vdwg.mxu0
  %1189 = vrot.lane.b32.xlu0 %v187, 48
  %v1190 = vpop.permute.xlu0 %1189
  %1191 = vrot.lane.b32.xlu0 %v192, 48
  %v1192 = vpop.permute.xlu0 %1191
  %1193 = vrot.lane.b32.xlu0 %v197, 48
  %v1194 = vpop.permute.xlu0 %1193
  %1195 = vrot.lane.b32.xlu0 %v202, 48
  %v1196 = vpop.permute.xlu0 %1195
  %v1202 = vsel %vm75, %v1076, 0
  %v1205 = vsel %vm75, %v1077, 0
  %v1208 = vsel %vm75, %v1078, 0
  %v1211 = vsel %vm75, %v1079, 0
  %1213 = vmatprep.subr.mxu0 0.0
  %1214 = vmatpush1.msra.mxu0 %v1190
  %1215 = vmatprep.subr.mxu0 0.0
  %1216 = vmatpush1.msra.mxu0 %v1192
  %1217 = vmatprep.subr.mxu0 0.0
  %1218 = vmatpush1.msra.mxu0 %v1194
  %1219 = vmatprep.subr.mxu0 0.0
  %1220 = vmatpush1.msra.mxu0 %v1196
  %1221 = vmatprep.subr.mxu0 0.0
  %1222 = vmatpush1.msra.mxu0 0.0
  %1223 = vmatprep.subr.mxu0 0.0
  %1224 = vmatpush1.msra.mxu0 0.0
  %1225 = vmatprep.subr.mxu0 0.0
  %1226 = vmatpush1.msra.mxu0 0.0
  %1227 = vmatprep.subr.mxu0 0.0
  %1228 = vmatpush1.msra.mxu0 0.0
  %1229 = vmatprep.subr.mxu0 0.0
  %1230 = vmatpush1.msra.mxu0 0.0
  %1231 = vmatprep.subr.mxu0 0.0
  %1232 = vmatpush1.msra.mxu0 0.0
  %1233 = vmatprep.subr.mxu0 0.0
  %1234 = vmatpush1.msra.mxu0 0.0
  %1235 = vmatprep.subr.mxu0 0.0
  %1236 = vmatpush1.msra.mxu0 0.0
  %1237 = vmatprep.subr.mxu0 0.0
  %1238 = vmatpush1.msra.mxu0 0.0
  %1239 = vmatprep.subr.mxu0 0.0
  %1240 = vmatpush1.msra.mxu0 0.0
  %1241 = vmatprep.subr.mxu0 0.0
  %1242 = vmatpush1.msra.mxu0 0.0
  %1243 = vmatprep.subr.mxu0 0.0
  %1244 = vmatpush1.msra.mxu0 0.0
  %1245 = vmatprep.subr.mxu0 0.0
  %1246 = vmatpush1.msra.mxu0 0.0
  %1247 = vmatprep.subr.mxu0 0.0
  %1248 = vmatpush1.msra.mxu0 0.0
  %1249 = vmatprep.subr.mxu0 0.0
  %1250 = vmatpush1.msra.mxu0 0.0
  %1251 = vmatprep.subr.mxu0 0.0
  %1252 = vmatpush1.msra.mxu0 0.0
  %1253 = vmatprep.subr.mxu0 0.0
  %1254 = vmatpush1.msra.mxu0 0.0
  %1255 = vmatprep.subr.mxu0 0.0
  %1256 = vmatpush1.msra.mxu0 0.0
  %1257 = vmatprep.subr.mxu0 0.0
  %1258 = vmatpush1.msra.mxu0 0.0
  %1259 = vmatprep.subr.mxu0 0.0
  %1260 = vmatpush1.msra.mxu0 0.0
  %1261 = vmatprep.subr.mxu0 0.0
  %1262 = vmatpush1.msra.mxu0 0.0
  %1263 = vmatprep.subr.mxu0 0.0
  %1264 = vmatpush1.msra.mxu0 0.0
  %1265 = vmatprep.subr.mxu0 0.0
  %1266 = vmatpush1.msra.mxu0 0.0
  %1267 = vmatprep.subr.mxu0 0.0
  %1268 = vmatpush1.msra.mxu0 0.0
  %1269 = vmatprep.subr.mxu0 0.0
  %1270 = vmatpush1.msra.mxu0 0.0
  %1271 = vmatprep.subr.mxu0 0.0
  %1272 = vmatpush1.msra.mxu0 0.0
  %1273 = vmatprep.subr.mxu0 0.0
  %1274 = vmatpush1.msra.mxu0 0.0
  %1275 = vmatprep.subr.mxu0 0.0
  %1276 = vmatpush1.msra.mxu0 0.0
  %1277 = vmatprep.mubr.f32.mxu0 0.0
  %1278 = vmatmul.mubr.f32.gmra.mrb[0].mxu0 %v1202
  %v1279 = vpop.f32.mrb[0].mxu0
  %v1280 = vadd.f32 0.0, %v1279
  %v1281 = vpop.f32.mrb[0].mxu0
  %1282 = vmatprep.mubr.f32.mxu0 0.0
  %1283 = vmatmul.mubr.f32.gmra.mrb[0].mxu0 %v1205
  %v1284 = vpop.f32.mrb[0].mxu0
  %v1285 = vadd.f32 0.0, %v1284
  %v1286 = vpop.f32.mrb[0].mxu0
  %1287 = vmatprep.mubr.f32.mxu0 0.0
  %1288 = vmatmul.mubr.f32.gmra.mrb[0].mxu0 %v1208
  %v1289 = vpop.f32.mrb[0].mxu0
  %v1290 = vadd.f32 0.0, %v1289
  %v1291 = vpop.f32.mrb[0].mxu0
  %1292 = vmatprep.mubr.f32.mxu0 0.0
  %1293 = vmatmul.mubr.f32.gmra.mrb[0].mxu0 %v1211
  %v1294 = vpop.f32.mrb[0].mxu0
  %v1295 = vadd.f32 0.0, %v1294
  %v1296 = vpop.f32.mrb[0].mxu0
  %1297 = vdwg.mxu0
  %v1299 = vsel %vm221, %v1171, 0
  %v1302 = vsel %vm221, %v1176, 0
  %v1305 = vsel %vm221, %v1181, 0
  %v1308 = vsel %vm221, %v1186, 0
  %v1311 = vsel %vm221, %v1280, 0
  %v1314 = vsel %vm221, %v1285, 0
  %v1317 = vsel %vm221, %v1290, 0
  %v1320 = vsel %vm221, %v1295, 0
  %1322 = vmatprep.subr.mxu0 0.0
  %1323 = vmatpush1.msra.mxu0 %v207
  %1324 = vmatprep.subr.mxu0 0.0
  %1325 = vmatpush1.msra.mxu0 %v208
  %1326 = vmatprep.subr.mxu0 0.0
  %1327 = vmatpush1.msra.mxu0 0.0
  %1328 = vmatprep.subr.mxu0 0.0
  %1329 = vmatpush1.msra.mxu0 0.0
  %1330 = vmatprep.subr.mxu0 0.0
  %1331 = vmatpush1.msra.mxu0 0.0
  %1332 = vmatprep.subr.mxu0 0.0
  %1333 = vmatpush1.msra.mxu0 0.0
  %1334 = vmatprep.subr.mxu0 0.0
  %1335 = vmatpush1.msra.mxu0 0.0
  %1336 = vmatprep.subr.mxu0 0.0
  %1337 = vmatpush1.msra.mxu0 0.0
  %1338 = vmatprep.subr.mxu0 0.0
  %1339 = vmatpush1.msra.mxu0 0.0
  %1340 = vmatprep.subr.mxu0 0.0
  %1341 = vmatpush1.msra.mxu0 0.0
  %1342 = vmatprep.subr.mxu0 0.0
  %1343 = vmatpush1.msra.mxu0 0.0
  %1344 = vmatprep.subr.mxu0 0.0
  %1345 = vmatpush1.msra.mxu0 0.0
  %1346 = vmatprep.subr.mxu0 0.0
  %1347 = vmatpush1.msra.mxu0 0.0
  %1348 = vmatprep.subr.mxu0 0.0
  %1349 = vmatpush1.msra.mxu0 0.0
  %1350 = vmatprep.subr.mxu0 0.0
  %1351 = vmatpush1.msra.mxu0 0.0
  %1352 = vmatprep.subr.mxu0 0.0
  %1353 = vmatpush1.msra.mxu0 0.0
  %1354 = vmatprep.subr.mxu0 0.0
  %1355 = vmatpush1.msra.mxu0 0.0
  %1356 = vmatprep.subr.mxu0 0.0
  %1357 = vmatpush1.msra.mxu0 0.0
  %1358 = vmatprep.subr.mxu0 0.0
  %1359 = vmatpush1.msra.mxu0 0.0
  %1360 = vmatprep.subr.mxu0 0.0
  %1361 = vmatpush1.msra.mxu0 0.0
  %1362 = vmatprep.subr.mxu0 0.0
  %1363 = vmatpush1.msra.mxu0 0.0
  %1364 = vmatprep.subr.mxu0 0.0
  %1365 = vmatpush1.msra.mxu0 0.0
  %1366 = vmatprep.subr.mxu0 0.0
  %1367 = vmatpush1.msra.mxu0 0.0
  %1368 = vmatprep.subr.mxu0 0.0
  %1369 = vmatpush1.msra.mxu0 0.0
  %1370 = vmatprep.subr.mxu0 0.0
  %1371 = vmatpush1.msra.mxu0 0.0
  %1372 = vmatprep.subr.mxu0 0.0
  %1373 = vmatpush1.msra.mxu0 0.0
  %1374 = vmatprep.subr.mxu0 0.0
  %1375 = vmatpush1.msra.mxu0 0.0
  %1376 = vmatprep.subr.mxu0 0.0
  %1377 = vmatpush1.msra.mxu0 0.0
  %1378 = vmatprep.subr.mxu0 0.0
  %1379 = vmatpush1.msra.mxu0 0.0
  %1380 = vmatprep.subr.mxu0 0.0
  %1381 = vmatpush1.msra.mxu0 0.0
  %1382 = vmatprep.subr.mxu0 0.0
  %1383 = vmatpush1.msra.mxu0 0.0
  %1384 = vmatprep.subr.mxu0 0.0
  %1385 = vmatpush1.msra.mxu0 0.0
  %1386 = vmatprep.mubr.f32.mxu0 0.0
  %1387 = vmatmul.mubr.f32.gmra.mrb[0].mxu0 %v1299
  %v1388 = vpop.f32.mrb[0].mxu0
  %v1389 = vadd.f32 0.0, %v1388
  %v1390 = vpop.f32.mrb[0].mxu0
  %1391 = vmatprep.mubr.f32.mxu0 0.0
  %1392 = vmatmul.mubr.f32.gmra.mrb[0].mxu0 %v1302
  %v1393 = vpop.f32.mrb[0].mxu0
  %v1394 = vadd.f32 0.0, %v1393
  %v1395 = vpop.f32.mrb[0].mxu0
  %1396 = vmatprep.mubr.f32.mxu0 0.0
  %1397 = vmatmul.mubr.f32.gmra.mrb[0].mxu0 %v1305
  %v1398 = vpop.f32.mrb[0].mxu0
  %v1399 = vadd.f32 0.0, %v1398
  %v1400 = vpop.f32.mrb[0].mxu0
  %1401 = vmatprep.mubr.f32.mxu0 0.0
  %1402 = vmatmul.mubr.f32.gmra.mrb[0].mxu0 %v1308
  %v1403 = vpop.f32.mrb[0].mxu0
  %v1404 = vadd.f32 0.0, %v1403
  %v1405 = vpop.f32.mrb[0].mxu0
  %1406 = vmatprep.mubr.f32.mxu0 0.0
  %1407 = vmatmul.mubr.f32.gmra.mrb[0].mxu0 %v1311
  %v1408 = vpop.f32.mrb[0].mxu0
  %v1409 = vadd.f32 0.0, %v1408
  %v1410 = vpop.f32.mrb[0].mxu0
  %1411 = vmatprep.mubr.f32.mxu0 0.0
  %1412 = vmatmul.mubr.f32.gmra.mrb[0].mxu0 %v1314
  %v1413 = vpop.f32.mrb[0].mxu0
  %v1414 = vadd.f32 0.0, %v1413
  %v1415 = vpop.f32.mrb[0].mxu0
  %1416 = vmatprep.mubr.f32.mxu0 0.0
  %1417 = vmatmul.mubr.f32.gmra.mrb[0].mxu0 %v1317
  %v1418 = vpop.f32.mrb[0].mxu0
  %v1419 = vadd.f32 0.0, %v1418
  %v1420 = vpop.f32.mrb[0].mxu0
  %1421 = vmatprep.mubr.f32.mxu0 0.0
  %1422 = vmatmul.mubr.f32.gmra.mrb[0].mxu0 %v1320
  %v1423 = vpop.f32.mrb[0].mxu0
  %v1424 = vadd.f32 0.0, %v1423
  %v1425 = vpop.f32.mrb[0].mxu0
  %1426 = vdwg.mxu0
  %v1428 = vsel %vm221, %v623, 0
  %v1431 = vsel %vm221, %v628, 0
  %v1434 = vsel %vm221, %v633, 0
  %v1437 = vsel %vm221, %v638, 0
  %v1440 = vsel %vm221, %v732, 0
  %v1443 = vsel %vm221, %v737, 0
  %v1446 = vsel %vm221, %v742, 0
  %v1449 = vsel %vm221, %v747, 0
  %1451 = vmatprep.subr.mxu0 0.0
  %1452 = vmatpush1.msra.mxu0 %v205
  %1453 = vmatprep.subr.mxu0 0.0
  %1454 = vmatpush1.msra.mxu0 %v206
  %1455 = vmatprep.subr.mxu0 0.0
  %1456 = vmatpush1.msra.mxu0 0.0
  %1457 = vmatprep.subr.mxu0 0.0
  %1458 = vmatpush1.msra.mxu0 0.0
  %1459 = vmatprep.subr.mxu0 0.0
  %1460 = vmatpush1.msra.mxu0 0.0
  %1461 = vmatprep.subr.mxu0 0.0
  %1462 = vmatpush1.msra.mxu0 0.0
  %1463 = vmatprep.subr.mxu0 0.0
  %1464 = vmatpush1.msra.mxu0 0.0
  %1465 = vmatprep.subr.mxu0 0.0
  %1466 = vmatpush1.msra.mxu0 0.0
  %1467 = vmatprep.subr.mxu0 0.0
  %1468 = vmatpush1.msra.mxu0 0.0
  %1469 = vmatprep.subr.mxu0 0.0
  %1470 = vmatpush1.msra.mxu0 0.0
  %1471 = vmatprep.subr.mxu0 0.0
  %1472 = vmatpush1.msra.mxu0 0.0
  %1473 = vmatprep.subr.mxu0 0.0
  %1474 = vmatpush1.msra.mxu0 0.0
  %1475 = vmatprep.subr.mxu0 0.0
  %1476 = vmatpush1.msra.mxu0 0.0
  %1477 = vmatprep.subr.mxu0 0.0
  %1478 = vmatpush1.msra.mxu0 0.0
  %1479 = vmatprep.subr.mxu0 0.0
  %1480 = vmatpush1.msra.mxu0 0.0
  %1481 = vmatprep.subr.mxu0 0.0
  %1482 = vmatpush1.msra.mxu0 0.0
  %1483 = vmatprep.subr.mxu0 0.0
  %1484 = vmatpush1.msra.mxu0 0.0
  %1485 = vmatprep.subr.mxu0 0.0
  %1486 = vmatpush1.msra.mxu0 0.0
  %1487 = vmatprep.subr.mxu0 0.0
  %1488 = vmatpush1.msra.mxu0 0.0
  %1489 = vmatprep.subr.mxu0 0.0
  %1490 = vmatpush1.msra.mxu0 0.0
  %1491 = vmatprep.subr.mxu0 0.0
  %1492 = vmatpush1.msra.mxu0 0.0
  %1493 = vmatprep.subr.mxu0 0.0
  %1494 = vmatpush1.msra.mxu0 0.0
  %1495 = vmatprep.subr.mxu0 0.0
  %1496 = vmatpush1.msra.mxu0 0.0
  %1497 = vmatprep.subr.mxu0 0.0
  %1498 = vmatpush1.msra.mxu0 0.0
  %1499 = vmatprep.subr.mxu0 0.0
  %1500 = vmatpush1.msra.mxu0 0.0
  %1501 = vmatprep.subr.mxu0 0.0
  %1502 = vmatpush1.msra.mxu0 0.0
  %1503 = vmatprep.subr.mxu0 0.0
  %1504 = vmatpush1.msra.mxu0 0.0
  %1505 = vmatprep.subr.mxu0 0.0
  %1506 = vmatpush1.msra.mxu0 0.0
  %1507 = vmatprep.subr.mxu0 0.0
  %1508 = vmatpush1.msra.mxu0 0.0
  %1509 = vmatprep.subr.mxu0 0.0
  %1510 = vmatpush1.msra.mxu0 0.0
  %1511 = vmatprep.subr.mxu0 0.0
  %1512 = vmatpush1.msra.mxu0 0.0
  %1513 = vmatprep.subr.mxu0 0.0
  %1514 = vmatpush1.msra.mxu0 0.0
  %1515 = vmatprep.mubr.f32.mxu0 0.0
  %1516 = vmatmul.mubr.f32.gmra.mrb[0].mxu0 %v1428
  %v1517 = vpop.f32.mrb[0].mxu0
  %v1518 = vadd.f32 %v1389, %v1517
  %v1519 = vpop.f32.mrb[0].mxu0
  %1520 = vmatprep.mubr.f32.mxu0 0.0
  %1521 = vmatmul.mubr.f32.gmra.mrb[0].mxu0 %v1431
  %v1522 = vpop.f32.mrb[0].mxu0
  %v1523 = vadd.f32 %v1394, %v1522
  %v1524 = vpop.f32.mrb[0].mxu0
  %1525 = vmatprep.mubr.f32.mxu0 0.0
  %1526 = vmatmul.mubr.f32.gmra.mrb[0].mxu0 %v1434
  %v1527 = vpop.f32.mrb[0].mxu0
  %v1528 = vadd.f32 %v1399, %v1527
  %v1529 = vpop.f32.mrb[0].mxu0
  %1530 = vmatprep.mubr.f32.mxu0 0.0
  %1531 = vmatmul.mubr.f32.gmra.mrb[0].mxu0 %v1437
  %v1532 = vpop.f32.mrb[0].mxu0
  %v1533 = vadd.f32 %v1404, %v1532
  %v1534 = vpop.f32.mrb[0].mxu0
  %1535 = vmatprep.mubr.f32.mxu0 0.0
  %1536 = vmatmul.mubr.f32.gmra.mrb[0].mxu0 %v1440
  %v1537 = vpop.f32.mrb[0].mxu0
  %v1538 = vadd.f32 %v1409, %v1537
  %v1539 = vpop.f32.mrb[0].mxu0
  %1540 = vmatprep.mubr.f32.mxu0 0.0
  %1541 = vmatmul.mubr.f32.gmra.mrb[0].mxu0 %v1443
  %v1542 = vpop.f32.mrb[0].mxu0
  %v1543 = vadd.f32 %v1414, %v1542
  %v1544 = vpop.f32.mrb[0].mxu0
  %1545 = vmatprep.mubr.f32.mxu0 0.0
  %1546 = vmatmul.mubr.f32.gmra.mrb[0].mxu0 %v1446
  %v1547 = vpop.f32.mrb[0].mxu0
  %v1548 = vadd.f32 %v1419, %v1547
  %v1549 = vpop.f32.mrb[0].mxu0
  %1550 = vmatprep.mubr.f32.mxu0 0.0
  %1551 = vmatmul.mubr.f32.gmra.mrb[0].mxu0 %v1449
  %v1552 = vpop.f32.mrb[0].mxu0
  %v1553 = vadd.f32 %v1424, %v1552
  %v1554 = vpop.f32.mrb[0].mxu0
  %1555 = vdwg.mxu0
  %v1556 = vld [vmem:[%s4] sm:$0x1]
  %v1558 = vlaneseq
  %v1559 = vshrl.u32 %v1558, 7
  %v1560 = vsub.s32 0, %v1559
  %v1561 = vrot.slane %v1556, %v1560
  %v1563 = vadd.f32 %v1518, %v1561
  %v1564 = vadd.f32 %v1523, %v1561
  %v1565 = vadd.f32 %v1528, %v1561
  %v1566 = vadd.f32 %v1533, %v1561
  %v1567 = vadd.f32 %v1538, %v1561
  %v1568 = vadd.f32 %v1543, %v1561
  %v1569 = vadd.f32 %v1548, %v1561
  %v1570 = vadd.f32 %v1553, %v1561
  %v1571 = vadd.f32 %v56, %v1563
  %v1572 = vadd.f32 %v57, %v1564
  %v1573 = vadd.f32 %v58, %v1565
  %v1574 = vadd.f32 %v59, %v1566
  %v1575 = vadd.f32 %v60, %v1567
  %v1576 = vadd.f32 %v61, %v1568
  %v1577 = vadd.f32 %v62, %v1569
  %v1578 = vadd.f32 %v63, %v1570
  %v1579 = vld [vmem:[%s5] sm:$0x1]
  %v1580 = vld [vmem:[%s6] sm:$0x1]
  %v1581 = vsel %vm75, %v1571, 0.0
  %1582 = vadd.xlane.f32.xlu0 %v1581
  %v1583 = vpop.xlane.xlu0 %1582
  %v1584 = vsel %vm75, %v1572, 0.0
  %1585 = vadd.xlane.f32.xlu0 %v1584
  %v1586 = vpop.xlane.xlu0 %1585
  %v1587 = vsel %vm75, %v1573, 0.0
  %1588 = vadd.xlane.f32.xlu0 %v1587
  %v1589 = vpop.xlane.xlu0 %1588
  %v1590 = vsel %vm75, %v1574, 0.0
  %1591 = vadd.xlane.f32.xlu0 %v1590
  %v1592 = vpop.xlane.xlu0 %1591
  %v1593 = vsel %vm75, %v1575, 0.0
  %1594 = vadd.xlane.f32.xlu0 %v1593
  %v1595 = vpop.xlane.xlu0 %1594
  %v1596 = vsel %vm75, %v1576, 0.0
  %1597 = vadd.xlane.f32.xlu0 %v1596
  %v1598 = vpop.xlane.xlu0 %1597
  %v1599 = vsel %vm75, %v1577, 0.0
  %1600 = vadd.xlane.f32.xlu0 %v1599
  %v1601 = vpop.xlane.xlu0 %1600
  %v1602 = vsel %vm75, %v1578, 0.0
  %1603 = vadd.xlane.f32.xlu0 %v1602
  %v1604 = vpop.xlane.xlu0 %1603
  %v1605 = vrcp.pop 32.0
  %v1606 = vmul.f32 %v1583, %v1605
  %v1607 = vmul.f32 %v1586, %v1605
  %v1608 = vmul.f32 %v1589, %v1605
  %v1609 = vmul.f32 %v1592, %v1605
  %v1610 = vmul.f32 %v1595, %v1605
  %v1611 = vmul.f32 %v1598, %v1605
  %v1612 = vmul.f32 %v1601, %v1605
  %v1613 = vmul.f32 %v1604, %v1605
  %v1614 = vsub.f32 %v1571, %v1606
  %v1615 = vsub.f32 %v1572, %v1607
  %v1616 = vsub.f32 %v1573, %v1608
  %v1617 = vsub.f32 %v1574, %v1609
  %v1618 = vsub.f32 %v1575, %v1610
  %v1619 = vsub.f32 %v1576, %v1611
  %v1620 = vsub.f32 %v1577, %v1612
  %v1621 = vsub.f32 %v1578, %v1613
  %v1622 = vmul.f32 %v1614, %v1614
  %v1623 = vmul.f32 %v1615, %v1615
  %v1624 = vmul.f32 %v1616, %v1616
  %v1625 = vmul.f32 %v1617, %v1617
  %v1626 = vmul.f32 %v1618, %v1618
  %v1627 = vmul.f32 %v1619, %v1619
  %v1628 = vmul.f32 %v1620, %v1620
  %v1629 = vmul.f32 %v1621, %v1621
  %v1630 = vsel %vm75, %v1622, 0.0
  %1631 = vadd.xlane.f32.xlu0 %v1630
  %v1632 = vpop.xlane.xlu0 %1631
  %v1633 = vsel %vm75, %v1623, 0.0
  %1634 = vadd.xlane.f32.xlu0 %v1633
  %v1635 = vpop.xlane.xlu0 %1634
  %v1636 = vsel %vm75, %v1624, 0.0
  %1637 = vadd.xlane.f32.xlu0 %v1636
  %v1638 = vpop.xlane.xlu0 %1637
  %v1639 = vsel %vm75, %v1625, 0.0
  %1640 = vadd.xlane.f32.xlu0 %v1639
  %v1641 = vpop.xlane.xlu0 %1640
  %v1642 = vsel %vm75, %v1626, 0.0
  %1643 = vadd.xlane.f32.xlu0 %v1642
  %v1644 = vpop.xlane.xlu0 %1643
  %v1645 = vsel %vm75, %v1627, 0.0
  %1646 = vadd.xlane.f32.xlu0 %v1645
  %v1647 = vpop.xlane.xlu0 %1646
  %v1648 = vsel %vm75, %v1628, 0.0
  %1649 = vadd.xlane.f32.xlu0 %v1648
  %v1650 = vpop.xlane.xlu0 %1649
  %v1651 = vsel %vm75, %v1629, 0.0
  %1652 = vadd.xlane.f32.xlu0 %v1651
  %v1653 = vpop.xlane.xlu0 %1652
  %v1654 = vmul.f32 %v1632, %v1605
  %v1655 = vmul.f32 %v1635, %v1605
  %v1656 = vmul.f32 %v1638, %v1605
  %v1657 = vmul.f32 %v1641, %v1605
  %v1658 = vmul.f32 %v1644, %v1605
  %v1659 = vmul.f32 %v1647, %v1605
  %v1660 = vmul.f32 %v1650, %v1605
  %v1661 = vmul.f32 %v1653, %v1605
  %v1662 = vadd.f32 %v1654, 1e-05
  %v1663 = vadd.f32 %v1655, 1e-05
  %v1664 = vadd.f32 %v1656, 1e-05
  %v1665 = vadd.f32 %v1657, 1e-05
  %v1666 = vadd.f32 %v1658, 1e-05
  %v1667 = vadd.f32 %v1659, 1e-05
  %v1668 = vadd.f32 %v1660, 1e-05
  %v1669 = vadd.f32 %v1661, 1e-05
  %v1670 = vrsqrt.pop %v1662
  %v1671 = vrsqrt.pop %v1663
  %v1672 = vrsqrt.pop %v1664
  %v1673 = vrsqrt.pop %v1665
  %v1674 = vrsqrt.pop %v1666
  %v1675 = vrsqrt.pop %v1667
  %v1676 = vrsqrt.pop %v1668
  %v1677 = vrsqrt.pop %v1669
  %v1678 = vmul.f32 %v1614, %v1670
  %v1679 = vmul.f32 %v1615, %v1671
  %v1680 = vmul.f32 %v1616, %v1672
  %v1681 = vmul.f32 %v1617, %v1673
  %v1682 = vmul.f32 %v1618, %v1674
  %v1683 = vmul.f32 %v1619, %v1675
  %v1684 = vmul.f32 %v1620, %v1676
  %v1685 = vmul.f32 %v1621, %v1677
  %v1687 = vlaneseq
  %v1688 = vshrl.u32 %v1687, 7
  %v1689 = vsub.s32 0, %v1688
  %v1690 = vrot.slane %v1579, %v1689
  %v1692 = vmul.f32 %v1678, %v1690
  %v1693 = vmul.f32 %v1679, %v1690
  %v1694 = vmul.f32 %v1680, %v1690
  %v1695 = vmul.f32 %v1681, %v1690
  %v1696 = vmul.f32 %v1682, %v1690
  %v1697 = vmul.f32 %v1683, %v1690
  %v1698 = vmul.f32 %v1684, %v1690
  %v1699 = vmul.f32 %v1685, %v1690
  %v1701 = vlaneseq
  %v1702 = vshrl.u32 %v1701, 7
  %v1703 = vsub.s32 0, %v1702
  %v1704 = vrot.slane %v1580, %v1703
  %v1706 = vadd.f32 %v1692, %v1704
  %v1707 = vadd.f32 %v1693, %v1704
  %v1708 = vadd.f32 %v1694, %v1704
  %v1709 = vadd.f32 %v1695, %v1704
  %v1710 = vadd.f32 %v1696, %v1704
  %v1711 = vadd.f32 %v1697, %v1704
  %v1712 = vadd.f32 %v1698, %v1704
  %v1713 = vadd.f32 %v1699, %v1704
  %v1714 = vld [vmem:[%s7] sm:$0xff]
  %v1715 = vld [vmem:[%s7 + $0x8] sm:$0xff]
  %v1716 = vld [vmem:[%s7 + $0x10] sm:$0xff]
  %v1717 = vld [vmem:[%s7 + $0x18] sm:$0xff]
  %v1718 = vld [vmem:[%s8] sm:$0x1]
  %v1720 = vlaneseq
  %v1721 = vshrl.u32 %v1720, 7
  %v1722 = vsub.s32 0, %v1721
  %v1723 = vrot.slane %v1718, %v1722
  %v1726 = vsel %vm75, %v1706, 0
  %v1729 = vsel %vm75, %v1707, 0
  %v1732 = vsel %vm75, %v1708, 0
  %v1735 = vsel %vm75, %v1709, 0
  %v1738 = vsel %vm75, %v1710, 0
  %v1741 = vsel %vm75, %v1711, 0
  %v1744 = vsel %vm75, %v1712, 0
  %v1747 = vsel %vm75, %v1713, 0
  %1749 = vmatprep.subr.mxu0 0.0
  %1750 = vmatpush1.msra.mxu0 %v1714
  %1751 = vmatprep.subr.mxu0 0.0
  %1752 = vmatpush1.msra.mxu0 %v1715
  %1753 = vmatprep.subr.mxu0 0.0
  %1754 = vmatpush1.msra.mxu0 %v1716
  %1755 = vmatprep.subr.mxu0 0.0
  %1756 = vmatpush1.msra.mxu0 %v1717
  %1757 = vmatprep.subr.mxu0 0.0
  %1758 = vmatpush1.msra.mxu0 0.0
  %1759 = vmatprep.subr.mxu0 0.0
  %1760 = vmatpush1.msra.mxu0 0.0
  %1761 = vmatprep.subr.mxu0 0.0
  %1762 = vmatpush1.msra.mxu0 0.0
  %1763 = vmatprep.subr.mxu0 0.0
  %1764 = vmatpush1.msra.mxu0 0.0
  %1765 = vmatprep.subr.mxu0 0.0
  %1766 = vmatpush1.msra.mxu0 0.0
  %1767 = vmatprep.subr.mxu0 0.0
  %1768 = vmatpush1.msra.mxu0 0.0
  %1769 = vmatprep.subr.mxu0 0.0
  %1770 = vmatpush1.msra.mxu0 0.0
  %1771 = vmatprep.subr.mxu0 0.0
  %1772 = vmatpush1.msra.mxu0 0.0
  %1773 = vmatprep.subr.mxu0 0.0
  %1774 = vmatpush1.msra.mxu0 0.0
  %1775 = vmatprep.subr.mxu0 0.0
  %1776 = vmatpush1.msra.mxu0 0.0
  %1777 = vmatprep.subr.mxu0 0.0
  %1778 = vmatpush1.msra.mxu0 0.0
  %1779 = vmatprep.subr.mxu0 0.0
  %1780 = vmatpush1.msra.mxu0 0.0
  %1781 = vmatprep.subr.mxu0 0.0
  %1782 = vmatpush1.msra.mxu0 0.0
  %1783 = vmatprep.subr.mxu0 0.0
  %1784 = vmatpush1.msra.mxu0 0.0
  %1785 = vmatprep.subr.mxu0 0.0
  %1786 = vmatpush1.msra.mxu0 0.0
  %1787 = vmatprep.subr.mxu0 0.0
  %1788 = vmatpush1.msra.mxu0 0.0
  %1789 = vmatprep.subr.mxu0 0.0
  %1790 = vmatpush1.msra.mxu0 0.0
  %1791 = vmatprep.subr.mxu0 0.0
  %1792 = vmatpush1.msra.mxu0 0.0
  %1793 = vmatprep.subr.mxu0 0.0
  %1794 = vmatpush1.msra.mxu0 0.0
  %1795 = vmatprep.subr.mxu0 0.0
  %1796 = vmatpush1.msra.mxu0 0.0
  %1797 = vmatprep.subr.mxu0 0.0
  %1798 = vmatpush1.msra.mxu0 0.0
  %1799 = vmatprep.subr.mxu0 0.0
  %1800 = vmatpush1.msra.mxu0 0.0
  %1801 = vmatprep.subr.mxu0 0.0
  %1802 = vmatpush1.msra.mxu0 0.0
  %1803 = vmatprep.subr.mxu0 0.0
  %1804 = vmatpush1.msra.mxu0 0.0
  %1805 = vmatprep.subr.mxu0 0.0
  %1806 = vmatpush1.msra.mxu0 0.0
  %1807 = vmatprep.subr.mxu0 0.0
  %1808 = vmatpush1.msra.mxu0 0.0
  %1809 = vmatprep.subr.mxu0 0.0
  %1810 = vmatpush1.msra.mxu0 0.0
  %1811 = vmatprep.subr.mxu0 0.0
  %1812 = vmatpush1.msra.mxu0 0.0
  %1813 = vmatprep.mubr.f32.mxu0 0.0
  %1814 = vmatmul.mubr.f32.gmra.mrb[0].mxu0 %v1726
  %v1815 = vpop.f32.mrb[0].mxu0
  %v1816 = vadd.f32 %v1723, %v1815
  %v1817 = vpop.f32.mrb[0].mxu0
  %1818 = vmatprep.mubr.f32.mxu0 0.0
  %1819 = vmatmul.mubr.f32.gmra.mrb[0].mxu0 %v1729
  %v1820 = vpop.f32.mrb[0].mxu0
  %v1821 = vadd.f32 %v1723, %v1820
  %v1822 = vpop.f32.mrb[0].mxu0
  %1823 = vmatprep.mubr.f32.mxu0 0.0
  %1824 = vmatmul.mubr.f32.gmra.mrb[0].mxu0 %v1732
  %v1825 = vpop.f32.mrb[0].mxu0
  %v1826 = vadd.f32 %v1723, %v1825
  %v1827 = vpop.f32.mrb[0].mxu0
  %1828 = vmatprep.mubr.f32.mxu0 0.0
  %1829 = vmatmul.mubr.f32.gmra.mrb[0].mxu0 %v1735
  %v1830 = vpop.f32.mrb[0].mxu0
  %v1831 = vadd.f32 %v1723, %v1830
  %v1832 = vpop.f32.mrb[0].mxu0
  %1833 = vmatprep.mubr.f32.mxu0 0.0
  %1834 = vmatmul.mubr.f32.gmra.mrb[0].mxu0 %v1738
  %v1835 = vpop.f32.mrb[0].mxu0
  %v1836 = vadd.f32 %v1723, %v1835
  %v1837 = vpop.f32.mrb[0].mxu0
  %1838 = vmatprep.mubr.f32.mxu0 0.0
  %1839 = vmatmul.mubr.f32.gmra.mrb[0].mxu0 %v1741
  %v1840 = vpop.f32.mrb[0].mxu0
  %v1841 = vadd.f32 %v1723, %v1840
  %v1842 = vpop.f32.mrb[0].mxu0
  %1843 = vmatprep.mubr.f32.mxu0 0.0
  %1844 = vmatmul.mubr.f32.gmra.mrb[0].mxu0 %v1744
  %v1845 = vpop.f32.mrb[0].mxu0
  %v1846 = vadd.f32 %v1723, %v1845
  %v1847 = vpop.f32.mrb[0].mxu0
  %1848 = vmatprep.mubr.f32.mxu0 0.0
  %1849 = vmatmul.mubr.f32.gmra.mrb[0].mxu0 %v1747
  %v1850 = vpop.f32.mrb[0].mxu0
  %v1851 = vadd.f32 %v1723, %v1850
  %v1852 = vpop.f32.mrb[0].mxu0
  %1853 = vdwg.mxu0
  %v1854 = vmul.f32 %v1816, 0.5
  %v1855 = vmul.f32 %v1821, 0.5
  %v1856 = vmul.f32 %v1826, 0.5
  %v1857 = vmul.f32 %v1831, 0.5
  %v1858 = vmul.f32 %v1836, 0.5
  %v1859 = vmul.f32 %v1841, 0.5
  %v1860 = vmul.f32 %v1846, 0.5
  %v1861 = vmul.f32 %v1851, 0.5
  %v1862 = vmul.f32 %v1816, 0.044715
  %v1863 = vmul.f32 %v1821, 0.044715
  %v1864 = vmul.f32 %v1826, 0.044715
  %v1865 = vmul.f32 %v1831, 0.044715
  %v1866 = vmul.f32 %v1836, 0.044715
  %v1867 = vmul.f32 %v1841, 0.044715
  %v1868 = vmul.f32 %v1846, 0.044715
  %v1869 = vmul.f32 %v1851, 0.044715
  %v1870 = vmul.f32 %v1862, %v1816
  %v1871 = vmul.f32 %v1863, %v1821
  %v1872 = vmul.f32 %v1864, %v1826
  %v1873 = vmul.f32 %v1865, %v1831
  %v1874 = vmul.f32 %v1866, %v1836
  %v1875 = vmul.f32 %v1867, %v1841
  %v1876 = vmul.f32 %v1868, %v1846
  %v1877 = vmul.f32 %v1869, %v1851
  %v1878 = vmul.f32 %v1870, %v1816
  %v1879 = vmul.f32 %v1871, %v1821
  %v1880 = vmul.f32 %v1872, %v1826
  %v1881 = vmul.f32 %v1873, %v1831
  %v1882 = vmul.f32 %v1874, %v1836
  %v1883 = vmul.f32 %v1875, %v1841
  %v1884 = vmul.f32 %v1876, %v1846
  %v1885 = vmul.f32 %v1877, %v1851
  %v1886 = vadd.f32 %v1816, %v1878
  %v1887 = vadd.f32 %v1821, %v1879
  %v1888 = vadd.f32 %v1826, %v1880
  %v1889 = vadd.f32 %v1831, %v1881
  %v1890 = vadd.f32 %v1836, %v1882
  %v1891 = vadd.f32 %v1841, %v1883
  %v1892 = vadd.f32 %v1846, %v1884
  %v1893 = vadd.f32 %v1851, %v1885
  %v1894 = vmul.f32 %v1886, 0.7978846
  %v1895 = vmul.f32 %v1887, 0.7978846
  %v1896 = vmul.f32 %v1888, 0.7978846
  %v1897 = vmul.f32 %v1889, 0.7978846
  %v1898 = vmul.f32 %v1890, 0.7978846
  %v1899 = vmul.f32 %v1891, 0.7978846
  %v1900 = vmul.f32 %v1892, 0.7978846
  %v1901 = vmul.f32 %v1893, 0.7978846
  %v1902 = vtanh.pop %v1894
  %v1903 = vtanh.pop %v1895
  %v1904 = vtanh.pop %v1896
  %v1905 = vtanh.pop %v1897
  %v1906 = vtanh.pop %v1898
  %v1907 = vtanh.pop %v1899
  %v1908 = vtanh.pop %v1900
  %v1909 = vtanh.pop %v1901
  %v1910 = vadd.f32 %v1902, 1.0
  %v1911 = vadd.f32 %v1903, 1.0
  %v1912 = vadd.f32 %v1904, 1.0
  %v1913 = vadd.f32 %v1905, 1.0
  %v1914 = vadd.f32 %v1906, 1.0
  %v1915 = vadd.f32 %v1907, 1.0
  %v1916 = vadd.f32 %v1908, 1.0
  %v1917 = vadd.f32 %v1909, 1.0
  %v1918 = vmul.f32 %v1854, %v1910
  %v1919 = vmul.f32 %v1855, %v1911
  %v1920 = vmul.f32 %v1856, %v1912
  %v1921 = vmul.f32 %v1857, %v1913
  %v1922 = vmul.f32 %v1858, %v1914
  %v1923 = vmul.f32 %v1859, %v1915
  %v1924 = vmul.f32 %v1860, %v1916
  %v1925 = vmul.f32 %v1861, %v1917
  %v1926 = vld [vmem:[%s9] sm:$0xff]
  %v1927 = vld [vmem:[%s9 + $0x8] sm:$0xff]
  %v1928 = vld [vmem:[%s9 + $0x10] sm:$0xff]
  %v1929 = vld [vmem:[%s9 + $0x18] sm:$0xff]
  %v1930 = vld [vmem:[%s9 + $0x20] sm:$0xff]
  %v1931 = vld [vmem:[%s9 + $0x28] sm:$0xff]
  %v1932 = vld [vmem:[%s9 + $0x30] sm:$0xff]
  %v1933 = vld [vmem:[%s9 + $0x38] sm:$0xff]
  %v1934 = vld [vmem:[%s10] sm:$0x1]
  %v1936 = vlaneseq
  %v1937 = vshrl.u32 %v1936, 7
  %v1938 = vsub.s32 0, %v1937
  %v1939 = vrot.slane %v1934, %v1938
  %vm1941 = vcmask 523264
  %v1943 = vsel %vm1941, %v1918, 0
  %v1946 = vsel %vm1941, %v1919, 0
  %v1949 = vsel %vm1941, %v1920, 0
  %v1952 = vsel %vm1941, %v1921, 0
  %v1955 = vsel %vm1941, %v1922, 0
  %v1958 = vsel %vm1941, %v1923, 0
  %v1961 = vsel %vm1941, %v1924, 0
  %v1964 = vsel %vm1941, %v1925, 0
  %1966 = vmatprep.subr.mxu0 0.0
  %1967 = vmatpush1.msra.mxu0 %v1926
  %1968 = vmatprep.subr.mxu0 0.0
  %1969 = vmatpush1.msra.mxu0 %v1927
  %1970 = vmatprep.subr.mxu0 0.0
  %1971 = vmatpush1.msra.mxu0 %v1928
  %1972 = vmatprep.subr.mxu0 0.0
  %1973 = vmatpush1.msra.mxu0 %v1929
  %1974 = vmatprep.subr.mxu0 0.0
  %1975 = vmatpush1.msra.mxu0 %v1930
  %1976 = vmatprep.subr.mxu0 0.0
  %1977 = vmatpush1.msra.mxu0 %v1931
  %1978 = vmatprep.subr.mxu0 0.0
  %1979 = vmatpush1.msra.mxu0 %v1932
  %1980 = vmatprep.subr.mxu0 0.0
  %1981 = vmatpush1.msra.mxu0 %v1933
  %1982 = vmatprep.subr.mxu0 0.0
  %1983 = vmatpush1.msra.mxu0 0.0
  %1984 = vmatprep.subr.mxu0 0.0
  %1985 = vmatpush1.msra.mxu0 0.0
  %1986 = vmatprep.subr.mxu0 0.0
  %1987 = vmatpush1.msra.mxu0 0.0
  %1988 = vmatprep.subr.mxu0 0.0
  %1989 = vmatpush1.msra.mxu0 0.0
  %1990 = vmatprep.subr.mxu0 0.0
  %1991 = vmatpush1.msra.mxu0 0.0
  %1992 = vmatprep.subr.mxu0 0.0
  %1993 = vmatpush1.msra.mxu0 0.0
  %1994 = vmatprep.subr.mxu0 0.0
  %1995 = vmatpush1.msra.mxu0 0.0
  %1996 = vmatprep.subr.mxu0 0.0
  %1997 = vmatpush1.msra.mxu0 0.0
  %1998 = vmatprep.subr.mxu0 0.0
  %1999 = vmatpush1.msra.mxu0 0.0
  %2000 = vmatprep.subr.mxu0 0.0
  %2001 = vmatpush1.msra.mxu0 0.0
  %2002 = vmatprep.subr.mxu0 0.0
  %2003 = vmatpush1.msra.mxu0 0.0
  %2004 = vmatprep.subr.mxu0 0.0
  %2005 = vmatpush1.msra.mxu0 0.0
  %2006 = vmatprep.subr.mxu0 0.0
  %2007 = vmatpush1.msra.mxu0 0.0
  %2008 = vmatprep.subr.mxu0 0.0
  %2009 = vmatpush1.msra.mxu0 0.0
  %2010 = vmatprep.subr.mxu0 0.0
  %2011 = vmatpush1.msra.mxu0 0.0
  %2012 = vmatprep.subr.mxu0 0.0
  %2013 = vmatpush1.msra.mxu0 0.0
  %2014 = vmatprep.subr.mxu0 0.0
  %2015 = vmatpush1.msra.mxu0 0.0
  %2016 = vmatprep.subr.mxu0 0.0
  %2017 = vmatpush1.msra.mxu0 0.0
  %2018 = vmatprep.subr.mxu0 0.0
  %2019 = vmatpush1.msra.mxu0 0.0
  %2020 = vmatprep.subr.mxu0 0.0
  %2021 = vmatpush1.msra.mxu0 0.0
  %2022 = vmatprep.subr.mxu0 0.0
  %2023 = vmatpush1.msra.mxu0 0.0
  %2024 = vmatprep.subr.mxu0 0.0
  %2025 = vmatpush1.msra.mxu0 0.0
  %2026 = vmatprep.subr.mxu0 0.0
  %2027 = vmatpush1.msra.mxu0 0.0
  %2028 = vmatprep.subr.mxu0 0.0
  %2029 = vmatpush1.msra.mxu0 0.0
  %2030 = vmatprep.mubr.f32.mxu0 0.0
  %2031 = vmatmul.mubr.f32.gmra.mrb[0].mxu0 %v1943
  %v2032 = vpop.f32.mrb[0].mxu0
  %v2033 = vadd.f32 %v1939, %v2032
  %v2034 = vpop.f32.mrb[0].mxu0
  %2035 = vmatprep.mubr.f32.mxu0 0.0
  %2036 = vmatmul.mubr.f32.gmra.mrb[0].mxu0 %v1946
  %v2037 = vpop.f32.mrb[0].mxu0
  %v2038 = vadd.f32 %v1939, %v2037
  %v2039 = vpop.f32.mrb[0].mxu0
  %2040 = vmatprep.mubr.f32.mxu0 0.0
  %2041 = vmatmul.mubr.f32.gmra.mrb[0].mxu0 %v1949
  %v2042 = vpop.f32.mrb[0].mxu0
  %v2043 = vadd.f32 %v1939, %v2042
  %v2044 = vpop.f32.mrb[0].mxu0
  %2045 = vmatprep.mubr.f32.mxu0 0.0
  %2046 = vmatmul.mubr.f32.gmra.mrb[0].mxu0 %v1952
  %v2047 = vpop.f32.mrb[0].mxu0
  %v2048 = vadd.f32 %v1939, %v2047
  %v2049 = vpop.f32.mrb[0].mxu0
  %2050 = vmatprep.mubr.f32.mxu0 0.0
  %2051 = vmatmul.mubr.f32.gmra.mrb[0].mxu0 %v1955
  %v2052 = vpop.f32.mrb[0].mxu0
  %v2053 = vadd.f32 %v1939, %v2052
  %v2054 = vpop.f32.mrb[0].mxu0
  %2055 = vmatprep.mubr.f32.mxu0 0.0
  %2056 = vmatmul.mubr.f32.gmra.mrb[0].mxu0 %v1958
  %v2057 = vpop.f32.mrb[0].mxu0
  %v2058 = vadd.f32 %v1939, %v2057
  %v2059 = vpop.f32.mrb[0].mxu0
  %2060 = vmatprep.mubr.f32.mxu0 0.0
  %2061 = vmatmul.mubr.f32.gmra.mrb[0].mxu0 %v1961
  %v2062 = vpop.f32.mrb[0].mxu0
  %v2063 = vadd.f32 %v1939, %v2062
  %v2064 = vpop.f32.mrb[0].mxu0
  %2065 = vmatprep.mubr.f32.mxu0 0.0
  %2066 = vmatmul.mubr.f32.gmra.mrb[0].mxu0 %v1964
  %v2067 = vpop.f32.mrb[0].mxu0
  %v2068 = vadd.f32 %v1939, %v2067
  %v2069 = vpop.f32.mrb[0].mxu0
  %2070 = vdwg.mxu0
  %v2071 = vadd.f32 %v1706, %v2033
  %v2072 = vadd.f32 %v1707, %v2038
  %v2073 = vadd.f32 %v1708, %v2043
  %v2074 = vadd.f32 %v1709, %v2048
  %v2075 = vadd.f32 %v1710, %v2053
  %v2076 = vadd.f32 %v1711, %v2058
  %v2077 = vadd.f32 %v1712, %v2063
  %v2078 = vadd.f32 %v1713, %v2068
  %v2079 = vld [vmem:[%s11] sm:$0x1]
  %v2080 = vld [vmem:[%s12] sm:$0x1]
  %v2081 = vsel %vm75, %v2071, 0.0
  %2082 = vadd.xlane.f32.xlu0 %v2081
  %v2083 = vpop.xlane.xlu0 %2082
  %v2084 = vsel %vm75, %v2072, 0.0
  %2085 = vadd.xlane.f32.xlu0 %v2084
  %v2086 = vpop.xlane.xlu0 %2085
  %v2087 = vsel %vm75, %v2073, 0.0
  %2088 = vadd.xlane.f32.xlu0 %v2087
  %v2089 = vpop.xlane.xlu0 %2088
  %v2090 = vsel %vm75, %v2074, 0.0
  %2091 = vadd.xlane.f32.xlu0 %v2090
  %v2092 = vpop.xlane.xlu0 %2091
  %v2093 = vsel %vm75, %v2075, 0.0
  %2094 = vadd.xlane.f32.xlu0 %v2093
  %v2095 = vpop.xlane.xlu0 %2094
  %v2096 = vsel %vm75, %v2076, 0.0
  %2097 = vadd.xlane.f32.xlu0 %v2096
  %v2098 = vpop.xlane.xlu0 %2097
  %v2099 = vsel %vm75, %v2077, 0.0
  %2100 = vadd.xlane.f32.xlu0 %v2099
  %v2101 = vpop.xlane.xlu0 %2100
  %v2102 = vsel %vm75, %v2078, 0.0
  %2103 = vadd.xlane.f32.xlu0 %v2102
  %v2104 = vpop.xlane.xlu0 %2103
  %v2105 = vmul.f32 %v2083, %v1605
  %v2106 = vmul.f32 %v2086, %v1605
  %v2107 = vmul.f32 %v2089, %v1605
  %v2108 = vmul.f32 %v2092, %v1605
  %v2109 = vmul.f32 %v2095, %v1605
  %v2110 = vmul.f32 %v2098, %v1605
  %v2111 = vmul.f32 %v2101, %v1605
  %v2112 = vmul.f32 %v2104, %v1605
  %v2113 = vsub.f32 %v2071, %v2105
  %v2114 = vsub.f32 %v2072, %v2106
  %v2115 = vsub.f32 %v2073, %v2107
  %v2116 = vsub.f32 %v2074, %v2108
  %v2117 = vsub.f32 %v2075, %v2109
  %v2118 = vsub.f32 %v2076, %v2110
  %v2119 = vsub.f32 %v2077, %v2111
  %v2120 = vsub.f32 %v2078, %v2112
  %v2121 = vmul.f32 %v2113, %v2113
  %v2122 = vmul.f32 %v2114, %v2114
  %v2123 = vmul.f32 %v2115, %v2115
  %v2124 = vmul.f32 %v2116, %v2116
  %v2125 = vmul.f32 %v2117, %v2117
  %v2126 = vmul.f32 %v2118, %v2118
  %v2127 = vmul.f32 %v2119, %v2119
  %v2128 = vmul.f32 %v2120, %v2120
  %v2129 = vsel %vm75, %v2121, 0.0
  %2130 = vadd.xlane.f32.xlu0 %v2129
  %v2131 = vpop.xlane.xlu0 %2130
  %v2132 = vsel %vm75, %v2122, 0.0
  %2133 = vadd.xlane.f32.xlu0 %v2132
  %v2134 = vpop.xlane.xlu0 %2133
  %v2135 = vsel %vm75, %v2123, 0.0
  %2136 = vadd.xlane.f32.xlu0 %v2135
  %v2137 = vpop.xlane.xlu0 %2136
  %v2138 = vsel %vm75, %v2124, 0.0
  %2139 = vadd.xlane.f32.xlu0 %v2138
  %v2140 = vpop.xlane.xlu0 %2139
  %v2141 = vsel %vm75, %v2125, 0.0
  %2142 = vadd.xlane.f32.xlu0 %v2141
  %v2143 = vpop.xlane.xlu0 %2142
  %v2144 = vsel %vm75, %v2126, 0.0
  %2145 = vadd.xlane.f32.xlu0 %v2144
  %v2146 = vpop.xlane.xlu0 %2145
  %v2147 = vsel %vm75, %v2127, 0.0
  %2148 = vadd.xlane.f32.xlu0 %v2147
  %v2149 = vpop.xlane.xlu0 %2148
  %v2150 = vsel %vm75, %v2128, 0.0
  %2151 = vadd.xlane.f32.xlu0 %v2150
  %v2152 = vpop.xlane.xlu0 %2151
  %v2153 = vmul.f32 %v2131, %v1605
  %v2154 = vmul.f32 %v2134, %v1605
  %v2155 = vmul.f32 %v2137, %v1605
  %v2156 = vmul.f32 %v2140, %v1605
  %v2157 = vmul.f32 %v2143, %v1605
  %v2158 = vmul.f32 %v2146, %v1605
  %v2159 = vmul.f32 %v2149, %v1605
  %v2160 = vmul.f32 %v2152, %v1605
  %v2161 = vadd.f32 %v2153, 1e-05
  %v2162 = vadd.f32 %v2154, 1e-05
  %v2163 = vadd.f32 %v2155, 1e-05
  %v2164 = vadd.f32 %v2156, 1e-05
  %v2165 = vadd.f32 %v2157, 1e-05
  %v2166 = vadd.f32 %v2158, 1e-05
  %v2167 = vadd.f32 %v2159, 1e-05
  %v2168 = vadd.f32 %v2160, 1e-05
  %v2169 = vrsqrt.pop %v2161
  %v2170 = vrsqrt.pop %v2162
  %v2171 = vrsqrt.pop %v2163
  %v2172 = vrsqrt.pop %v2164
  %v2173 = vrsqrt.pop %v2165
  %v2174 = vrsqrt.pop %v2166
  %v2175 = vrsqrt.pop %v2167
  %v2176 = vrsqrt.pop %v2168
  %v2177 = vmul.f32 %v2113, %v2169
  %v2178 = vmul.f32 %v2114, %v2170
  %v2179 = vmul.f32 %v2115, %v2171
  %v2180 = vmul.f32 %v2116, %v2172
  %v2181 = vmul.f32 %v2117, %v2173
  %v2182 = vmul.f32 %v2118, %v2174
  %v2183 = vmul.f32 %v2119, %v2175
  %v2184 = vmul.f32 %v2120, %v2176
  %v2186 = vlaneseq
  %v2187 = vshrl.u32 %v2186, 7
  %v2188 = vsub.s32 0, %v2187
  %v2189 = vrot.slane %v2079, %v2188
  %v2191 = vmul.f32 %v2177, %v2189
  %v2192 = vmul.f32 %v2178, %v2189
  %v2193 = vmul.f32 %v2179, %v2189
  %v2194 = vmul.f32 %v2180, %v2189
  %v2195 = vmul.f32 %v2181, %v2189
  %v2196 = vmul.f32 %v2182, %v2189
  %v2197 = vmul.f32 %v2183, %v2189
  %v2198 = vmul.f32 %v2184, %v2189
  %v2200 = vlaneseq
  %v2201 = vshrl.u32 %v2200, 7
  %v2202 = vsub.s32 0, %v2201
  %v2203 = vrot.slane %v2080, %v2202
  %v2205 = vadd.f32 %v2191, %v2203
  %v2206 = vadd.f32 %v2192, %v2203
  %v2207 = vadd.f32 %v2193, %v2203
  %v2208 = vadd.f32 %v2194, %v2203
  %v2209 = vadd.f32 %v2195, %v2203
  %v2210 = vadd.f32 %v2196, %v2203
  %v2211 = vadd.f32 %v2197, %v2203
  %v2212 = vadd.f32 %v2198, %v2203
  %v2213 = vld [vmem:[%s13] sm:$0xff]
  %v2214 = vld [vmem:[%s13 + $0x8] sm:$0xff]
  %v2215 = vld [vmem:[%s13 + $0x10] sm:$0xff]
  %v2216 = vld [vmem:[%s13 + $0x18] sm:$0xff]
  %v2217 = vld [vmem:[%s14] sm:$0x1]
  %v2219 = vlaneseq
  %v2220 = vshrl.u32 %v2219, 7
  %v2221 = vsub.s32 0, %v2220
  %v2222 = vrot.slane %v2217, %v2221
  %v2225 = vsel %vm75, %v2205, 0
  %v2228 = vsel %vm75, %v2206, 0
  %v2231 = vsel %vm75, %v2207, 0
  %v2234 = vsel %vm75, %v2208, 0
  %v2237 = vsel %vm75, %v2209, 0
  %v2240 = vsel %vm75, %v2210, 0
  %v2243 = vsel %vm75, %v2211, 0
  %v2246 = vsel %vm75, %v2212, 0
  %2248 = vmatprep.subr.mxu0 0.0
  %2249 = vmatpush1.msra.mxu0 %v2213
  %2250 = vmatprep.subr.mxu0 0.0
  %2251 = vmatpush1.msra.mxu0 %v2214
  %2252 = vmatprep.subr.mxu0 0.0
  %2253 = vmatpush1.msra.mxu0 %v2215
  %2254 = vmatprep.subr.mxu0 0.0
  %2255 = vmatpush1.msra.mxu0 %v2216
  %2256 = vmatprep.subr.mxu0 0.0
  %2257 = vmatpush1.msra.mxu0 0.0
  %2258 = vmatprep.subr.mxu0 0.0
  %2259 = vmatpush1.msra.mxu0 0.0
  %2260 = vmatprep.subr.mxu0 0.0
  %2261 = vmatpush1.msra.mxu0 0.0
  %2262 = vmatprep.subr.mxu0 0.0
  %2263 = vmatpush1.msra.mxu0 0.0
  %2264 = vmatprep.subr.mxu0 0.0
  %2265 = vmatpush1.msra.mxu0 0.0
  %2266 = vmatprep.subr.mxu0 0.0
  %2267 = vmatpush1.msra.mxu0 0.0
  %2268 = vmatprep.subr.mxu0 0.0
  %2269 = vmatpush1.msra.mxu0 0.0
  %2270 = vmatprep.subr.mxu0 0.0
  %2271 = vmatpush1.msra.mxu0 0.0
  %2272 = vmatprep.subr.mxu0 0.0
  %2273 = vmatpush1.msra.mxu0 0.0
  %2274 = vmatprep.subr.mxu0 0.0
  %2275 = vmatpush1.msra.mxu0 0.0
  %2276 = vmatprep.subr.mxu0 0.0
  %2277 = vmatpush1.msra.mxu0 0.0
  %2278 = vmatprep.subr.mxu0 0.0
  %2279 = vmatpush1.msra.mxu0 0.0
  %2280 = vmatprep.subr.mxu0 0.0
  %2281 = vmatpush1.msra.mxu0 0.0
  %2282 = vmatprep.subr.mxu0 0.0
  %2283 = vmatpush1.msra.mxu0 0.0
  %2284 = vmatprep.subr.mxu0 0.0
  %2285 = vmatpush1.msra.mxu0 0.0
  %2286 = vmatprep.subr.mxu0 0.0
  %2287 = vmatpush1.msra.mxu0 0.0
  %2288 = vmatprep.subr.mxu0 0.0
  %2289 = vmatpush1.msra.mxu0 0.0
  %2290 = vmatprep.subr.mxu0 0.0
  %2291 = vmatpush1.msra.mxu0 0.0
  %2292 = vmatprep.subr.mxu0 0.0
  %2293 = vmatpush1.msra.mxu0 0.0
  %2294 = vmatprep.subr.mxu0 0.0
  %2295 = vmatpush1.msra.mxu0 0.0
  %2296 = vmatprep.subr.mxu0 0.0
  %2297 = vmatpush1.msra.mxu0 0.0
  %2298 = vmatprep.subr.mxu0 0.0
  %2299 = vmatpush1.msra.mxu0 0.0
  %2300 = vmatprep.subr.mxu0 0.0
  %2301 = vmatpush1.msra.mxu0 0.0
  %2302 = vmatprep.subr.mxu0 0.0
  %2303 = vmatpush1.msra.mxu0 0.0
  %2304 = vmatprep.subr.mxu0 0.0
  %2305 = vmatpush1.msra.mxu0 0.0
  %2306 = vmatprep.subr.mxu0 0.0
  %2307 = vmatpush1.msra.mxu0 0.0
  %2308 = vmatprep.subr.mxu0 0.0
  %2309 = vmatpush1.msra.mxu0 0.0
  %2310 = vmatprep.subr.mxu0 0.0
  %2311 = vmatpush1.msra.mxu0 0.0
  %2312 = vmatprep.mubr.f32.mxu0 0.0
  %2313 = vmatmul.mubr.f32.gmra.mrb[0].mxu0 %v2225
  %v2314 = vpop.f32.mrb[0].mxu0
  %v2315 = vadd.f32 %v2222, %v2314
  %v2316 = vpop.f32.mrb[0].mxu0
  %2317 = vmatprep.mubr.f32.mxu0 0.0
  %2318 = vmatmul.mubr.f32.gmra.mrb[0].mxu0 %v2228
  %v2319 = vpop.f32.mrb[0].mxu0
  %v2320 = vadd.f32 %v2222, %v2319
  %v2321 = vpop.f32.mrb[0].mxu0
  %2322 = vmatprep.mubr.f32.mxu0 0.0
  %2323 = vmatmul.mubr.f32.gmra.mrb[0].mxu0 %v2231
  %v2324 = vpop.f32.mrb[0].mxu0
  %v2325 = vadd.f32 %v2222, %v2324
  %v2326 = vpop.f32.mrb[0].mxu0
  %2327 = vmatprep.mubr.f32.mxu0 0.0
  %2328 = vmatmul.mubr.f32.gmra.mrb[0].mxu0 %v2234
  %v2329 = vpop.f32.mrb[0].mxu0
  %v2330 = vadd.f32 %v2222, %v2329
  %v2331 = vpop.f32.mrb[0].mxu0
  %2332 = vmatprep.mubr.f32.mxu0 0.0
  %2333 = vmatmul.mubr.f32.gmra.mrb[0].mxu0 %v2237
  %v2334 = vpop.f32.mrb[0].mxu0
  %v2335 = vadd.f32 %v2222, %v2334
  %v2336 = vpop.f32.mrb[0].mxu0
  %2337 = vmatprep.mubr.f32.mxu0 0.0
  %2338 = vmatmul.mubr.f32.gmra.mrb[0].mxu0 %v2240
  %v2339 = vpop.f32.mrb[0].mxu0
  %v2340 = vadd.f32 %v2222, %v2339
  %v2341 = vpop.f32.mrb[0].mxu0
  %2342 = vmatprep.mubr.f32.mxu0 0.0
  %2343 = vmatmul.mubr.f32.gmra.mrb[0].mxu0 %v2243
  %v2344 = vpop.f32.mrb[0].mxu0
  %v2345 = vadd.f32 %v2222, %v2344
  %v2346 = vpop.f32.mrb[0].mxu0
  %2347 = vmatprep.mubr.f32.mxu0 0.0
  %2348 = vmatmul.mubr.f32.gmra.mrb[0].mxu0 %v2246
  %v2349 = vpop.f32.mrb[0].mxu0
  %v2350 = vadd.f32 %v2222, %v2349
  %v2351 = vpop.f32.mrb[0].mxu0
  %2352 = vdwg.mxu0
  %v2353 = vmax.f32 %v2315, 0.0
  %v2354 = vmax.f32 %v2320, 0.0
  %v2355 = vmax.f32 %v2325, 0.0
  %v2356 = vmax.f32 %v2330, 0.0
  %v2357 = vmax.f32 %v2335, 0.0
  %v2358 = vmax.f32 %v2340, 0.0
  %v2359 = vmax.f32 %v2345, 0.0
  %v2360 = vmax.f32 %v2350, 0.0
  %v2361 = vld [vmem:[%s15] sm:$0xff]
  %v2362 = vld [vmem:[%s16] sm:$0x1]
  %v2364 = vlaneseq
  %v2365 = vshrl.u32 %v2364, 7
  %v2366 = vsub.s32 0, %v2365
  %v2367 = vrot.slane %v2362, %v2366
  %vm2369 = vcmask 64512
  %v2371 = vsel %vm2369, %v2353, 0
  %v2374 = vsel %vm2369, %v2354, 0
  %v2377 = vsel %vm2369, %v2355, 0
  %v2380 = vsel %vm2369, %v2356, 0
  %v2383 = vsel %vm2369, %v2357, 0
  %v2386 = vsel %vm2369, %v2358, 0
  %v2389 = vsel %vm2369, %v2359, 0
  %v2392 = vsel %vm2369, %v2360, 0
  %2394 = vmatprep.subr.mxu0 0.0
  %2395 = vmatpush1.msra.mxu0 %v2361
  %2396 = vmatprep.subr.mxu0 0.0
  %2397 = vmatpush1.msra.mxu0 0.0
  %2398 = vmatprep.subr.mxu0 0.0
  %2399 = vmatpush1.msra.mxu0 0.0
  %2400 = vmatprep.subr.mxu0 0.0
  %2401 = vmatpush1.msra.mxu0 0.0
  %2402 = vmatprep.subr.mxu0 0.0
  %2403 = vmatpush1.msra.mxu0 0.0
  %2404 = vmatprep.subr.mxu0 0.0
  %2405 = vmatpush1.msra.mxu0 0.0
  %2406 = vmatprep.subr.mxu0 0.0
  %2407 = vmatpush1.msra.mxu0 0.0
  %2408 = vmatprep.subr.mxu0 0.0
  %2409 = vmatpush1.msra.mxu0 0.0
  %2410 = vmatprep.subr.mxu0 0.0
  %2411 = vmatpush1.msra.mxu0 0.0
  %2412 = vmatprep.subr.mxu0 0.0
  %2413 = vmatpush1.msra.mxu0 0.0
  %2414 = vmatprep.subr.mxu0 0.0
  %2415 = vmatpush1.msra.mxu0 0.0
  %2416 = vmatprep.subr.mxu0 0.0
  %2417 = vmatpush1.msra.mxu0 0.0
  %2418 = vmatprep.subr.mxu0 0.0
  %2419 = vmatpush1.msra.mxu0 0.0
  %2420 = vmatprep.subr.mxu0 0.0
  %2421 = vmatpush1.msra.mxu0 0.0
  %2422 = vmatprep.subr.mxu0 0.0
  %2423 = vmatpush1.msra.mxu0 0.0
  %2424 = vmatprep.subr.mxu0 0.0
  %2425 = vmatpush1.msra.mxu0 0.0
  %2426 = vmatprep.subr.mxu0 0.0
  %2427 = vmatpush1.msra.mxu0 0.0
  %2428 = vmatprep.subr.mxu0 0.0
  %2429 = vmatpush1.msra.mxu0 0.0
  %2430 = vmatprep.subr.mxu0 0.0
  %2431 = vmatpush1.msra.mxu0 0.0
  %2432 = vmatprep.subr.mxu0 0.0
  %2433 = vmatpush1.msra.mxu0 0.0
  %2434 = vmatprep.subr.mxu0 0.0
  %2435 = vmatpush1.msra.mxu0 0.0
  %2436 = vmatprep.subr.mxu0 0.0
  %2437 = vmatpush1.msra.mxu0 0.0
  %2438 = vmatprep.subr.mxu0 0.0
  %2439 = vmatpush1.msra.mxu0 0.0
  %2440 = vmatprep.subr.mxu0 0.0
  %2441 = vmatpush1.msra.mxu0 0.0
  %2442 = vmatprep.subr.mxu0 0.0
  %2443 = vmatpush1.msra.mxu0 0.0
  %2444 = vmatprep.subr.mxu0 0.0
  %2445 = vmatpush1.msra.mxu0 0.0
  %2446 = vmatprep.subr.mxu0 0.0
  %2447 = vmatpush1.msra.mxu0 0.0
  %2448 = vmatprep.subr.mxu0 0.0
  %2449 = vmatpush1.msra.mxu0 0.0
  %2450 = vmatprep.subr.mxu0 0.0
  %2451 = vmatpush1.msra.mxu0 0.0
  %2452 = vmatprep.subr.mxu0 0.0
  %2453 = vmatpush1.msra.mxu0 0.0
  %2454 = vmatprep.subr.mxu0 0.0
  %2455 = vmatpush1.msra.mxu0 0.0
  %2456 = vmatprep.subr.mxu0 0.0
  %2457 = vmatpush1.msra.mxu0 0.0
  %2458 = vmatprep.mubr.f32.mxu0 0.0
  %2459 = vmatmul.mubr.f32.gmra.mrb[0].mxu0 %v2371
  %v2460 = vpop.f32.mrb[0].mxu0
  %v2461 = vadd.f32 %v2367, %v2460
  %v2462 = vpop.f32.mrb[0].mxu0
  %2463 = vmatprep.mubr.f32.mxu0 0.0
  %2464 = vmatmul.mubr.f32.gmra.mrb[0].mxu0 %v2374
  %v2465 = vpop.f32.mrb[0].mxu0
  %v2466 = vadd.f32 %v2367, %v2465
  %v2467 = vpop.f32.mrb[0].mxu0
  %2468 = vmatprep.mubr.f32.mxu0 0.0
  %2469 = vmatmul.mubr.f32.gmra.mrb[0].mxu0 %v2377
  %v2470 = vpop.f32.mrb[0].mxu0
  %v2471 = vadd.f32 %v2367, %v2470
  %v2472 = vpop.f32.mrb[0].mxu0
  %2473 = vmatprep.mubr.f32.mxu0 0.0
  %2474 = vmatmul.mubr.f32.gmra.mrb[0].mxu0 %v2380
  %v2475 = vpop.f32.mrb[0].mxu0
  %v2476 = vadd.f32 %v2367, %v2475
  %v2477 = vpop.f32.mrb[0].mxu0
  %2478 = vmatprep.mubr.f32.mxu0 0.0
  %2479 = vmatmul.mubr.f32.gmra.mrb[0].mxu0 %v2383
  %v2480 = vpop.f32.mrb[0].mxu0
  %v2481 = vadd.f32 %v2367, %v2480
  %v2482 = vpop.f32.mrb[0].mxu0
  %2483 = vmatprep.mubr.f32.mxu0 0.0
  %2484 = vmatmul.mubr.f32.gmra.mrb[0].mxu0 %v2386
  %v2485 = vpop.f32.mrb[0].mxu0
  %v2486 = vadd.f32 %v2367, %v2485
  %v2487 = vpop.f32.mrb[0].mxu0
  %2488 = vmatprep.mubr.f32.mxu0 0.0
  %2489 = vmatmul.mubr.f32.gmra.mrb[0].mxu0 %v2389
  %v2490 = vpop.f32.mrb[0].mxu0
  %v2491 = vadd.f32 %v2367, %v2490
  %v2492 = vpop.f32.mrb[0].mxu0
  %2493 = vmatprep.mubr.f32.mxu0 0.0
  %2494 = vmatmul.mubr.f32.gmra.mrb[0].mxu0 %v2392
  %v2495 = vpop.f32.mrb[0].mxu0
  %v2496 = vadd.f32 %v2367, %v2495
  %v2497 = vpop.f32.mrb[0].mxu0
  %2498 = vdwg.mxu0
  %v2499 = vadd.f32 %v2205, %v2461
  %v2500 = vadd.f32 %v2206, %v2466
  %v2501 = vadd.f32 %v2207, %v2471
  %v2502 = vadd.f32 %v2208, %v2476
  %v2503 = vadd.f32 %v2209, %v2481
  %v2504 = vadd.f32 %v2210, %v2486
  %v2505 = vadd.f32 %v2211, %v2491
  %v2506 = vadd.f32 %v2212, %v2496
  %2507 = vst.msk [vmem:[%s17] sm:$0xff] %vm75, %v2499
  %2508 = vst.msk [vmem:[%s17 + $0x8] sm:$0xff] %vm75, %v2500
  %2509 = vst.msk [vmem:[%s17 + $0x10] sm:$0xff] %vm75, %v2501
  %2510 = vst.msk [vmem:[%s17 + $0x18] sm:$0xff] %vm75, %v2502
  %2511 = vst.msk [vmem:[%s17 + $0x20] sm:$0xff] %vm75, %v2503
  %2512 = vst.msk [vmem:[%s17 + $0x28] sm:$0xff] %vm75, %v2504
  %2513 = vst.msk [vmem:[%s17 + $0x30] sm:$0xff] %vm75, %v2505
  %2514 = vst.msk [vmem:[%s17 + $0x38] sm:$0xff] %vm75, %v2506
  // Predicated region
  $region70: #{forward.7} parent=0 // pred_check
    _
  $region71: #{forward.7} parent=0 // pred_check_branch
    %2516 = sbr.rel (0) target = $region73
  $region72: #{forward.7} parent=0 // pred_region
    _
  $region73: #{forward.7} parent=0 // pred_fallthru
    _
  // Predicated region
  $region74: #{forward.7} parent=0 // pred_check
    _
  $region75: #{forward.7} parent=0 // pred_check_branch
    %2518 = sbr.rel (0) target = $region77
  $region76: #{forward.7} parent=0 // pred_region
    _
  $region77: #{forward.7} parent=0 // pred_fallthru
    _

// kernel: forward.9
$region0: #{forward.9}
  #allocation0 [shape = 'u32[]', space=smem, size = 0x4, offset = 0x4, fixed_abs, tag = 'smem constant byte address 0x4 - core index']
  #allocation1 [shape = 'u32[144,128]{1,0:T(1,128)}', space=vmem, size = 0x12000, scoped, tag = 'internal scratch']
  %s0 = inlined_call_operand.vmem [shape: f32[64,32], index: 0, kind: input, shape index: {}]
  %s1 = inlined_call_operand.vmem [shape: f32[32,16], index: 1, kind: input, shape index: {}]
  %s2 = inlined_call_operand.vmem [shape: f32[1,16], index: 2, kind: input, shape index: {}]
  %s3 = inlined_call_operand.vmem [shape: f32[64,16], index: 3, kind: output, shape index: {}]
  %s4 = sld [smem:[#allocation0]]
  $region22: #{forward.9} parent=0
    _
  %s6 = ssub.s32 1, %s4
  %s7 = scalar_select 0, %s6, %s4
  // Predicated region
  $region2: #{forward.9} parent=0 // pred_check
    _
  $region3: #{forward.9} parent=0 // pred_check_branch
    %9 = sbr.rel (0) target = $region5
  $region4: #{forward.9} parent=0 // pred_region
    _
  $region5: #{forward.9} parent=0 // pred_fallthru
    _
  // Predicated region
  $region6: #{forward.9} parent=0 // pred_check
    _
  $region7: #{forward.9} parent=0 // pred_check_branch
    %11 = sbr.rel (0) target = $region9
  $region8: #{forward.9} parent=0 // pred_region
    _
  $region9: #{forward.9} parent=0 // pred_fallthru
    _
  // Predicated region
  $region10: #{forward.9} parent=0 // pred_check
    _
  $region11: #{forward.9} parent=0 // pred_check_branch
    %13 = sbr.rel (0) target = $region13
  $region12: #{forward.9} parent=0 // pred_region
    _
  $region13: #{forward.9} parent=0 // pred_fallthru
    _
  %v14 = vld [vmem:[%s0] sm:$0xff]
  %v15 = vld [vmem:[%s0 + $0x8] sm:$0xff]
  %v16 = vld [vmem:[%s0 + $0x10] sm:$0xff]
  %v17 = vld [vmem:[%s0 + $0x18] sm:$0xff]
  %v18 = vld [vmem:[%s0 + $0x20] sm:$0xff]
  %v19 = vld [vmem:[%s0 + $0x28] sm:$0xff]
  %v20 = vld [vmem:[%s0 + $0x30] sm:$0xff]
  %v21 = vld [vmem:[%s0 + $0x38] sm:$0xff]
  %v22 = vld [vmem:[%s1] sm:$0xff]
  %v23 = vld [vmem:[%s1 + $0x8] sm:$0xff]
  %v24 = vld [vmem:[%s1 + $0x10] sm:$0xff]
  %v25 = vld [vmem:[%s1 + $0x18] sm:$0xff]
  %v26 = vld [vmem:[%s2] sm:$0x1]
  %v28 = vlaneseq
  %v29 = vshrl.u32 %v28, 7
  %v30 = vsub.s32 0, %v29
  %v31 = vrot.slane %v26, %v30
  %vm33 = vcmask 261120
  %v35 = vsel %vm33, %v14, 0
  %v38 = vsel %vm33, %v15, 0
  %v41 = vsel %vm33, %v16, 0
  %v44 = vsel %vm33, %v17, 0
  %v47 = vsel %vm33, %v18, 0
  %v50 = vsel %vm33, %v19, 0
  %v53 = vsel %vm33, %v20, 0
  %v56 = vsel %vm33, %v21, 0
  %58 = vmatprep.subr.mxu0 0.0
  %59 = vmatpush1.msra.mxu0 %v22
  %60 = vmatprep.subr.mxu0 0.0
  %61 = vmatpush1.msra.mxu0 %v23
  %62 = vmatprep.subr.mxu0 0.0
  %63 = vmatpush1.msra.mxu0 %v24
  %64 = vmatprep.subr.mxu0 0.0
  %65 = vmatpush1.msra.mxu0 %v25
  %66 = vmatprep.subr.mxu0 0.0
  %67 = vmatpush1.msra.mxu0 0.0
  %68 = vmatprep.subr.mxu0 0.0
  %69 = vmatpush1.msra.mxu0 0.0
  %70 = vmatprep.subr.mxu0 0.0
  %71 = vmatpush1.msra.mxu0 0.0
  %72 = vmatprep.subr.mxu0 0.0
  %73 = vmatpush1.msra.mxu0 0.0
  %74 = vmatprep.subr.mxu0 0.0
  %75 = vmatpush1.msra.mxu0 0.0
  %76 = vmatprep.subr.mxu0 0.0
  %77 = vmatpush1.msra.mxu0 0.0
  %78 = vmatprep.subr.mxu0 0.0
  %79 = vmatpush1.msra.mxu0 0.0
  %80 = vmatprep.subr.mxu0 0.0
  %81 = vmatpush1.msra.mxu0 0.0
  %82 = vmatprep.subr.mxu0 0.0
  %83 = vmatpush1.msra.mxu0 0.0
  %84 = vmatprep.subr.mxu0 0.0
  %85 = vmatpush1.msra.mxu0 0.0
  %86 = vmatprep.subr.mxu0 0.0
  %87 = vmatpush1.msra.mxu0 0.0
  %88 = vmatprep.subr.mxu0 0.0
  %89 = vmatpush1.msra.mxu0 0.0
  %90 = vmatprep.subr.mxu0 0.0
  %91 = vmatpush1.msra.mxu0 0.0
  %92 = vmatprep.subr.mxu0 0.0
  %93 = vmatpush1.msra.mxu0 0.0
  %94 = vmatprep.subr.mxu0 0.0
  %95 = vmatpush1.msra.mxu0 0.0
  %96 = vmatprep.subr.mxu0 0.0
  %97 = vmatpush1.msra.mxu0 0.0
  %98 = vmatprep.subr.mxu0 0.0
  %99 = vmatpush1.msra.mxu0 0.0
  %100 = vmatprep.subr.mxu0 0.0
  %101 = vmatpush1.msra.mxu0 0.0
  %102 = vmatprep.subr.mxu0 0.0
  %103 = vmatpush1.msra.mxu0 0.0
  %104 = vmatprep.subr.mxu0 0.0
  %105 = vmatpush1.msra.mxu0 0.0
  %106 = vmatprep.subr.mxu0 0.0
  %107 = vmatpush1.msra.mxu0 0.0
  %108 = vmatprep.subr.mxu0 0.0
  %109 = vmatpush1.msra.mxu0 0.0
  %110 = vmatprep.subr.mxu0 0.0
  %111 = vmatpush1.msra.mxu0 0.0
  %112 = vmatprep.subr.mxu0 0.0
  %113 = vmatpush1.msra.mxu0 0.0
  %114 = vmatprep.subr.mxu0 0.0
  %115 = vmatpush1.msra.mxu0 0.0
  %116 = vmatprep.subr.mxu0 0.0
  %117 = vmatpush1.msra.mxu0 0.0
  %118 = vmatprep.subr.mxu0 0.0
  %119 = vmatpush1.msra.mxu0 0.0
  %120 = vmatprep.subr.mxu0 0.0
  %121 = vmatpush1.msra.mxu0 0.0
  %122 = vmatprep.mubr.f32.mxu0 0.0
  %123 = vmatmul.mubr.f32.gmra.mrb[0].mxu0 %v35
  %v124 = vpop.f32.mrb[0].mxu0
  %v125 = vadd.f32 %v31, %v124
  %v126 = vpop.f32.mrb[0].mxu0
  %127 = vmatprep.mubr.f32.mxu0 0.0
  %128 = vmatmul.mubr.f32.gmra.mrb[0].mxu0 %v38
  %v129 = vpop.f32.mrb[0].mxu0
  %v130 = vadd.f32 %v31, %v129
  %v131 = vpop.f32.mrb[0].mxu0
  %132 = vmatprep.mubr.f32.mxu0 0.0
  %133 = vmatmul.mubr.f32.gmra.mrb[0].mxu0 %v41
  %v134 = vpop.f32.mrb[0].mxu0
  %v135 = vadd.f32 %v31, %v134
  %v136 = vpop.f32.mrb[0].mxu0
  %137 = vmatprep.mubr.f32.mxu0 0.0
  %138 = vmatmul.mubr.f32.gmra.mrb[0].mxu0 %v44
  %v139 = vpop.f32.mrb[0].mxu0
  %v140 = vadd.f32 %v31, %v139
  %v141 = vpop.f32.mrb[0].mxu0
  %142 = vmatprep.mubr.f32.mxu0 0.0
  %143 = vmatmul.mubr.f32.gmra.mrb[0].mxu0 %v47
  %v144 = vpop.f32.mrb[0].mxu0
  %v145 = vadd.f32 %v31, %v144
  %v146 = vpop.f32.mrb[0].mxu0
  %147 = vmatprep.mubr.f32.mxu0 0.0
  %148 = vmatmul.mubr.f32.gmra.mrb[0].mxu0 %v50
  %v149 = vpop.f32.mrb[0].mxu0
  %v150 = vadd.f32 %v31, %v149
  %v151 = vpop.f32.mrb[0].mxu0
  %152 = vmatprep.mubr.f32.mxu0 0.0
  %153 = vmatmul.mubr.f32.gmra.mrb[0].mxu0 %v53
  %v154 = vpop.f32.mrb[0].mxu0
  %v155 = vadd.f32 %v31, %v154
  %v156 = vpop.f32.mrb[0].mxu0
  %157 = vmatprep.mubr.f32.mxu0 0.0
  %158 = vmatmul.mubr.f32.gmra.mrb[0].mxu0 %v56
  %v159 = vpop.f32.mrb[0].mxu0
  %v160 = vadd.f32 %v31, %v159
  %v161 = vpop.f32.mrb[0].mxu0
  %162 = vdwg.mxu0
  %vm163 = vcmask 130048
  %164 = vst.msk [vmem:[%s3] sm:$0xff] %vm163, %v125
  %165 = vst.msk [vmem:[%s3 + $0x8] sm:$0xff] %vm163, %v130
  %166 = vst.msk [vmem:[%s3 + $0x10] sm:$0xff] %vm163, %v135
  %167 = vst.msk [vmem:[%s3 + $0x18] sm:$0xff] %vm163, %v140
  %168 = vst.msk [vmem:[%s3 + $0x20] sm:$0xff] %vm163, %v145
  %169 = vst.msk [vmem:[%s3 + $0x28] sm:$0xff] %vm163, %v150
  %170 = vst.msk [vmem:[%s3 + $0x30] sm:$0xff] %vm163, %v155
  %171 = vst.msk [vmem:[%s3 + $0x38] sm:$0xff] %vm163, %v160
  // Predicated region
  $region14: #{forward.9} parent=0 // pred_check
    _
  $region15: #{forward.9} parent=0 // pred_check_branch
    %173 = sbr.rel (0) target = $region17
  $region16: #{forward.9} parent=0 // pred_region
    _
  $region17: #{forward.9} parent=0 // pred_fallthru
    _
  // Predicated region
  $region18: #{forward.9} parent=0 // pred_check
    _
  $region19: #{forward.9} parent=0 // pred_check_branch
    %175 = sbr.rel (0) target = $region21
  $region20: #{forward.9} parent=0 // pred_region
    _
  $region21: #{forward.9} parent=0 // pred_fallthru
    _

</llo_original>
